<compile_context>
chip_gen: v6e
topology: v6e:2x2x1
jax: 0.10.0
libtpu: 0.0.40
codegen_flags: <defaults>
</compile_context>

<pallas_src>
import numpy as np
import jax
import jax.numpy as jnp
from jax import lax
from jax.experimental import pallas as pl
from jax.experimental.pallas import tpu as pltpu

NUM_CLASS = 10  # len(idx2id) is not provided in the snippet; fixed synthetic value.
BN_EPS = 1e-5
MAX_BB = 64     # max images per grid step (batch tile)


# ------------------------------ Pallas kernel -------------------------------

def _cnn_kernel(x_ref, a_ref, s1_ref, pj_ref, w2_ref, s2_ref,
                w3_ref, b3_ref, w4_ref, b4_ref, o_ref):
    # x_ref : (BB, 16, 720) bf16 -- per conv1-output-row window of 5 padded rows
    #                               (lane = 144*kh + 3*w_pad + c); row t=15 is scrap.
    # a_ref : (720, 480)    bf16 -- fused conv1 taps (BN1 scale & /255 folded)
    bb = x_ref.shape[0]
    m = bb * 16  # conv1 output rows per step; t=15 of each image is never consumed

    # ---- Conv1 (5x5, stride 3, pad 2) + BN1 + ReLU: one dense MXU matmul -----
    lhs = x_ref[...].reshape(m, 720)
    y1 = jnp.dot(lhs, a_ref[...], preferred_element_type=jnp.float32)    # (m,480)
    y1 = jnp.maximum(y1 + s1_ref[...], 0.0).astype(jnp.bfloat16)

    # ---- AvgPool2d(5,5): columns via constant matmul (128-lane padded), ------
    # ---- then rows via 5-row sums --------------------------------------------
    z = jnp.dot(y1, pj_ref[...], preferred_element_type=jnp.float32)     # (m,128)
    z = z.reshape(bb, 16, 128)

    # ---- Conv2 (3x3, s=2, p=1) as dense matmuls + BN2 + ReLU -----------------
    acc = None
    for p in range(3):
        pool_p = jnp.sum(z[:, 5 * p:5 * p + 5, :], axis=1).astype(jnp.bfloat16)
        d = jnp.dot(pool_p, w2_ref[p], preferred_element_type=jnp.float32)
        acc = d if acc is None else acc + d
    h2 = jnp.maximum(acc + s2_ref[...], 0.0).astype(jnp.bfloat16)        # (bb,128)

    # ---- fc1 + ReLU, fc2 (weights pre-permuted / zero-padded to 128 lanes) ---
    h3 = jnp.maximum(
        jnp.dot(h2, w3_ref[...], preferred_element_type=jnp.float32) + b3_ref[...],
        0.0).astype(jnp.bfloat16)
    o_ref[...] = (jnp.dot(h3, w4_ref[...], preferred_element_type=jnp.float32)
                  + b4_ref[...])


# --------------------------- parameter folding ------------------------------

def init_params(key):
    ks = jax.random.split(key, 8)
    nc2 = 2 * NUM_CLASS
    return {
        # conv weights stored as (KH, KW, Cin, Cout)
        "conv1_w": 0.15 * jax.random.normal(ks[0], (5, 5, 3, 32), jnp.float32),
        "conv1_b": 0.05 * jax.random.normal(ks[1], (32,), jnp.float32),
        "conv2_w": 0.15 * jax.random.normal(ks[2], (3, 3, 32, 32), jnp.float32),
        "conv2_b": 0.05 * jax.random.normal(ks[3], (32,), jnp.float32),
        # BatchNorm (inference-mode running statistics + affine)
        "bn1_gamma": jnp.ones((32,), jnp.float32) + 0.1,
        "bn1_beta": jnp.full((32,), 0.05, jnp.float32),
        "bn1_mean": jnp.full((32,), 0.02, jnp.float32),
        "bn1_var": jnp.ones((32,), jnp.float32) * 0.9,
        "bn2_gamma": jnp.ones((32,), jnp.float32) - 0.05,
        "bn2_beta": jnp.full((32,), -0.03, jnp.float32),
        "bn2_mean": jnp.full((32,), 0.01, jnp.float32),
        "bn2_var": jnp.ones((32,), jnp.float32) * 1.1,
        # fc weights in (in, out) layout; fc1 input index uses PyTorch NCHW flatten
        "fc1_w": 0.3 * jax.random.normal(ks[4], (32 * 2 * 2, nc2), jnp.float32),
        "fc1_b": 0.05 * jax.random.normal(ks[5], (nc2,), jnp.float32),
        "fc2_w": 0.3 * jax.random.normal(ks[6], (nc2, NUM_CLASS), jnp.float32),
        "fc2_b": 0.05 * jax.random.normal(ks[7], (NUM_CLASS,), jnp.float32),
    }


def fold_params(params):
    """One-time fold of BN scales, /255, pooling, conv2-as-dense and fc padding."""
    f32 = jnp.float32
    hp = lax.Precision.HIGHEST

    inv1 = 1.0 / jnp.sqrt(params["bn1_var"] + BN_EPS)
    scale1 = params["bn1_gamma"] * inv1 / 255.0          # /255 folded here
    shift1 = (params["conv1_b"] - params["bn1_mean"]) * params["bn1_gamma"] * inv1 \
        + params["bn1_beta"]
    inv2 = 1.0 / jnp.sqrt(params["bn2_var"] + BN_EPS)
    scale2 = params["bn2_gamma"] * inv2
    shift2 = (params["conv2_b"] - params["bn2_mean"]) * params["bn2_gamma"] * inv2 \
        + params["bn2_beta"]

    # Fused conv1 tap matrix A : (720, 480).  Row 144*kh + (3*w_pad + c),
    # column 32*j + o; nonzero where w_pad == 3*j + kw.
    w1s = params["conv1_w"].astype(f32) * scale1[None, None, None, :]    # (5,5,3,32)
    mask1 = np.zeros((144, 15, 5, 3), np.float32)
    j_i, kw_i, c_i = np.meshgrid(np.arange(15), np.arange(5), np.arange(3),
                                 indexing="ij")
    mask1[9 * j_i + 3 * kw_i + c_i, j_i, kw_i, c_i] = 1.0
    a_mat = jnp.einsum("mjkc,hkco->hmjo", jnp.asarray(mask1), w1s, precision=hp)
    a_mat = a_mat.reshape(720, 480).astype(jnp.bfloat16)
    shift1_480 = jnp.tile(shift1, 15).reshape(1, 480).astype(f32)

    # Column (j) part of AvgPool(5,5); full 1/25 mean factor folded; 128-lane pad.
    jmat = (np.arange(15)[:, None] // 5 == np.arange(3)[None, :]).astype(np.float32)
    pj96 = np.kron(jmat, np.eye(32, dtype=np.float32)) / 25.0            # (480,96)
    pj = np.zeros((480, 128), np.float32)
    pj[:, :96] = pj96
    pj = jnp.asarray(pj).astype(jnp.bfloat16)

    # Conv2 as dense matmuls over the pooled 3x3x32 map: W2[pi, 32*pj+c, 32*s+o],
    # input rows zero-padded 96 -> 128 (matches the padded pool lanes).
    w2s = params["conv2_w"].astype(f32) * scale2[None, None, None, :]    # (3,3,32,32)
    mask2 = np.zeros((3, 3, 4, 3, 3), np.float32)
    for s in range(4):
        u, v = divmod(s, 2)
        for dh in range(3):
            for dw in range(3):
                pi, pjx = 2 * u + dh - 1, 2 * v + dw - 1
                if 0 <= pi < 3 and 0 <= pjx < 3:
                    mask2[pi, pjx, s, dh, dw] = 1.0
    w2d = jnp.einsum("pqsde,decf->pqcsf", jnp.asarray(mask2), w2s, precision=hp)
    w2d = w2d.reshape(3, 96, 128)
    w2p = jnp.zeros((3, 128, 128), f32).at[:, :96, :].set(w2d).astype(jnp.bfloat16)
    shift2_128 = jnp.tile(shift2, 4).reshape(1, 128).astype(f32)

    # fc1: permute rows from PyTorch NCHW-flatten order to our NHWC-flatten order,
    # zero-pad N to 128 lanes; fc2: zero-pad K and N to 128 (lane-dense HBM output).
    nc2 = 2 * NUM_CLASS
    perm = np.array([(l % 32) * 4 + (l // 32) for l in range(128)])
    fc1w = jnp.zeros((128, 128), f32).at[:, :nc2].set(params["fc1_w"][perm, :])
    fc1b = jnp.zeros((1, 128), f32).at[0, :nc2].set(params["fc1_b"])
    fc2w = jnp.zeros((128, 128), f32).at[:nc2, :NUM_CLASS].set(params["fc2_w"])
    fc2b = jnp.zeros((1, 128), f32).at[0, :NUM_CLASS].set(params["fc2_b"])

    return dict(a=a_mat, s1=shift1_480, pj=pj, w2=w2p, s2=shift2_128,
                fc1w=fc1w.astype(jnp.bfloat16), fc1b=fc1b,
                fc2w=fc2w.astype(jnp.bfloat16), fc2b=fc2b)


# ------------------------------ forward pass --------------------------------

def _choose_bb(batch):
    """Batch tile: multiple of 8, <= MAX_BB, grid length >= 2 when batch allows."""
    if batch <= 8:
        return 8
    half = -(-batch // 2)                      # ceil(batch / 2)
    return min(MAX_BB, ((half + 7) // 8) * 8)


def cnn_forward(x_nchw, folded):
    """x_nchw: (B, 3, 45, 45) float32 raw pixels (like the PyTorch module)."""
    B = x_nchw.shape[0]
    assert x_nchw.shape[1:] == (3, 45, 45)

    # Layout plumbing (done once by XLA): NCHW -> NHWC, pad to (51,48), flatten
    # W*C, then build the 16 per-output-row windows of 5 padded rows each so the
    # kernel's conv1 LHS is a free reshape (no in-kernel gather/concat).
    x = jnp.transpose(x_nchw.astype(jnp.bfloat16), (0, 2, 3, 1))      # (B,45,45,3)
    x = jnp.pad(x, ((0, 0), (2, 4), (2, 1), (0, 0)))                  # (B,51,48,3)
    x = x.reshape(B, 51, 144)
    x = jnp.stack([x[:, kh:kh + 46:3, :] for kh in range(5)], axis=2)  # (B,16,5,144)
    x = x.reshape(B, 16, 720)

    bb = _choose_bb(B)
    b_pad = ((B + bb - 1) // bb) * bb
    if b_pad != B:
        x = jnp.pad(x, ((0, b_pad - B), (0, 0), (0, 0)))

    flops = 2 * b_pad * (16 * 720 * 480 + 16 * 480 * 128
                         + 3 * 128 * 128 + 2 * 128 * 128)
    bytes_accessed = (x.size * 2
                      + (folded["a"].size + folded["pj"].size + folded["w2"].size
                         + folded["fc1w"].size + folded["fc2w"].size) * 2
                      + (folded["s1"].size + folded["s2"].size
                         + folded["fc1b"].size + folded["fc2b"].size) * 4
                      + b_pad * 128 * 4)

    out = pl.pallas_call(
        _cnn_kernel,
        out_shape=jax.ShapeDtypeStruct((b_pad, 128), jnp.float32),
        grid=(b_pad // bb,),
        in_specs=[
            pl.BlockSpec((bb, 16, 720), lambda b: (b, 0, 0)),     # image block
            pl.BlockSpec((720, 480), lambda b: (0, 0)),           # fused conv1 taps
            pl.BlockSpec((1, 480), lambda b: (0, 0)),             # BN1 shift
            pl.BlockSpec((480, 128), lambda b: (0, 0)),           # pool (cols), padded
            pl.BlockSpec((3, 128, 128), lambda b: (0, 0, 0)),     # conv2 dense, padded
            pl.BlockSpec((1, 128), lambda b: (0, 0)),             # BN2 shift
            pl.BlockSpec((128, 128), lambda b: (0, 0)),           # fc1 w
            pl.BlockSpec((1, 128), lambda b: (0, 0)),             # fc1 b
            pl.BlockSpec((128, 128), lambda b: (0, 0)),           # fc2 w
            pl.BlockSpec((1, 128), lambda b: (0, 0)),             # fc2 b
        ],
        out_specs=pl.BlockSpec((bb, 128), lambda b: (b, 0)),
        compiler_params=pltpu.CompilerParams(
            dimension_semantics=("parallel",),
            vmem_limit_bytes=32 * 1024 * 1024),
        cost_estimate=pl.CostEstimate(flops=int(flops), transcendentals=0,
                                      bytes_accessed=int(bytes_accessed)),
    )(x, folded["a"], folded["s1"], folded["pj"], folded["w2"], folded["s2"],
      folded["fc1w"], folded["fc1b"], folded["fc2w"], folded["fc2b"])

    # Padded batch rows and the per-image scrap conv row (t=15) compute garbage
    # but are never read into the final output.
    return out[:B, :NUM_CLASS]


# --------------------------- pure-JAX reference -----------------------------

def cnn_reference(x_nchw, params):
    hp = lax.Precision.HIGHEST

    def bn(v, g, b, m, var):
        return (v - m) / jnp.sqrt(var + BN_EPS) * g + b

    x = jnp.transpose(x_nchw, (0, 2, 3, 1)).astype(jnp.float32) / 255.0
    y = lax.conv_general_dilated(x, params["conv1_w"], (3, 3), ((2, 2), (2, 2)),
                                 dimension_numbers=("NHWC", "HWIO", "NHWC"),
                                 precision=hp) + params["conv1_b"]
    y = jnp.maximum(bn(y, params["bn1_gamma"], params["bn1_beta"],
                       params["bn1_mean"], params["bn1_var"]), 0.0)
    B = y.shape[0]
    y = y.reshape(B, 3, 5, 3, 5, 32).mean(axis=(2, 4))               # AvgPool(5,5)
    y = lax.conv_general_dilated(y, params["conv2_w"], (2, 2), ((1, 1), (1, 1)),
                                 dimension_numbers=("NHWC", "HWIO", "NHWC"),
                                 precision=hp) + params["conv2_b"]
    y = jnp.maximum(bn(y, params["bn2_gamma"], params["bn2_beta"],
                       params["bn2_mean"], params["bn2_var"]), 0.0)
    y = jnp.transpose(y, (0, 3, 1, 2)).reshape(B, 32 * 2 * 2)        # NCHW flatten
    h = jnp.maximum(jnp.dot(y, params["fc1_w"], precision=hp) + params["fc1_b"], 0.0)
    return jnp.dot(h, params["fc2_w"], precision=hp) + params["fc2_b"]


# TODO(synk): BatchNorm training-mode (batch statistics) is not implemented;
#             this reproduces eval-mode semantics with running stats.

if __name__ == "__main__":
    key = jax.random.PRNGKey(0)
    # 45x45 input so the conv stack produces the 2x2 map required by reshape(-1,128).
    x = jax.random.uniform(key, (2, 3, 45, 45), jnp.float32, 0.0, 255.0)
    params = init_params(jax.random.PRNGKey(42))
    folded = fold_params(params)

    fwd = jax.jit(lambda xx: cnn_forward(xx, folded))
    out = jax.block_until_ready(fwd(x))

    assert out.shape == (2, NUM_CLASS)
    assert bool(jnp.all(jnp.isfinite(out)))

    ref = jax.block_until_ready(cnn_reference(x, params))
    np.testing.assert_allclose(np.asarray(out), np.asarray(ref), rtol=0.1, atol=0.2)

    print("KERNEL_OK")
</pallas_src>

<mosaic_0001>
module attributes {stable_mosaic.version = 11 : i64} {
  func.func @_cnn_kernel(%arg0: i32, %arg1: memref<8x16x720xbf16, #tpu.memory_space<vmem>>, %arg2: memref<720x480xbf16, #tpu.memory_space<vmem>>, %arg3: memref<1x480xf32, #tpu.memory_space<vmem>>, %arg4: memref<480x128xbf16, #tpu.memory_space<vmem>>, %arg5: memref<3x128x128xbf16, #tpu.memory_space<vmem>>, %arg6: memref<1x128xf32, #tpu.memory_space<vmem>>, %arg7: memref<128x128xbf16, #tpu.memory_space<vmem>>, %arg8: memref<1x128xf32, #tpu.memory_space<vmem>>, %arg9: memref<128x128xbf16, #tpu.memory_space<vmem>>, %arg10: memref<1x128xf32, #tpu.memory_space<vmem>>, %arg11: memref<8x128xf32, #tpu.memory_space<vmem>>) attributes {dimension_semantics = [#tpu.dimension_semantics<parallel>], iteration_bounds = array<i64: 1>, scalar_prefetch = 0 : i64, scratch_operands = 0 : i64, tpu.core_type = #tpu.core_type<tc>, window_params = [{transform_indices = @transform_0, window_bounds = array<i64: 8, 16, 720>}, {pipeline_mode = #tpu.pipeline_mode<synchronous>, transform_indices = @transform_1, window_bounds = array<i64: 720, 480>}, {pipeline_mode = #tpu.pipeline_mode<synchronous>, transform_indices = @transform_2, window_bounds = array<i64: 1, 480>}, {pipeline_mode = #tpu.pipeline_mode<synchronous>, transform_indices = @transform_3, window_bounds = array<i64: 480, 128>}, {pipeline_mode = #tpu.pipeline_mode<synchronous>, transform_indices = @transform_4, window_bounds = array<i64: 3, 128, 128>}, {pipeline_mode = #tpu.pipeline_mode<synchronous>, transform_indices = @transform_5, window_bounds = array<i64: 1, 128>}, {pipeline_mode = #tpu.pipeline_mode<synchronous>, transform_indices = @transform_6, window_bounds = array<i64: 128, 128>}, {pipeline_mode = #tpu.pipeline_mode<synchronous>, transform_indices = @transform_7, window_bounds = array<i64: 1, 128>}, {pipeline_mode = #tpu.pipeline_mode<synchronous>, transform_indices = @transform_8, window_bounds = array<i64: 128, 128>}, {pipeline_mode = #tpu.pipeline_mode<synchronous>, transform_indices = @transform_9, window_bounds = array<i64: 1, 128>}, {transform_indices = @transform_10, window_bounds = array<i64: 8, 128>}]} {
    %c0 = arith.constant 0 : index
    %c0_0 = arith.constant 0 : index
    %c0_1 = arith.constant 0 : index
    %0 = vector.load %arg1[%c0, %c0_0, %c0_1] : memref<8x16x720xbf16, #tpu.memory_space<vmem>>, vector<8x16x720xbf16>
    %1 = vector.shape_cast %0 : vector<8x16x720xbf16> to vector<128x720xbf16>
    %c0_2 = arith.constant 0 : index
    %c0_3 = arith.constant 0 : index
    %2 = vector.load %arg2[%c0_2, %c0_3] : memref<720x480xbf16, #tpu.memory_space<vmem>>, vector<720x480xbf16>
    %cst = arith.constant dense<0.000000e+00> : vector<128x480xf32>
    %3 = tpu.matmul %1, %2, %cst {dimension_numbers = #tpu.dot_dimension_numbers<[1], [0], [0], [1], [0, 0, 1, 1], [], []>} : vector<128x720xbf16>, vector<720x480xbf16>, vector<128x480xf32> -> vector<128x480xf32>
    %c0_4 = arith.constant 0 : index
    %c0_5 = arith.constant 0 : index
    %4 = vector.load %arg3[%c0_4, %c0_5] : memref<1x480xf32, #tpu.memory_space<vmem>>, vector<1x480xf32>
    %5 = vector.broadcast %4 : vector<1x480xf32> to vector<128x480xf32>
    %6 = arith.addf %3, %5 : vector<128x480xf32>
    %cst_6 = arith.constant 0.000000e+00 : f32
    %7 = vector.broadcast %cst_6 : f32 to vector<128x480xf32>
    %8 = arith.maximumf %6, %7 : vector<128x480xf32>
    %9 = arith.truncf %8 : vector<128x480xf32> to vector<128x480xbf16>
    %c0_7 = arith.constant 0 : index
    %c0_8 = arith.constant 0 : index
    %10 = vector.load %arg4[%c0_7, %c0_8] : memref<480x128xbf16, #tpu.memory_space<vmem>>, vector<480x128xbf16>
    %cst_9 = arith.constant dense<0.000000e+00> : vector<128x128xf32>
    %11 = tpu.matmul %9, %10, %cst_9 {dimension_numbers = #tpu.dot_dimension_numbers<[1], [0], [0], [1], [0, 0, 1, 1], [], []>} : vector<128x480xbf16>, vector<480x128xbf16>, vector<128x128xf32> -> vector<128x128xf32>
    %12 = vector.shape_cast %11 : vector<128x128xf32> to vector<8x16x128xf32>
    %13 = vector.extract_strided_slice %12 {offsets = [0, 0, 0], sizes = [8, 5, 128], strides = [1, 1, 1]} : vector<8x16x128xf32> to vector<8x5x128xf32>
    %cst_10 = arith.constant dense<0.000000e+00> : vector<8x128xf32>
    %14 = vector.multi_reduction <add>, %13, %cst_10 [1] : vector<8x5x128xf32> to vector<8x128xf32>
    %15 = arith.truncf %14 : vector<8x128xf32> to vector<8x128xbf16>
    %c0_11 = arith.constant 0 : index
    %c0_12 = arith.constant 0 : index
    %c0_13 = arith.constant 0 : index
    %16 = vector.load %arg5[%c0_11, %c0_12, %c0_13] : memref<3x128x128xbf16, #tpu.memory_space<vmem>>, vector<1x128x128xbf16>
    %17 = vector.shape_cast %16 : vector<1x128x128xbf16> to vector<128x128xbf16>
    %cst_14 = arith.constant dense<0.000000e+00> : vector<8x128xf32>
    %18 = tpu.matmul %15, %17, %cst_14 {dimension_numbers = #tpu.dot_dimension_numbers<[1], [0], [0], [1], [0, 0, 1, 1], [], []>} : vector<8x128xbf16>, vector<128x128xbf16>, vector<8x128xf32> -> vector<8x128xf32>
    %19 = vector.extract_strided_slice %12 {offsets = [0, 5, 0], sizes = [8, 5, 128], strides = [1, 1, 1]} : vector<8x16x128xf32> to vector<8x5x128xf32>
    %cst_15 = arith.constant dense<0.000000e+00> : vector<8x128xf32>
    %20 = vector.multi_reduction <add>, %19, %cst_15 [1] : vector<8x5x128xf32> to vector<8x128xf32>
    %21 = arith.truncf %20 : vector<8x128xf32> to vector<8x128xbf16>
    %c1 = arith.constant 1 : index
    %c0_16 = arith.constant 0 : index
    %c0_17 = arith.constant 0 : index
    %22 = vector.load %arg5[%c1, %c0_16, %c0_17] : memref<3x128x128xbf16, #tpu.memory_space<vmem>>, vector<1x128x128xbf16>
    %23 = vector.shape_cast %22 : vector<1x128x128xbf16> to vector<128x128xbf16>
    %cst_18 = arith.constant dense<0.000000e+00> : vector<8x128xf32>
    %24 = tpu.matmul %21, %23, %cst_18 {dimension_numbers = #tpu.dot_dimension_numbers<[1], [0], [0], [1], [0, 0, 1, 1], [], []>} : vector<8x128xbf16>, vector<128x128xbf16>, vector<8x128xf32> -> vector<8x128xf32>
    %25 = arith.addf %18, %24 : vector<8x128xf32>
    %26 = vector.extract_strided_slice %12 {offsets = [0, 10, 0], sizes = [8, 5, 128], strides = [1, 1, 1]} : vector<8x16x128xf32> to vector<8x5x128xf32>
    %cst_19 = arith.constant dense<0.000000e+00> : vector<8x128xf32>
    %27 = vector.multi_reduction <add>, %26, %cst_19 [1] : vector<8x5x128xf32> to vector<8x128xf32>
    %28 = arith.truncf %27 : vector<8x128xf32> to vector<8x128xbf16>
    %c2 = arith.constant 2 : index
    %c0_20 = arith.constant 0 : index
    %c0_21 = arith.constant 0 : index
    %29 = vector.load %arg5[%c2, %c0_20, %c0_21] : memref<3x128x128xbf16, #tpu.memory_space<vmem>>, vector<1x128x128xbf16>
    %30 = vector.shape_cast %29 : vector<1x128x128xbf16> to vector<128x128xbf16>
    %cst_22 = arith.constant dense<0.000000e+00> : vector<8x128xf32>
    %31 = tpu.matmul %28, %30, %cst_22 {dimension_numbers = #tpu.dot_dimension_numbers<[1], [0], [0], [1], [0, 0, 1, 1], [], []>} : vector<8x128xbf16>, vector<128x128xbf16>, vector<8x128xf32> -> vector<8x128xf32>
    %32 = arith.addf %25, %31 : vector<8x128xf32>
    %c0_23 = arith.constant 0 : index
    %c0_24 = arith.constant 0 : index
    %33 = vector.load %arg6[%c0_23, %c0_24] : memref<1x128xf32, #tpu.memory_space<vmem>>, vector<1x128xf32>
    %34 = vector.broadcast %33 : vector<1x128xf32> to vector<8x128xf32>
    %35 = arith.addf %32, %34 : vector<8x128xf32>
    %cst_25 = arith.constant 0.000000e+00 : f32
    %36 = vector.broadcast %cst_25 : f32 to vector<8x128xf32>
    %37 = arith.maximumf %35, %36 : vector<8x128xf32>
    %38 = arith.truncf %37 : vector<8x128xf32> to vector<8x128xbf16>
    %c0_26 = arith.constant 0 : index
    %c0_27 = arith.constant 0 : index
    %39 = vector.load %arg7[%c0_26, %c0_27] : memref<128x128xbf16, #tpu.memory_space<vmem>>, vector<128x128xbf16>
    %cst_28 = arith.constant dense<0.000000e+00> : vector<8x128xf32>
    %40 = tpu.matmul %38, %39, %cst_28 {dimension_numbers = #tpu.dot_dimension_numbers<[1], [0], [0], [1], [0, 0, 1, 1], [], []>} : vector<8x128xbf16>, vector<128x128xbf16>, vector<8x128xf32> -> vector<8x128xf32>
    %c0_29 = arith.constant 0 : index
    %c0_30 = arith.constant 0 : index
    %41 = vector.load %arg8[%c0_29, %c0_30] : memref<1x128xf32, #tpu.memory_space<vmem>>, vector<1x128xf32>
    %42 = vector.broadcast %41 : vector<1x128xf32> to vector<8x128xf32>
    %43 = arith.addf %40, %42 : vector<8x128xf32>
    %cst_31 = arith.constant 0.000000e+00 : f32
    %44 = vector.broadcast %cst_31 : f32 to vector<8x128xf32>
    %45 = arith.maximumf %43, %44 : vector<8x128xf32>
    %46 = arith.truncf %45 : vector<8x128xf32> to vector<8x128xbf16>
    %c0_32 = arith.constant 0 : index
    %c0_33 = arith.constant 0 : index
    %47 = vector.load %arg9[%c0_32, %c0_33] : memref<128x128xbf16, #tpu.memory_space<vmem>>, vector<128x128xbf16>
    %cst_34 = arith.constant dense<0.000000e+00> : vector<8x128xf32>
    %48 = tpu.matmul %46, %47, %cst_34 {dimension_numbers = #tpu.dot_dimension_numbers<[1], [0], [0], [1], [0, 0, 1, 1], [], []>} : vector<8x128xbf16>, vector<128x128xbf16>, vector<8x128xf32> -> vector<8x128xf32>
    %c0_35 = arith.constant 0 : index
    %c0_36 = arith.constant 0 : index
    %49 = vector.load %arg10[%c0_35, %c0_36] : memref<1x128xf32, #tpu.memory_space<vmem>>, vector<1x128xf32>
    %50 = vector.broadcast %49 : vector<1x128xf32> to vector<8x128xf32>
    %51 = arith.addf %48, %50 : vector<8x128xf32>
    %c0_37 = arith.constant 0 : index
    %c0_38 = arith.constant 0 : index
    %52 = vector.load %arg11[%c0_37, %c0_38] : memref<8x128xf32, #tpu.memory_space<vmem>>, vector<8x128xf32>
    tpu.vector_store %arg11[%c0_37, %c0_38], %51 {strides = array<i32>} : memref<8x128xf32, #tpu.memory_space<vmem>>, vector<8x128xf32>,
    return
  }
  func.func @transform_0(%arg0: i32) -> (i32, i32, i32) {
    %c0_i32 = arith.constant 0 : i32
    %c0_i32_0 = arith.constant 0 : i32
    %c0_i32_1 = arith.constant 0 : i32
    return %arg0, %c0_i32, %c0_i32_0 : i32, i32, i32
  }
  func.func @transform_1(%arg0: i32) -> (i32, i32) {
    %c0_i32 = arith.constant 0 : i32
    %c0_i32_0 = arith.constant 0 : i32
    %c0_i32_1 = arith.constant 0 : i32
    return %c0_i32, %c0_i32_0 : i32, i32
  }
  func.func @transform_2(%arg0: i32) -> (i32, i32) {
    %c0_i32 = arith.constant 0 : i32
    %c0_i32_0 = arith.constant 0 : i32
    %c0_i32_1 = arith.constant 0 : i32
    return %c0_i32, %c0_i32_0 : i32, i32
  }
  func.func @transform_3(%arg0: i32) -> (i32, i32) {
    %c0_i32 = arith.constant 0 : i32
    %c0_i32_0 = arith.constant 0 : i32
    %c0_i32_1 = arith.constant 0 : i32
    return %c0_i32, %c0_i32_0 : i32, i32
  }
  func.func @transform_4(%arg0: i32) -> (i32, i32, i32) {
    %c0_i32 = arith.constant 0 : i32
    %c0_i32_0 = arith.constant 0 : i32
    %c0_i32_1 = arith.constant 0 : i32
    %c0_i32_2 = arith.constant 0 : i32
    return %c0_i32, %c0_i32_0, %c0_i32_1 : i32, i32, i32
  }
  func.func @transform_5(%arg0: i32) -> (i32, i32) {
    %c0_i32 = arith.constant 0 : i32
    %c0_i32_0 = arith.constant 0 : i32
    %c0_i32_1 = arith.constant 0 : i32
    return %c0_i32, %c0_i32_0 : i32, i32
  }
  func.func @transform_6(%arg0: i32) -> (i32, i32) {
    %c0_i32 = arith.constant 0 : i32
    %c0_i32_0 = arith.constant 0 : i32
    %c0_i32_1 = arith.constant 0 : i32
    return %c0_i32, %c0_i32_0 : i32, i32
  }
  func.func @transform_7(%arg0: i32) -> (i32, i32) {
    %c0_i32 = arith.constant 0 : i32
    %c0_i32_0 = arith.constant 0 : i32
    %c0_i32_1 = arith.constant 0 : i32
    return %c0_i32, %c0_i32_0 : i32, i32
  }
  func.func @transform_8(%arg0: i32) -> (i32, i32) {
    %c0_i32 = arith.constant 0 : i32
    %c0_i32_0 = arith.constant 0 : i32
    %c0_i32_1 = arith.constant 0 : i32
    return %c0_i32, %c0_i32_0 : i32, i32
  }
  func.func @transform_9(%arg0: i32) -> (i32, i32) {
    %c0_i32 = arith.constant 0 : i32
    %c0_i32_0 = arith.constant 0 : i32
    %c0_i32_1 = arith.constant 0 : i32
    return %c0_i32, %c0_i32_0 : i32, i32
  }
  func.func @transform_10(%arg0: i32) -> (i32, i32) {
    %c0_i32 = arith.constant 0 : i32
    %c0_i32_0 = arith.constant 0 : i32
    return %arg0, %c0_i32 : i32, i32
  }
}

</mosaic_0001>

<llo_original>
// kernel: _lambda_.1
$region0: #{_lambda_.1}
  #allocation0 [shape = 'u32[]', space=smem, size = 0x4, offset = 0x4, fixed_abs, tag = 'smem constant byte address 0x4 - core index']
  #allocation1 [shape = 'u32[144,128]{1,0:T(1,128)}', space=vmem, size = 0x12000, scoped, tag = 'internal scratch']
  %s0 = inlined_call_operand.vmem [shape: bf16[8,16,720], index: 0, kind: input, shape index: {}]
  %s1 = inlined_call_operand.vmem [shape: bf16[720,480], index: 1, kind: input, shape index: {}]
  %s2 = inlined_call_operand.vmem [shape: f32[1,480], index: 2, kind: input, shape index: {}]
  %s3 = inlined_call_operand.vmem [shape: bf16[480,128], index: 3, kind: input, shape index: {}]
  %s4 = inlined_call_operand.vmem [shape: bf16[3,128,128], index: 4, kind: input, shape index: {}]
  %s5 = inlined_call_operand.vmem [shape: f32[1,128], index: 5, kind: input, shape index: {}]
  %s6 = inlined_call_operand.vmem [shape: bf16[128,128], index: 6, kind: input, shape index: {}]
  %s7 = inlined_call_operand.vmem [shape: f32[1,128], index: 7, kind: input, shape index: {}]
  %s8 = inlined_call_operand.vmem [shape: bf16[128,128], index: 8, kind: input, shape index: {}]
  %s9 = inlined_call_operand.vmem [shape: f32[1,128], index: 9, kind: input, shape index: {}]
  %s10 = inlined_call_operand.vmem [shape: f32[8,128], index: 10, kind: output, shape index: {}]
  %s11 = sld [smem:[#allocation0]]
  $region50: #{_lambda_.1} parent=0
    _
  %s13 = ssub.s32 1, %s11
  %s14 = scalar_select 0, %s13, %s11
  // Predicated region
  $region2: #{_lambda_.1} parent=0 // pred_check
    _
  $region3: #{_lambda_.1} parent=0 // pred_check_branch
    %16 = sbr.rel (0) target = $region5
  $region4: #{_lambda_.1} parent=0 // pred_region
    _
  $region5: #{_lambda_.1} parent=0 // pred_fallthru
    _
  // Predicated region
  $region6: #{_lambda_.1} parent=0 // pred_check
    _
  $region7: #{_lambda_.1} parent=0 // pred_check_branch
    %18 = sbr.rel (0) target = $region9
  $region8: #{_lambda_.1} parent=0 // pred_region
    _
  $region9: #{_lambda_.1} parent=0 // pred_fallthru
    _
  // Predicated region
  $region10: #{_lambda_.1} parent=0 // pred_check
    _
  $region11: #{_lambda_.1} parent=0 // pred_check_branch
    %20 = sbr.rel (0) target = $region13
  $region12: #{_lambda_.1} parent=0 // pred_region
    _
  $region13: #{_lambda_.1} parent=0 // pred_fallthru
    _
  // Predicated region
  $region14: #{_lambda_.1} parent=0 // pred_check
    _
  $region15: #{_lambda_.1} parent=0 // pred_check_branch
    %22 = sbr.rel (0) target = $region17
  $region16: #{_lambda_.1} parent=0 // pred_region
    _
  $region17: #{_lambda_.1} parent=0 // pred_fallthru
    _
  // Predicated region
  $region18: #{_lambda_.1} parent=0 // pred_check
    _
  $region19: #{_lambda_.1} parent=0 // pred_check_branch
    %24 = sbr.rel (0) target = $region21
  $region20: #{_lambda_.1} parent=0 // pred_region
    _
  $region21: #{_lambda_.1} parent=0 // pred_fallthru
    _
  // Predicated region
  $region22: #{_lambda_.1} parent=0 // pred_check
    _
  $region23: #{_lambda_.1} parent=0 // pred_check_branch
    %26 = sbr.rel (0) target = $region25
  $region24: #{_lambda_.1} parent=0 // pred_region
    _
  $region25: #{_lambda_.1} parent=0 // pred_fallthru
    _
  // Predicated region
  $region26: #{_lambda_.1} parent=0 // pred_check
    _
  $region27: #{_lambda_.1} parent=0 // pred_check_branch
    %28 = sbr.rel (0) target = $region29
  $region28: #{_lambda_.1} parent=0 // pred_region
    _
  $region29: #{_lambda_.1} parent=0 // pred_fallthru
    _
  // Predicated region
  $region30: #{_lambda_.1} parent=0 // pred_check
    _
  $region31: #{_lambda_.1} parent=0 // pred_check_branch
    %30 = sbr.rel (0) target = $region33
  $region32: #{_lambda_.1} parent=0 // pred_region
    _
  $region33: #{_lambda_.1} parent=0 // pred_fallthru
    _
  // Predicated region
  $region34: #{_lambda_.1} parent=0 // pred_check
    _
  $region35: #{_lambda_.1} parent=0 // pred_check_branch
    %32 = sbr.rel (0) target = $region37
  $region36: #{_lambda_.1} parent=0 // pred_region
    _
  $region37: #{_lambda_.1} parent=0 // pred_fallthru
    _
  // Predicated region
  $region38: #{_lambda_.1} parent=0 // pred_check
    _
  $region39: #{_lambda_.1} parent=0 // pred_check_branch
    %34 = sbr.rel (0) target = $region41
  $region40: #{_lambda_.1} parent=0 // pred_region
    _
  $region41: #{_lambda_.1} parent=0 // pred_fallthru
    _
  %v36 = vld [vmem:[%s0] sm:$0xff]
  %v37 = vld [vmem:[%s0 + $0x8] sm:$0xff]
  %v38 = vld [vmem:[%s0 + $0x10] sm:$0xff]
  %v39 = vld [vmem:[%s0 + $0x18] sm:$0xff]
  %v40 = vld [vmem:[%s0 + $0x20] sm:$0xff]
  %v41 = vld [vmem:[%s0 + $0x28] sm:$0xff]
  %v42 = vld [vmem:[%s0 + $0x30] sm:$0xff]
  %v43 = vld [vmem:[%s0 + $0x38] sm:$0xff]
  %v44 = vld [vmem:[%s0 + $0x40] sm:$0xff]
  %v45 = vld [vmem:[%s0 + $0x48] sm:$0xff]
  %v46 = vld [vmem:[%s0 + $0x50] sm:$0xff]
  %v47 = vld [vmem:[%s0 + $0x58] sm:$0xff]
  %v48 = vld [vmem:[%s0 + $0x60] sm:$0xff]
  %v49 = vld [vmem:[%s0 + $0x68] sm:$0xff]
  %v50 = vld [vmem:[%s0 + $0x70] sm:$0xff]
  %v51 = vld [vmem:[%s0 + $0x78] sm:$0xff]
  %v52 = vld [vmem:[%s0 + $0x80] sm:$0xff]
  %v53 = vld [vmem:[%s0 + $0x88] sm:$0xff]
  %v54 = vld [vmem:[%s0 + $0x90] sm:$0xff]
  %v55 = vld [vmem:[%s0 + $0x98] sm:$0xff]
  %v56 = vld [vmem:[%s0 + $0xa0] sm:$0xff]
  %v57 = vld [vmem:[%s0 + $0xa8] sm:$0xff]
  %v58 = vld [vmem:[%s0 + $0xb0] sm:$0xff]
  %v59 = vld [vmem:[%s0 + $0xb8] sm:$0xff]
  %v60 = vld [vmem:[%s0 + $0xc0] sm:$0xff]
  %v61 = vld [vmem:[%s0 + $0xc8] sm:$0xff]
  %v62 = vld [vmem:[%s0 + $0xd0] sm:$0xff]
  %v63 = vld [vmem:[%s0 + $0xd8] sm:$0xff]
  %v64 = vld [vmem:[%s0 + $0xe0] sm:$0xff]
  %v65 = vld [vmem:[%s0 + $0xe8] sm:$0xff]
  %v66 = vld [vmem:[%s0 + $0xf0] sm:$0xff]
  %v67 = vld [vmem:[%s0 + $0xf8] sm:$0xff]
  %v68 = vld [vmem:[%s0 + $0x100] sm:$0xff]
  %v69 = vld [vmem:[%s0 + $0x108] sm:$0xff]
  %v70 = vld [vmem:[%s0 + $0x110] sm:$0xff]
  %v71 = vld [vmem:[%s0 + $0x118] sm:$0xff]
  %v72 = vld [vmem:[%s0 + $0x120] sm:$0xff]
  %v73 = vld [vmem:[%s0 + $0x128] sm:$0xff]
  %v74 = vld [vmem:[%s0 + $0x130] sm:$0xff]
  %v75 = vld [vmem:[%s0 + $0x138] sm:$0xff]
  %v76 = vld [vmem:[%s0 + $0x140] sm:$0xff]
  %v77 = vld [vmem:[%s0 + $0x148] sm:$0xff]
  %v78 = vld [vmem:[%s0 + $0x150] sm:$0xff]
  %v79 = vld [vmem:[%s0 + $0x158] sm:$0xff]
  %v80 = vld [vmem:[%s0 + $0x160] sm:$0xff]
  %v81 = vld [vmem:[%s0 + $0x168] sm:$0xff]
  %v82 = vld [vmem:[%s0 + $0x170] sm:$0xff]
  %v83 = vld [vmem:[%s0 + $0x178] sm:$0xff]
  %v84 = vld [vmem:[%s1] sm:$0xff]
  %v85 = vld [vmem:[%s1 + $0x8] sm:$0xff]
  %v86 = vld [vmem:[%s1 + $0x10] sm:$0xff]
  %v87 = vld [vmem:[%s1 + $0x18] sm:$0xff]
  %v88 = vld [vmem:[%s1 + $0x20] sm:$0xff]
  %v89 = vld [vmem:[%s1 + $0x28] sm:$0xff]
  %v90 = vld [vmem:[%s1 + $0x30] sm:$0xff]
  %v91 = vld [vmem:[%s1 + $0x38] sm:$0xff]
  %v92 = vld [vmem:[%s1 + $0x40] sm:$0xff]
  %v93 = vld [vmem:[%s1 + $0x48] sm:$0xff]
  %v94 = vld [vmem:[%s1 + $0x50] sm:$0xff]
  %v95 = vld [vmem:[%s1 + $0x58] sm:$0xff]
  %v96 = vld [vmem:[%s1 + $0x60] sm:$0xff]
  %v97 = vld [vmem:[%s1 + $0x68] sm:$0xff]
  %v98 = vld [vmem:[%s1 + $0x70] sm:$0xff]
  %v99 = vld [vmem:[%s1 + $0x78] sm:$0xff]
  %v100 = vld [vmem:[%s1 + $0x80] sm:$0xff]
  %v101 = vld [vmem:[%s1 + $0x88] sm:$0xff]
  %v102 = vld [vmem:[%s1 + $0x90] sm:$0xff]
  %v103 = vld [vmem:[%s1 + $0x98] sm:$0xff]
  %v104 = vld [vmem:[%s1 + $0xa0] sm:$0xff]
  %v105 = vld [vmem:[%s1 + $0xa8] sm:$0xff]
  %v106 = vld [vmem:[%s1 + $0xb0] sm:$0xff]
  %v107 = vld [vmem:[%s1 + $0xb8] sm:$0xff]
  %v108 = vld [vmem:[%s1 + $0xc0] sm:$0xff]
  %v109 = vld [vmem:[%s1 + $0xc8] sm:$0xff]
  %v110 = vld [vmem:[%s1 + $0xd0] sm:$0xff]
  %v111 = vld [vmem:[%s1 + $0xd8] sm:$0xff]
  %v112 = vld [vmem:[%s1 + $0xe0] sm:$0xff]
  %v113 = vld [vmem:[%s1 + $0xe8] sm:$0xff]
  %v114 = vld [vmem:[%s1 + $0xf0] sm:$0xff]
  %v115 = vld [vmem:[%s1 + $0xf8] sm:$0xff]
  %v116 = vld [vmem:[%s1 + $0x100] sm:$0xff]
  %v117 = vld [vmem:[%s1 + $0x108] sm:$0xff]
  %v118 = vld [vmem:[%s1 + $0x110] sm:$0xff]
  %v119 = vld [vmem:[%s1 + $0x118] sm:$0xff]
  %v120 = vld [vmem:[%s1 + $0x120] sm:$0xff]
  %v121 = vld [vmem:[%s1 + $0x128] sm:$0xff]
  %v122 = vld [vmem:[%s1 + $0x130] sm:$0xff]
  %v123 = vld [vmem:[%s1 + $0x138] sm:$0xff]
  %v124 = vld [vmem:[%s1 + $0x140] sm:$0xff]
  %v125 = vld [vmem:[%s1 + $0x148] sm:$0xff]
  %v126 = vld [vmem:[%s1 + $0x150] sm:$0xff]
  %v127 = vld [vmem:[%s1 + $0x158] sm:$0xff]
  %v128 = vld [vmem:[%s1 + $0x160] sm:$0xff]
  %v129 = vld [vmem:[%s1 + $0x168] sm:$0xff]
  %v130 = vld [vmem:[%s1 + $0x170] sm:$0xff]
  %v131 = vld [vmem:[%s1 + $0x178] sm:$0xff]
  %v132 = vld [vmem:[%s1 + $0x180] sm:$0xff]
  %v133 = vld [vmem:[%s1 + $0x188] sm:$0xff]
  %v134 = vld [vmem:[%s1 + $0x190] sm:$0xff]
  %v135 = vld [vmem:[%s1 + $0x198] sm:$0xff]
  %v136 = vld [vmem:[%s1 + $0x1a0] sm:$0xff]
  %v137 = vld [vmem:[%s1 + $0x1a8] sm:$0xff]
  %v138 = vld [vmem:[%s1 + $0x1b0] sm:$0xff]
  %v139 = vld [vmem:[%s1 + $0x1b8] sm:$0xff]
  %v140 = vld [vmem:[%s1 + $0x1c0] sm:$0xff]
  %v141 = vld [vmem:[%s1 + $0x1c8] sm:$0xff]
  %v142 = vld [vmem:[%s1 + $0x1d0] sm:$0xff]
  %v143 = vld [vmem:[%s1 + $0x1d8] sm:$0xff]
  %v144 = vld [vmem:[%s1 + $0x1e0] sm:$0xff]
  %v145 = vld [vmem:[%s1 + $0x1e8] sm:$0xff]
  %v146 = vld [vmem:[%s1 + $0x1f0] sm:$0xff]
  %v147 = vld [vmem:[%s1 + $0x1f8] sm:$0xff]
  %v148 = vld [vmem:[%s1 + $0x200] sm:$0xff]
  %v149 = vld [vmem:[%s1 + $0x208] sm:$0xff]
  %v150 = vld [vmem:[%s1 + $0x210] sm:$0xff]
  %v151 = vld [vmem:[%s1 + $0x218] sm:$0xff]
  %v152 = vld [vmem:[%s1 + $0x220] sm:$0xff]
  %v153 = vld [vmem:[%s1 + $0x228] sm:$0xff]
  %v154 = vld [vmem:[%s1 + $0x230] sm:$0xff]
  %v155 = vld [vmem:[%s1 + $0x238] sm:$0xff]
  %v156 = vld [vmem:[%s1 + $0x240] sm:$0xff]
  %v157 = vld [vmem:[%s1 + $0x248] sm:$0xff]
  %v158 = vld [vmem:[%s1 + $0x250] sm:$0xff]
  %v159 = vld [vmem:[%s1 + $0x258] sm:$0xff]
  %v160 = vld [vmem:[%s1 + $0x260] sm:$0xff]
  %v161 = vld [vmem:[%s1 + $0x268] sm:$0xff]
  %v162 = vld [vmem:[%s1 + $0x270] sm:$0xff]
  %v163 = vld [vmem:[%s1 + $0x278] sm:$0xff]
  %v164 = vld [vmem:[%s1 + $0x280] sm:$0xff]
  %v165 = vld [vmem:[%s1 + $0x288] sm:$0xff]
  %v166 = vld [vmem:[%s1 + $0x290] sm:$0xff]
  %v167 = vld [vmem:[%s1 + $0x298] sm:$0xff]
  %v168 = vld [vmem:[%s1 + $0x2a0] sm:$0xff]
  %v169 = vld [vmem:[%s1 + $0x2a8] sm:$0xff]
  %v170 = vld [vmem:[%s1 + $0x2b0] sm:$0xff]
  %v171 = vld [vmem:[%s1 + $0x2b8] sm:$0xff]
  %v172 = vld [vmem:[%s1 + $0x2c0] sm:$0xff]
  %v173 = vld [vmem:[%s1 + $0x2c8] sm:$0xff]
  %v174 = vld [vmem:[%s1 + $0x2d0] sm:$0xff]
  %v175 = vld [vmem:[%s1 + $0x2d8] sm:$0xff]
  %v176 = vld [vmem:[%s1 + $0x2e0] sm:$0xff]
  %v177 = vld [vmem:[%s1 + $0x2e8] sm:$0xff]
  %v178 = vld [vmem:[%s1 + $0x2f0] sm:$0xff]
  %v179 = vld [vmem:[%s1 + $0x2f8] sm:$0xff]
  %v180 = vld [vmem:[%s1 + $0x300] sm:$0xff]
  %v181 = vld [vmem:[%s1 + $0x308] sm:$0xff]
  %v182 = vld [vmem:[%s1 + $0x310] sm:$0xff]
  %v183 = vld [vmem:[%s1 + $0x318] sm:$0xff]
  %v184 = vld [vmem:[%s1 + $0x320] sm:$0xff]
  %v185 = vld [vmem:[%s1 + $0x328] sm:$0xff]
  %v186 = vld [vmem:[%s1 + $0x330] sm:$0xff]
  %v187 = vld [vmem:[%s1 + $0x338] sm:$0xff]
  %v188 = vld [vmem:[%s1 + $0x340] sm:$0xff]
  %v189 = vld [vmem:[%s1 + $0x348] sm:$0xff]
  %v190 = vld [vmem:[%s1 + $0x350] sm:$0xff]
  %v191 = vld [vmem:[%s1 + $0x358] sm:$0xff]
  %v192 = vld [vmem:[%s1 + $0x360] sm:$0xff]
  %v193 = vld [vmem:[%s1 + $0x368] sm:$0xff]
  %v194 = vld [vmem:[%s1 + $0x370] sm:$0xff]
  %v195 = vld [vmem:[%s1 + $0x378] sm:$0xff]
  %v196 = vld [vmem:[%s1 + $0x380] sm:$0xff]
  %v197 = vld [vmem:[%s1 + $0x388] sm:$0xff]
  %v198 = vld [vmem:[%s1 + $0x390] sm:$0xff]
  %v199 = vld [vmem:[%s1 + $0x398] sm:$0xff]
  %v200 = vld [vmem:[%s1 + $0x3a0] sm:$0xff]
  %v201 = vld [vmem:[%s1 + $0x3a8] sm:$0xff]
  %v202 = vld [vmem:[%s1 + $0x3b0] sm:$0xff]
  %v203 = vld [vmem:[%s1 + $0x3b8] sm:$0xff]
  %v204 = vld [vmem:[%s1 + $0x3c0] sm:$0xff]
  %v205 = vld [vmem:[%s1 + $0x3c8] sm:$0xff]
  %v206 = vld [vmem:[%s1 + $0x3d0] sm:$0xff]
  %v207 = vld [vmem:[%s1 + $0x3d8] sm:$0xff]
  %v208 = vld [vmem:[%s1 + $0x3e0] sm:$0xff]
  %v209 = vld [vmem:[%s1 + $0x3e8] sm:$0xff]
  %v210 = vld [vmem:[%s1 + $0x3f0] sm:$0xff]
  %v211 = vld [vmem:[%s1 + $0x3f8] sm:$0xff]
  %v212 = vld [vmem:[%s1 + $0x400] sm:$0xff]
  %v213 = vld [vmem:[%s1 + $0x408] sm:$0xff]
  %v214 = vld [vmem:[%s1 + $0x410] sm:$0xff]
  %v215 = vld [vmem:[%s1 + $0x418] sm:$0xff]
  %v216 = vld [vmem:[%s1 + $0x420] sm:$0xff]
  %v217 = vld [vmem:[%s1 + $0x428] sm:$0xff]
  %v218 = vld [vmem:[%s1 + $0x430] sm:$0xff]
  %v219 = vld [vmem:[%s1 + $0x438] sm:$0xff]
  %v220 = vld [vmem:[%s1 + $0x440] sm:$0xff]
  %v221 = vld [vmem:[%s1 + $0x448] sm:$0xff]
  %v222 = vld [vmem:[%s1 + $0x450] sm:$0xff]
  %v223 = vld [vmem:[%s1 + $0x458] sm:$0xff]
  %v224 = vld [vmem:[%s1 + $0x460] sm:$0xff]
  %v225 = vld [vmem:[%s1 + $0x468] sm:$0xff]
  %v226 = vld [vmem:[%s1 + $0x470] sm:$0xff]
  %v227 = vld [vmem:[%s1 + $0x478] sm:$0xff]
  %v228 = vld [vmem:[%s1 + $0x480] sm:$0xff]
  %v229 = vld [vmem:[%s1 + $0x488] sm:$0xff]
  %v230 = vld [vmem:[%s1 + $0x490] sm:$0xff]
  %v231 = vld [vmem:[%s1 + $0x498] sm:$0xff]
  %v232 = vld [vmem:[%s1 + $0x4a0] sm:$0xff]
  %v233 = vld [vmem:[%s1 + $0x4a8] sm:$0xff]
  %v234 = vld [vmem:[%s1 + $0x4b0] sm:$0xff]
  %v235 = vld [vmem:[%s1 + $0x4b8] sm:$0xff]
  %v236 = vld [vmem:[%s1 + $0x4c0] sm:$0xff]
  %v237 = vld [vmem:[%s1 + $0x4c8] sm:$0xff]
  %v238 = vld [vmem:[%s1 + $0x4d0] sm:$0xff]
  %v239 = vld [vmem:[%s1 + $0x4d8] sm:$0xff]
  %v240 = vld [vmem:[%s1 + $0x4e0] sm:$0xff]
  %v241 = vld [vmem:[%s1 + $0x4e8] sm:$0xff]
  %v242 = vld [vmem:[%s1 + $0x4f0] sm:$0xff]
  %v243 = vld [vmem:[%s1 + $0x4f8] sm:$0xff]
  %v244 = vld [vmem:[%s1 + $0x500] sm:$0xff]
  %v245 = vld [vmem:[%s1 + $0x508] sm:$0xff]
  %v246 = vld [vmem:[%s1 + $0x510] sm:$0xff]
  %v247 = vld [vmem:[%s1 + $0x518] sm:$0xff]
  %v248 = vld [vmem:[%s1 + $0x520] sm:$0xff]
  %v249 = vld [vmem:[%s1 + $0x528] sm:$0xff]
  %v250 = vld [vmem:[%s1 + $0x530] sm:$0xff]
  %v251 = vld [vmem:[%s1 + $0x538] sm:$0xff]
  %v252 = vld [vmem:[%s1 + $0x540] sm:$0xff]
  %v253 = vld [vmem:[%s1 + $0x548] sm:$0xff]
  %v254 = vld [vmem:[%s1 + $0x550] sm:$0xff]
  %v255 = vld [vmem:[%s1 + $0x558] sm:$0xff]
  %v256 = vld [vmem:[%s1 + $0x560] sm:$0xff]
  %v257 = vld [vmem:[%s1 + $0x568] sm:$0xff]
  %v258 = vld [vmem:[%s1 + $0x570] sm:$0xff]
  %v259 = vld [vmem:[%s1 + $0x578] sm:$0xff]
  %v260 = vld [vmem:[%s1 + $0x580] sm:$0xff]
  %v261 = vld [vmem:[%s1 + $0x588] sm:$0xff]
  %v262 = vld [vmem:[%s1 + $0x590] sm:$0xff]
  %v263 = vld [vmem:[%s1 + $0x598] sm:$0xff]
  %v264 = vld [vmem:[%s2] sm:$0xf]
  %v266 = vlaneseq
  %v267 = vshrl.u32 %v266, 7
  %v268 = vsub.s32 0, %v267
  %v269 = vrot.slane %v264, %v268
  %v270 = vlaneseq
  %v271 = vshrl.u32 %v270, 7
  %v272 = vsub.s32 1, %v271
  %v273 = vrot.slane %v264, %v272
  %v274 = vlaneseq
  %v275 = vshrl.u32 %v274, 7
  %v276 = vsub.s32 2, %v275
  %v277 = vrot.slane %v264, %v276
  %v278 = vlaneseq
  %v279 = vshrl.u32 %v278, 7
  %v280 = vsub.s32 3, %v279
  %v281 = vrot.slane %v264, %v280
  %v334 = vunpack.c.l.b16 %v36
  %v335 = vunpack.c.h.b16 %v36
  %v336 = vunpack.c.l.b16 %v37
  %v337 = vunpack.c.h.b16 %v37
  %v338 = vunpack.c.l.b16 %v38
  %v339 = vunpack.c.h.b16 %v38
  %v340 = vunpack.c.l.b16 %v39
  %v341 = vunpack.c.h.b16 %v39
  %v342 = vunpack.c.l.b16 %v40
  %v343 = vunpack.c.h.b16 %v40
  %v344 = vunpack.c.l.b16 %v41
  %v345 = vunpack.c.h.b16 %v41
  %v346 = vunpack.c.l.b16 %v42
  %v347 = vunpack.c.h.b16 %v42
  %v348 = vunpack.c.l.b16 %v43
  %v349 = vunpack.c.h.b16 %v43
  %v350 = vunpack.c.l.b16 %v44
  %v351 = vunpack.c.h.b16 %v44
  %v352 = vunpack.c.l.b16 %v45
  %v353 = vunpack.c.h.b16 %v45
  %v354 = vunpack.c.l.b16 %v46
  %v355 = vunpack.c.h.b16 %v46
  %v356 = vunpack.c.l.b16 %v47
  %v357 = vunpack.c.h.b16 %v47
  %v358 = vunpack.c.l.b16 %v48
  %v359 = vunpack.c.h.b16 %v48
  %v360 = vunpack.c.l.b16 %v49
  %v361 = vunpack.c.h.b16 %v49
  %v362 = vunpack.c.l.b16 %v50
  %v363 = vunpack.c.h.b16 %v50
  %v364 = vunpack.c.l.b16 %v51
  %v365 = vunpack.c.h.b16 %v51
  %v366 = vunpack.c.l.b16 %v52
  %v367 = vunpack.c.h.b16 %v52
  %v368 = vunpack.c.l.b16 %v53
  %v369 = vunpack.c.h.b16 %v53
  %v370 = vunpack.c.l.b16 %v54
  %v371 = vunpack.c.h.b16 %v54
  %v372 = vunpack.c.l.b16 %v55
  %v373 = vunpack.c.h.b16 %v55
  %v374 = vunpack.c.l.b16 %v56
  %v375 = vunpack.c.h.b16 %v56
  %v376 = vunpack.c.l.b16 %v57
  %v377 = vunpack.c.h.b16 %v57
  %v378 = vunpack.c.l.b16 %v58
  %v379 = vunpack.c.h.b16 %v58
  %v380 = vunpack.c.l.b16 %v59
  %v381 = vunpack.c.h.b16 %v59
  %v382 = vunpack.c.l.b16 %v60
  %v383 = vunpack.c.h.b16 %v60
  %v384 = vunpack.c.l.b16 %v61
  %v385 = vunpack.c.h.b16 %v61
  %v386 = vunpack.c.l.b16 %v62
  %v387 = vunpack.c.h.b16 %v62
  %v388 = vunpack.c.l.b16 %v63
  %v389 = vunpack.c.h.b16 %v63
  %v390 = vunpack.c.l.b16 %v64
  %v391 = vunpack.c.h.b16 %v64
  %v392 = vunpack.c.l.b16 %v65
  %v393 = vunpack.c.h.b16 %v65
  %v394 = vunpack.c.l.b16 %v66
  %v395 = vunpack.c.h.b16 %v66
  %v396 = vunpack.c.l.b16 %v67
  %v397 = vunpack.c.h.b16 %v67
  %v398 = vunpack.c.l.b16 %v68
  %v399 = vunpack.c.h.b16 %v68
  %v400 = vunpack.c.l.b16 %v69
  %v401 = vunpack.c.h.b16 %v69
  %v402 = vunpack.c.l.b16 %v70
  %v403 = vunpack.c.h.b16 %v70
  %v404 = vunpack.c.l.b16 %v71
  %v405 = vunpack.c.h.b16 %v71
  %v406 = vunpack.c.l.b16 %v72
  %v407 = vunpack.c.h.b16 %v72
  %v408 = vunpack.c.l.b16 %v73
  %v409 = vunpack.c.h.b16 %v73
  %v410 = vunpack.c.l.b16 %v74
  %v411 = vunpack.c.h.b16 %v74
  %v412 = vunpack.c.l.b16 %v75
  %v413 = vunpack.c.h.b16 %v75
  %v414 = vunpack.c.l.b16 %v76
  %v415 = vunpack.c.h.b16 %v76
  %v416 = vunpack.c.l.b16 %v77
  %v417 = vunpack.c.h.b16 %v77
  %v418 = vunpack.c.l.b16 %v78
  %v419 = vunpack.c.h.b16 %v78
  %v420 = vunpack.c.l.b16 %v79
  %v421 = vunpack.c.h.b16 %v79
  %v422 = vunpack.c.l.b16 %v80
  %v423 = vunpack.c.h.b16 %v80
  %v424 = vunpack.c.l.b16 %v81
  %v425 = vunpack.c.h.b16 %v81
  %v426 = vunpack.c.l.b16 %v82
  %v427 = vunpack.c.h.b16 %v82
  %v428 = vunpack.c.l.b16 %v83
  %v429 = vunpack.c.h.b16 %v83
  %v430 = vpack.c.b16 %v340, %v334
  %v431 = vpack.c.b16 %v341, %v335
  %v432 = vpack.c.b16 %v342, %v336
  %v433 = vpack.c.b16 %v343, %v337
  %v434 = vpack.c.b16 %v344, %v338
  %v435 = vpack.c.b16 %v345, %v339
  %v436 = vpack.c.b16 %v352, %v346
  %v437 = vpack.c.b16 %v353, %v347
  %v438 = vpack.c.b16 %v354, %v348
  %v439 = vpack.c.b16 %v355, %v349
  %v440 = vpack.c.b16 %v356, %v350
  %v441 = vpack.c.b16 %v357, %v351
  %v442 = vpack.c.b16 %v364, %v358
  %v443 = vpack.c.b16 %v365, %v359
  %v444 = vpack.c.b16 %v366, %v360
  %v445 = vpack.c.b16 %v367, %v361
  %v446 = vpack.c.b16 %v368, %v362
  %v447 = vpack.c.b16 %v369, %v363
  %v448 = vpack.c.b16 %v376, %v370
  %v449 = vpack.c.b16 %v377, %v371
  %v450 = vpack.c.b16 %v378, %v372
  %v451 = vpack.c.b16 %v379, %v373
  %v452 = vpack.c.b16 %v380, %v374
  %v453 = vpack.c.b16 %v381, %v375
  %v454 = vpack.c.b16 %v388, %v382
  %v455 = vpack.c.b16 %v389, %v383
  %v456 = vpack.c.b16 %v390, %v384
  %v457 = vpack.c.b16 %v391, %v385
  %v458 = vpack.c.b16 %v392, %v386
  %v459 = vpack.c.b16 %v393, %v387
  %v460 = vpack.c.b16 %v400, %v394
  %v461 = vpack.c.b16 %v401, %v395
  %v462 = vpack.c.b16 %v402, %v396
  %v463 = vpack.c.b16 %v403, %v397
  %v464 = vpack.c.b16 %v404, %v398
  %v465 = vpack.c.b16 %v405, %v399
  %v466 = vpack.c.b16 %v412, %v406
  %v467 = vpack.c.b16 %v413, %v407
  %v468 = vpack.c.b16 %v414, %v408
  %v469 = vpack.c.b16 %v415, %v409
  %v470 = vpack.c.b16 %v416, %v410
  %v471 = vpack.c.b16 %v417, %v411
  %v472 = vpack.c.b16 %v424, %v418
  %v473 = vpack.c.b16 %v425, %v419
  %v474 = vpack.c.b16 %v426, %v420
  %v475 = vpack.c.b16 %v427, %v421
  %v476 = vpack.c.b16 %v428, %v422
  %v477 = vpack.c.b16 %v429, %v423
  %v698 = vunpack.c.l.b16 %v84
  %v699 = vunpack.c.h.b16 %v84
  %v700 = vunpack.c.l.b16 %v85
  %v701 = vunpack.c.h.b16 %v85
  %v702 = vunpack.c.l.b16 %v86
  %v703 = vunpack.c.h.b16 %v86
  %v704 = vunpack.c.l.b16 %v87
  %v705 = vunpack.c.h.b16 %v87
  %v706 = vunpack.c.l.b16 %v88
  %v707 = vunpack.c.h.b16 %v88
  %v708 = vunpack.c.l.b16 %v89
  %v709 = vunpack.c.h.b16 %v89
  %v710 = vunpack.c.l.b16 %v90
  %v711 = vunpack.c.h.b16 %v90
  %v712 = vunpack.c.l.b16 %v91
  %v713 = vunpack.c.h.b16 %v91
  %v714 = vunpack.c.l.b16 %v92
  %v715 = vunpack.c.h.b16 %v92
  %v716 = vunpack.c.l.b16 %v93
  %v717 = vunpack.c.h.b16 %v93
  %v718 = vunpack.c.l.b16 %v94
  %v719 = vunpack.c.h.b16 %v94
  %v720 = vunpack.c.l.b16 %v95
  %v721 = vunpack.c.h.b16 %v95
  %v722 = vunpack.c.l.b16 %v96
  %v723 = vunpack.c.h.b16 %v96
  %v724 = vunpack.c.l.b16 %v97
  %v725 = vunpack.c.h.b16 %v97
  %v726 = vunpack.c.l.b16 %v98
  %v727 = vunpack.c.h.b16 %v98
  %v728 = vunpack.c.l.b16 %v99
  %v729 = vunpack.c.h.b16 %v99
  %v730 = vunpack.c.l.b16 %v100
  %v731 = vunpack.c.h.b16 %v100
  %v732 = vunpack.c.l.b16 %v101
  %v733 = vunpack.c.h.b16 %v101
  %v734 = vunpack.c.l.b16 %v102
  %v735 = vunpack.c.h.b16 %v102
  %v736 = vunpack.c.l.b16 %v103
  %v737 = vunpack.c.h.b16 %v103
  %v738 = vunpack.c.l.b16 %v104
  %v739 = vunpack.c.h.b16 %v104
  %v740 = vunpack.c.l.b16 %v105
  %v741 = vunpack.c.h.b16 %v105
  %v742 = vunpack.c.l.b16 %v106
  %v743 = vunpack.c.h.b16 %v106
  %v744 = vunpack.c.l.b16 %v107
  %v745 = vunpack.c.h.b16 %v107
  %v746 = vunpack.c.l.b16 %v108
  %v747 = vunpack.c.h.b16 %v108
  %v748 = vunpack.c.l.b16 %v109
  %v749 = vunpack.c.h.b16 %v109
  %v750 = vunpack.c.l.b16 %v110
  %v751 = vunpack.c.h.b16 %v110
  %v752 = vunpack.c.l.b16 %v111
  %v753 = vunpack.c.h.b16 %v111
  %v754 = vunpack.c.l.b16 %v112
  %v755 = vunpack.c.h.b16 %v112
  %v756 = vunpack.c.l.b16 %v113
  %v757 = vunpack.c.h.b16 %v113
  %v758 = vunpack.c.l.b16 %v114
  %v759 = vunpack.c.h.b16 %v114
  %v760 = vunpack.c.l.b16 %v115
  %v761 = vunpack.c.h.b16 %v115
  %v762 = vunpack.c.l.b16 %v116
  %v763 = vunpack.c.h.b16 %v116
  %v764 = vunpack.c.l.b16 %v117
  %v765 = vunpack.c.h.b16 %v117
  %v766 = vunpack.c.l.b16 %v118
  %v767 = vunpack.c.h.b16 %v118
  %v768 = vunpack.c.l.b16 %v119
  %v769 = vunpack.c.h.b16 %v119
  %v770 = vunpack.c.l.b16 %v120
  %v771 = vunpack.c.h.b16 %v120
  %v772 = vunpack.c.l.b16 %v121
  %v773 = vunpack.c.h.b16 %v121
  %v774 = vunpack.c.l.b16 %v122
  %v775 = vunpack.c.h.b16 %v122
  %v776 = vunpack.c.l.b16 %v123
  %v777 = vunpack.c.h.b16 %v123
  %v778 = vunpack.c.l.b16 %v124
  %v779 = vunpack.c.h.b16 %v124
  %v780 = vunpack.c.l.b16 %v125
  %v781 = vunpack.c.h.b16 %v125
  %v782 = vunpack.c.l.b16 %v126
  %v783 = vunpack.c.h.b16 %v126
  %v784 = vunpack.c.l.b16 %v127
  %v785 = vunpack.c.h.b16 %v127
  %v786 = vunpack.c.l.b16 %v128
  %v787 = vunpack.c.h.b16 %v128
  %v788 = vunpack.c.l.b16 %v129
  %v789 = vunpack.c.h.b16 %v129
  %v790 = vunpack.c.l.b16 %v130
  %v791 = vunpack.c.h.b16 %v130
  %v792 = vunpack.c.l.b16 %v131
  %v793 = vunpack.c.h.b16 %v131
  %v794 = vunpack.c.l.b16 %v132
  %v795 = vunpack.c.h.b16 %v132
  %v796 = vunpack.c.l.b16 %v133
  %v797 = vunpack.c.h.b16 %v133
  %v798 = vunpack.c.l.b16 %v134
  %v799 = vunpack.c.h.b16 %v134
  %v800 = vunpack.c.l.b16 %v135
  %v801 = vunpack.c.h.b16 %v135
  %v802 = vunpack.c.l.b16 %v136
  %v803 = vunpack.c.h.b16 %v136
  %v804 = vunpack.c.l.b16 %v137
  %v805 = vunpack.c.h.b16 %v137
  %v806 = vunpack.c.l.b16 %v138
  %v807 = vunpack.c.h.b16 %v138
  %v808 = vunpack.c.l.b16 %v139
  %v809 = vunpack.c.h.b16 %v139
  %v810 = vunpack.c.l.b16 %v140
  %v811 = vunpack.c.h.b16 %v140
  %v812 = vunpack.c.l.b16 %v141
  %v813 = vunpack.c.h.b16 %v141
  %v814 = vunpack.c.l.b16 %v142
  %v815 = vunpack.c.h.b16 %v142
  %v816 = vunpack.c.l.b16 %v143
  %v817 = vunpack.c.h.b16 %v143
  %v818 = vunpack.c.l.b16 %v144
  %v819 = vunpack.c.h.b16 %v144
  %v820 = vunpack.c.l.b16 %v145
  %v821 = vunpack.c.h.b16 %v145
  %v822 = vunpack.c.l.b16 %v146
  %v823 = vunpack.c.h.b16 %v146
  %v824 = vunpack.c.l.b16 %v147
  %v825 = vunpack.c.h.b16 %v147
  %v826 = vunpack.c.l.b16 %v148
  %v827 = vunpack.c.h.b16 %v148
  %v828 = vunpack.c.l.b16 %v149
  %v829 = vunpack.c.h.b16 %v149
  %v830 = vunpack.c.l.b16 %v150
  %v831 = vunpack.c.h.b16 %v150
  %v832 = vunpack.c.l.b16 %v151
  %v833 = vunpack.c.h.b16 %v151
  %v834 = vunpack.c.l.b16 %v152
  %v835 = vunpack.c.h.b16 %v152
  %v836 = vunpack.c.l.b16 %v153
  %v837 = vunpack.c.h.b16 %v153
  %v838 = vunpack.c.l.b16 %v154
  %v839 = vunpack.c.h.b16 %v154
  %v840 = vunpack.c.l.b16 %v155
  %v841 = vunpack.c.h.b16 %v155
  %v842 = vunpack.c.l.b16 %v156
  %v843 = vunpack.c.h.b16 %v156
  %v844 = vunpack.c.l.b16 %v157
  %v845 = vunpack.c.h.b16 %v157
  %v846 = vunpack.c.l.b16 %v158
  %v847 = vunpack.c.h.b16 %v158
  %v848 = vunpack.c.l.b16 %v159
  %v849 = vunpack.c.h.b16 %v159
  %v850 = vunpack.c.l.b16 %v160
  %v851 = vunpack.c.h.b16 %v160
  %v852 = vunpack.c.l.b16 %v161
  %v853 = vunpack.c.h.b16 %v161
  %v854 = vunpack.c.l.b16 %v162
  %v855 = vunpack.c.h.b16 %v162
  %v856 = vunpack.c.l.b16 %v163
  %v857 = vunpack.c.h.b16 %v163
  %v858 = vunpack.c.l.b16 %v164
  %v859 = vunpack.c.h.b16 %v164
  %v860 = vunpack.c.l.b16 %v165
  %v861 = vunpack.c.h.b16 %v165
  %v862 = vunpack.c.l.b16 %v166
  %v863 = vunpack.c.h.b16 %v166
  %v864 = vunpack.c.l.b16 %v167
  %v865 = vunpack.c.h.b16 %v167
  %v866 = vunpack.c.l.b16 %v168
  %v867 = vunpack.c.h.b16 %v168
  %v868 = vunpack.c.l.b16 %v169
  %v869 = vunpack.c.h.b16 %v169
  %v870 = vunpack.c.l.b16 %v170
  %v871 = vunpack.c.h.b16 %v170
  %v872 = vunpack.c.l.b16 %v171
  %v873 = vunpack.c.h.b16 %v171
  %v874 = vunpack.c.l.b16 %v172
  %v875 = vunpack.c.h.b16 %v172
  %v876 = vunpack.c.l.b16 %v173
  %v877 = vunpack.c.h.b16 %v173
  %v878 = vunpack.c.l.b16 %v174
  %v879 = vunpack.c.h.b16 %v174
  %v880 = vunpack.c.l.b16 %v175
  %v881 = vunpack.c.h.b16 %v175
  %v882 = vunpack.c.l.b16 %v176
  %v883 = vunpack.c.h.b16 %v176
  %v884 = vunpack.c.l.b16 %v177
  %v885 = vunpack.c.h.b16 %v177
  %v886 = vunpack.c.l.b16 %v178
  %v887 = vunpack.c.h.b16 %v178
  %v888 = vunpack.c.l.b16 %v179
  %v889 = vunpack.c.h.b16 %v179
  %v890 = vunpack.c.l.b16 %v180
  %v891 = vunpack.c.h.b16 %v180
  %v892 = vunpack.c.l.b16 %v181
  %v893 = vunpack.c.h.b16 %v181
  %v894 = vunpack.c.l.b16 %v182
  %v895 = vunpack.c.h.b16 %v182
  %v896 = vunpack.c.l.b16 %v183
  %v897 = vunpack.c.h.b16 %v183
  %v898 = vunpack.c.l.b16 %v184
  %v899 = vunpack.c.h.b16 %v184
  %v900 = vunpack.c.l.b16 %v185
  %v901 = vunpack.c.h.b16 %v185
  %v902 = vunpack.c.l.b16 %v186
  %v903 = vunpack.c.h.b16 %v186
  %v904 = vunpack.c.l.b16 %v187
  %v905 = vunpack.c.h.b16 %v187
  %v906 = vunpack.c.l.b16 %v188
  %v907 = vunpack.c.h.b16 %v188
  %v908 = vunpack.c.l.b16 %v189
  %v909 = vunpack.c.h.b16 %v189
  %v910 = vunpack.c.l.b16 %v190
  %v911 = vunpack.c.h.b16 %v190
  %v912 = vunpack.c.l.b16 %v191
  %v913 = vunpack.c.h.b16 %v191
  %v914 = vunpack.c.l.b16 %v192
  %v915 = vunpack.c.h.b16 %v192
  %v916 = vunpack.c.l.b16 %v193
  %v917 = vunpack.c.h.b16 %v193
  %v918 = vunpack.c.l.b16 %v194
  %v919 = vunpack.c.h.b16 %v194
  %v920 = vunpack.c.l.b16 %v195
  %v921 = vunpack.c.h.b16 %v195
  %v922 = vunpack.c.l.b16 %v196
  %v923 = vunpack.c.h.b16 %v196
  %v924 = vunpack.c.l.b16 %v197
  %v925 = vunpack.c.h.b16 %v197
  %v926 = vunpack.c.l.b16 %v198
  %v927 = vunpack.c.h.b16 %v198
  %v928 = vunpack.c.l.b16 %v199
  %v929 = vunpack.c.h.b16 %v199
  %v930 = vunpack.c.l.b16 %v200
  %v931 = vunpack.c.h.b16 %v200
  %v932 = vunpack.c.l.b16 %v201
  %v933 = vunpack.c.h.b16 %v201
  %v934 = vunpack.c.l.b16 %v202
  %v935 = vunpack.c.h.b16 %v202
  %v936 = vunpack.c.l.b16 %v203
  %v937 = vunpack.c.h.b16 %v203
  %v938 = vunpack.c.l.b16 %v204
  %v939 = vunpack.c.h.b16 %v204
  %v940 = vunpack.c.l.b16 %v205
  %v941 = vunpack.c.h.b16 %v205
  %v942 = vunpack.c.l.b16 %v206
  %v943 = vunpack.c.h.b16 %v206
  %v944 = vunpack.c.l.b16 %v207
  %v945 = vunpack.c.h.b16 %v207
  %v946 = vunpack.c.l.b16 %v208
  %v947 = vunpack.c.h.b16 %v208
  %v948 = vunpack.c.l.b16 %v209
  %v949 = vunpack.c.h.b16 %v209
  %v950 = vunpack.c.l.b16 %v210
  %v951 = vunpack.c.h.b16 %v210
  %v952 = vunpack.c.l.b16 %v211
  %v953 = vunpack.c.h.b16 %v211
  %v954 = vunpack.c.l.b16 %v212
  %v955 = vunpack.c.h.b16 %v212
  %v956 = vunpack.c.l.b16 %v213
  %v957 = vunpack.c.h.b16 %v213
  %v958 = vunpack.c.l.b16 %v214
  %v959 = vunpack.c.h.b16 %v214
  %v960 = vunpack.c.l.b16 %v215
  %v961 = vunpack.c.h.b16 %v215
  %v962 = vunpack.c.l.b16 %v216
  %v963 = vunpack.c.h.b16 %v216
  %v964 = vunpack.c.l.b16 %v217
  %v965 = vunpack.c.h.b16 %v217
  %v966 = vunpack.c.l.b16 %v218
  %v967 = vunpack.c.h.b16 %v218
  %v968 = vunpack.c.l.b16 %v219
  %v969 = vunpack.c.h.b16 %v219
  %v970 = vunpack.c.l.b16 %v220
  %v971 = vunpack.c.h.b16 %v220
  %v972 = vunpack.c.l.b16 %v221
  %v973 = vunpack.c.h.b16 %v221
  %v974 = vunpack.c.l.b16 %v222
  %v975 = vunpack.c.h.b16 %v222
  %v976 = vunpack.c.l.b16 %v223
  %v977 = vunpack.c.h.b16 %v223
  %v978 = vunpack.c.l.b16 %v224
  %v979 = vunpack.c.h.b16 %v224
  %v980 = vunpack.c.l.b16 %v225
  %v981 = vunpack.c.h.b16 %v225
  %v982 = vunpack.c.l.b16 %v226
  %v983 = vunpack.c.h.b16 %v226
  %v984 = vunpack.c.l.b16 %v227
  %v985 = vunpack.c.h.b16 %v227
  %v986 = vunpack.c.l.b16 %v228
  %v987 = vunpack.c.h.b16 %v228
  %v988 = vunpack.c.l.b16 %v229
  %v989 = vunpack.c.h.b16 %v229
  %v990 = vunpack.c.l.b16 %v230
  %v991 = vunpack.c.h.b16 %v230
  %v992 = vunpack.c.l.b16 %v231
  %v993 = vunpack.c.h.b16 %v231
  %v994 = vunpack.c.l.b16 %v232
  %v995 = vunpack.c.h.b16 %v232
  %v996 = vunpack.c.l.b16 %v233
  %v997 = vunpack.c.h.b16 %v233
  %v998 = vunpack.c.l.b16 %v234
  %v999 = vunpack.c.h.b16 %v234
  %v1000 = vunpack.c.l.b16 %v235
  %v1001 = vunpack.c.h.b16 %v235
  %v1002 = vunpack.c.l.b16 %v236
  %v1003 = vunpack.c.h.b16 %v236
  %v1004 = vunpack.c.l.b16 %v237
  %v1005 = vunpack.c.h.b16 %v237
  %v1006 = vunpack.c.l.b16 %v238
  %v1007 = vunpack.c.h.b16 %v238
  %v1008 = vunpack.c.l.b16 %v239
  %v1009 = vunpack.c.h.b16 %v239
  %v1010 = vunpack.c.l.b16 %v240
  %v1011 = vunpack.c.h.b16 %v240
  %v1012 = vunpack.c.l.b16 %v241
  %v1013 = vunpack.c.h.b16 %v241
  %v1014 = vunpack.c.l.b16 %v242
  %v1015 = vunpack.c.h.b16 %v242
  %v1016 = vunpack.c.l.b16 %v243
  %v1017 = vunpack.c.h.b16 %v243
  %v1018 = vunpack.c.l.b16 %v244
  %v1019 = vunpack.c.h.b16 %v244
  %v1020 = vunpack.c.l.b16 %v245
  %v1021 = vunpack.c.h.b16 %v245
  %v1022 = vunpack.c.l.b16 %v246
  %v1023 = vunpack.c.h.b16 %v246
  %v1024 = vunpack.c.l.b16 %v247
  %v1025 = vunpack.c.h.b16 %v247
  %v1026 = vunpack.c.l.b16 %v248
  %v1027 = vunpack.c.h.b16 %v248
  %v1028 = vunpack.c.l.b16 %v249
  %v1029 = vunpack.c.h.b16 %v249
  %v1030 = vunpack.c.l.b16 %v250
  %v1031 = vunpack.c.h.b16 %v250
  %v1032 = vunpack.c.l.b16 %v251
  %v1033 = vunpack.c.h.b16 %v251
  %v1034 = vunpack.c.l.b16 %v252
  %v1035 = vunpack.c.h.b16 %v252
  %v1036 = vunpack.c.l.b16 %v253
  %v1037 = vunpack.c.h.b16 %v253
  %v1038 = vunpack.c.l.b16 %v254
  %v1039 = vunpack.c.h.b16 %v254
  %v1040 = vunpack.c.l.b16 %v255
  %v1041 = vunpack.c.h.b16 %v255
  %v1042 = vunpack.c.l.b16 %v256
  %v1043 = vunpack.c.h.b16 %v256
  %v1044 = vunpack.c.l.b16 %v257
  %v1045 = vunpack.c.h.b16 %v257
  %v1046 = vunpack.c.l.b16 %v258
  %v1047 = vunpack.c.h.b16 %v258
  %v1048 = vunpack.c.l.b16 %v259
  %v1049 = vunpack.c.h.b16 %v259
  %v1050 = vunpack.c.l.b16 %v260
  %v1051 = vunpack.c.h.b16 %v260
  %v1052 = vunpack.c.l.b16 %v261
  %v1053 = vunpack.c.h.b16 %v261
  %v1054 = vunpack.c.l.b16 %v262
  %v1055 = vunpack.c.h.b16 %v262
  %v1056 = vunpack.c.l.b16 %v263
  %v1057 = vunpack.c.h.b16 %v263
  %v1058 = vpack.c.b16 %v702, %v698
  %v1059 = vpack.c.b16 %v703, %v699
  %v1060 = vpack.c.b16 %v704, %v700
  %v1061 = vpack.c.b16 %v705, %v701
  %v1062 = vpack.c.b16 %v710, %v706
  %v1063 = vpack.c.b16 %v711, %v707
  %v1064 = vpack.c.b16 %v712, %v708
  %v1065 = vpack.c.b16 %v713, %v709
  %v1066 = vpack.c.b16 %v718, %v714
  %v1067 = vpack.c.b16 %v719, %v715
  %v1068 = vpack.c.b16 %v720, %v716
  %v1069 = vpack.c.b16 %v721, %v717
  %v1070 = vpack.c.b16 %v726, %v722
  %v1071 = vpack.c.b16 %v727, %v723
  %v1072 = vpack.c.b16 %v728, %v724
  %v1073 = vpack.c.b16 %v729, %v725
  %v1074 = vpack.c.b16 %v734, %v730
  %v1075 = vpack.c.b16 %v735, %v731
  %v1076 = vpack.c.b16 %v736, %v732
  %v1077 = vpack.c.b16 %v737, %v733
  %v1078 = vpack.c.b16 %v742, %v738
  %v1079 = vpack.c.b16 %v743, %v739
  %v1080 = vpack.c.b16 %v744, %v740
  %v1081 = vpack.c.b16 %v745, %v741
  %v1082 = vpack.c.b16 %v750, %v746
  %v1083 = vpack.c.b16 %v751, %v747
  %v1084 = vpack.c.b16 %v752, %v748
  %v1085 = vpack.c.b16 %v753, %v749
  %v1086 = vpack.c.b16 %v758, %v754
  %v1087 = vpack.c.b16 %v759, %v755
  %v1088 = vpack.c.b16 %v760, %v756
  %v1089 = vpack.c.b16 %v761, %v757
  %v1090 = vpack.c.b16 %v766, %v762
  %v1091 = vpack.c.b16 %v767, %v763
  %v1092 = vpack.c.b16 %v768, %v764
  %v1093 = vpack.c.b16 %v769, %v765
  %v1094 = vpack.c.b16 %v774, %v770
  %v1095 = vpack.c.b16 %v775, %v771
  %v1096 = vpack.c.b16 %v776, %v772
  %v1097 = vpack.c.b16 %v777, %v773
  %v1098 = vpack.c.b16 %v782, %v778
  %v1099 = vpack.c.b16 %v783, %v779
  %v1100 = vpack.c.b16 %v784, %v780
  %v1101 = vpack.c.b16 %v785, %v781
  %v1102 = vpack.c.b16 %v790, %v786
  %v1103 = vpack.c.b16 %v791, %v787
  %v1104 = vpack.c.b16 %v792, %v788
  %v1105 = vpack.c.b16 %v793, %v789
  %v1106 = vpack.c.b16 %v798, %v794
  %v1107 = vpack.c.b16 %v799, %v795
  %v1108 = vpack.c.b16 %v800, %v796
  %v1109 = vpack.c.b16 %v801, %v797
  %v1110 = vpack.c.b16 %v806, %v802
  %v1111 = vpack.c.b16 %v807, %v803
  %v1112 = vpack.c.b16 %v808, %v804
  %v1113 = vpack.c.b16 %v809, %v805
  %v1114 = vpack.c.b16 %v814, %v810
  %v1115 = vpack.c.b16 %v815, %v811
  %v1116 = vpack.c.b16 %v816, %v812
  %v1117 = vpack.c.b16 %v817, %v813
  %v1118 = vpack.c.b16 %v822, %v818
  %v1119 = vpack.c.b16 %v823, %v819
  %v1120 = vpack.c.b16 %v824, %v820
  %v1121 = vpack.c.b16 %v825, %v821
  %v1122 = vpack.c.b16 %v830, %v826
  %v1123 = vpack.c.b16 %v831, %v827
  %v1124 = vpack.c.b16 %v832, %v828
  %v1125 = vpack.c.b16 %v833, %v829
  %v1126 = vpack.c.b16 %v838, %v834
  %v1127 = vpack.c.b16 %v839, %v835
  %v1128 = vpack.c.b16 %v840, %v836
  %v1129 = vpack.c.b16 %v841, %v837
  %v1130 = vpack.c.b16 %v846, %v842
  %v1131 = vpack.c.b16 %v847, %v843
  %v1132 = vpack.c.b16 %v848, %v844
  %v1133 = vpack.c.b16 %v849, %v845
  %v1134 = vpack.c.b16 %v854, %v850
  %v1135 = vpack.c.b16 %v855, %v851
  %v1136 = vpack.c.b16 %v856, %v852
  %v1137 = vpack.c.b16 %v857, %v853
  %v1138 = vpack.c.b16 %v862, %v858
  %v1139 = vpack.c.b16 %v863, %v859
  %v1140 = vpack.c.b16 %v864, %v860
  %v1141 = vpack.c.b16 %v865, %v861
  %v1142 = vpack.c.b16 %v870, %v866
  %v1143 = vpack.c.b16 %v871, %v867
  %v1144 = vpack.c.b16 %v872, %v868
  %v1145 = vpack.c.b16 %v873, %v869
  %v1146 = vpack.c.b16 %v878, %v874
  %v1147 = vpack.c.b16 %v879, %v875
  %v1148 = vpack.c.b16 %v880, %v876
  %v1149 = vpack.c.b16 %v881, %v877
  %v1150 = vpack.c.b16 %v886, %v882
  %v1151 = vpack.c.b16 %v887, %v883
  %v1152 = vpack.c.b16 %v888, %v884
  %v1153 = vpack.c.b16 %v889, %v885
  %v1154 = vpack.c.b16 %v894, %v890
  %v1155 = vpack.c.b16 %v895, %v891
  %v1156 = vpack.c.b16 %v896, %v892
  %v1157 = vpack.c.b16 %v897, %v893
  %v1158 = vpack.c.b16 %v902, %v898
  %v1159 = vpack.c.b16 %v903, %v899
  %v1160 = vpack.c.b16 %v904, %v900
  %v1161 = vpack.c.b16 %v905, %v901
  %v1162 = vpack.c.b16 %v910, %v906
  %v1163 = vpack.c.b16 %v911, %v907
  %v1164 = vpack.c.b16 %v912, %v908
  %v1165 = vpack.c.b16 %v913, %v909
  %v1166 = vpack.c.b16 %v918, %v914
  %v1167 = vpack.c.b16 %v919, %v915
  %v1168 = vpack.c.b16 %v920, %v916
  %v1169 = vpack.c.b16 %v921, %v917
  %v1170 = vpack.c.b16 %v926, %v922
  %v1171 = vpack.c.b16 %v927, %v923
  %v1172 = vpack.c.b16 %v928, %v924
  %v1173 = vpack.c.b16 %v929, %v925
  %v1174 = vpack.c.b16 %v934, %v930
  %v1175 = vpack.c.b16 %v935, %v931
  %v1176 = vpack.c.b16 %v936, %v932
  %v1177 = vpack.c.b16 %v937, %v933
  %v1178 = vpack.c.b16 %v942, %v938
  %v1179 = vpack.c.b16 %v943, %v939
  %v1180 = vpack.c.b16 %v944, %v940
  %v1181 = vpack.c.b16 %v945, %v941
  %v1182 = vpack.c.b16 %v950, %v946
  %v1183 = vpack.c.b16 %v951, %v947
  %v1184 = vpack.c.b16 %v952, %v948
  %v1185 = vpack.c.b16 %v953, %v949
  %v1186 = vpack.c.b16 %v958, %v954
  %v1187 = vpack.c.b16 %v959, %v955
  %v1188 = vpack.c.b16 %v960, %v956
  %v1189 = vpack.c.b16 %v961, %v957
  %v1190 = vpack.c.b16 %v966, %v962
  %v1191 = vpack.c.b16 %v967, %v963
  %v1192 = vpack.c.b16 %v968, %v964
  %v1193 = vpack.c.b16 %v969, %v965
  %v1194 = vpack.c.b16 %v974, %v970
  %v1195 = vpack.c.b16 %v975, %v971
  %v1196 = vpack.c.b16 %v976, %v972
  %v1197 = vpack.c.b16 %v977, %v973
  %v1198 = vpack.c.b16 %v982, %v978
  %v1199 = vpack.c.b16 %v983, %v979
  %v1200 = vpack.c.b16 %v984, %v980
  %v1201 = vpack.c.b16 %v985, %v981
  %v1202 = vpack.c.b16 %v990, %v986
  %v1203 = vpack.c.b16 %v991, %v987
  %v1204 = vpack.c.b16 %v992, %v988
  %v1205 = vpack.c.b16 %v993, %v989
  %v1206 = vpack.c.b16 %v998, %v994
  %v1207 = vpack.c.b16 %v999, %v995
  %v1208 = vpack.c.b16 %v1000, %v996
  %v1209 = vpack.c.b16 %v1001, %v997
  %v1210 = vpack.c.b16 %v1006, %v1002
  %v1211 = vpack.c.b16 %v1007, %v1003
  %v1212 = vpack.c.b16 %v1008, %v1004
  %v1213 = vpack.c.b16 %v1009, %v1005
  %v1214 = vpack.c.b16 %v1014, %v1010
  %v1215 = vpack.c.b16 %v1015, %v1011
  %v1216 = vpack.c.b16 %v1016, %v1012
  %v1217 = vpack.c.b16 %v1017, %v1013
  %v1218 = vpack.c.b16 %v1022, %v1018
  %v1219 = vpack.c.b16 %v1023, %v1019
  %v1220 = vpack.c.b16 %v1024, %v1020
  %v1221 = vpack.c.b16 %v1025, %v1021
  %v1222 = vpack.c.b16 %v1030, %v1026
  %v1223 = vpack.c.b16 %v1031, %v1027
  %v1224 = vpack.c.b16 %v1032, %v1028
  %v1225 = vpack.c.b16 %v1033, %v1029
  %v1226 = vpack.c.b16 %v1038, %v1034
  %v1227 = vpack.c.b16 %v1039, %v1035
  %v1228 = vpack.c.b16 %v1040, %v1036
  %v1229 = vpack.c.b16 %v1041, %v1037
  %v1230 = vpack.c.b16 %v1046, %v1042
  %v1231 = vpack.c.b16 %v1047, %v1043
  %v1232 = vpack.c.b16 %v1048, %v1044
  %v1233 = vpack.c.b16 %v1049, %v1045
  %v1234 = vpack.c.b16 %v1054, %v1050
  %v1235 = vpack.c.b16 %v1055, %v1051
  %v1236 = vpack.c.b16 %v1056, %v1052
  %v1237 = vpack.c.b16 %v1057, %v1053
  %vm1418 = vcmask 654336
  %v1420 = vsel %vm1418, %v435, 0
  %v1423 = vsel %vm1418, %v441, 0
  %v1426 = vsel %vm1418, %v447, 0
  %v1429 = vsel %vm1418, %v453, 0
  %v1432 = vsel %vm1418, %v459, 0
  %v1435 = vsel %vm1418, %v465, 0
  %v1438 = vsel %vm1418, %v471, 0
  %v1441 = vsel %vm1418, %v477, 0
  %1443 = vmatprep.subr.bf16.mxu0 %v1087
  %1444 = vmatpush1.bf16.msra.mxu0 %v1086
  %1445 = vmatprep.subr.bf16.mxu0 %v1083
  %1446 = vmatpush1.bf16.msra.mxu0 %v1082
  %1447 = vmatprep.subr.bf16.mxu0 %v1079
  %1448 = vmatpush1.bf16.msra.mxu0 %v1078
  %1449 = vmatprep.subr.bf16.mxu0 %v1075
  %1450 = vmatpush1.bf16.msra.mxu0 %v1074
  %1451 = vmatprep.subr.bf16.mxu0 %v1071
  %1452 = vmatpush1.bf16.msra.mxu0 %v1070
  %1453 = vmatprep.subr.bf16.mxu0 %v1067
  %1454 = vmatpush1.bf16.msra.mxu0 %v1066
  %1455 = vmatprep.subr.bf16.mxu0 %v1063
  %1456 = vmatpush1.bf16.msra.mxu0 %v1062
  %1457 = vmatprep.subr.bf16.mxu0 %v1059
  %1458 = vmatpush1.bf16.msra.mxu0 %v1058
  %1459 = vmatprep.subr.bf16.mxu0 %v1119
  %1460 = vmatpush2.bf16.msra.mxu0 %v1118
  %1461 = vmatprep.subr.bf16.mxu0 %v1115
  %1462 = vmatpush2.bf16.msra.mxu0 %v1114
  %1463 = vmatprep.subr.bf16.mxu0 %v1111
  %1464 = vmatpush2.bf16.msra.mxu0 %v1110
  %1465 = vmatprep.subr.bf16.mxu0 %v1107
  %1466 = vmatpush2.bf16.msra.mxu0 %v1106
  %1467 = vmatprep.subr.bf16.mxu0 %v1103
  %1468 = vmatpush2.bf16.msra.mxu0 %v1102
  %1469 = vmatprep.subr.bf16.mxu0 %v1099
  %1470 = vmatpush2.bf16.msra.mxu0 %v1098
  %1471 = vmatprep.subr.bf16.mxu0 %v1095
  %1472 = vmatpush2.bf16.msra.mxu0 %v1094
  %1473 = vmatprep.subr.bf16.mxu0 %v1091
  %1474 = vmatpush2.bf16.msra.mxu0 %v1090
  %1475 = vmatprep.mubr.bf16.mxu0 %v431
  %1476 = vmatmul.mubr.bf16.gmra.mxu0 %v430
  %v1477 = vpop.f32.mrf.mxu0
  %v1478 = vadd.f32 %v269, %v1477
  %v1479 = vpop.f32.mrf.mxu0
  %v1480 = vadd.f32 %v273, %v1479
  %v1481 = vpop.f32.mrf.mxu0
  %v1482 = vadd.f32 %v269, %v1481
  %v1483 = vpop.f32.mrf.mxu0
  %v1484 = vadd.f32 %v273, %v1483
  %1485 = vmatprep.mubr.bf16.mxu0 %v437
  %1486 = vmatmul.mubr.bf16.gmra.mxu0 %v436
  %v1487 = vpop.f32.mrf.mxu0
  %v1488 = vadd.f32 %v269, %v1487
  %v1489 = vpop.f32.mrf.mxu0
  %v1490 = vadd.f32 %v273, %v1489
  %v1491 = vpop.f32.mrf.mxu0
  %v1492 = vadd.f32 %v269, %v1491
  %v1493 = vpop.f32.mrf.mxu0
  %v1494 = vadd.f32 %v273, %v1493
  %1495 = vmatprep.mubr.bf16.mxu0 %v443
  %1496 = vmatmul.mubr.bf16.gmra.mxu0 %v442
  %v1497 = vpop.f32.mrf.mxu0
  %v1498 = vadd.f32 %v269, %v1497
  %v1499 = vpop.f32.mrf.mxu0
  %v1500 = vadd.f32 %v273, %v1499
  %v1501 = vpop.f32.mrf.mxu0
  %v1502 = vadd.f32 %v269, %v1501
  %v1503 = vpop.f32.mrf.mxu0
  %v1504 = vadd.f32 %v273, %v1503
  %1505 = vmatprep.mubr.bf16.mxu0 %v449
  %1506 = vmatmul.mubr.bf16.gmra.mxu0 %v448
  %v1507 = vpop.f32.mrf.mxu0
  %v1508 = vadd.f32 %v269, %v1507
  %v1509 = vpop.f32.mrf.mxu0
  %v1510 = vadd.f32 %v273, %v1509
  %v1511 = vpop.f32.mrf.mxu0
  %v1512 = vadd.f32 %v269, %v1511
  %v1513 = vpop.f32.mrf.mxu0
  %v1514 = vadd.f32 %v273, %v1513
  %1515 = vmatprep.mubr.bf16.mxu0 %v455
  %1516 = vmatmul.mubr.bf16.gmra.mxu0 %v454
  %v1517 = vpop.f32.mrf.mxu0
  %v1518 = vadd.f32 %v269, %v1517
  %v1519 = vpop.f32.mrf.mxu0
  %v1520 = vadd.f32 %v273, %v1519
  %v1521 = vpop.f32.mrf.mxu0
  %v1522 = vadd.f32 %v269, %v1521
  %v1523 = vpop.f32.mrf.mxu0
  %v1524 = vadd.f32 %v273, %v1523
  %1525 = vmatprep.mubr.bf16.mxu0 %v461
  %1526 = vmatmul.mubr.bf16.gmra.mxu0 %v460
  %v1527 = vpop.f32.mrf.mxu0
  %v1528 = vadd.f32 %v269, %v1527
  %v1529 = vpop.f32.mrf.mxu0
  %v1530 = vadd.f32 %v273, %v1529
  %v1531 = vpop.f32.mrf.mxu0
  %v1532 = vadd.f32 %v269, %v1531
  %v1533 = vpop.f32.mrf.mxu0
  %v1534 = vadd.f32 %v273, %v1533
  %1535 = vmatprep.mubr.bf16.mxu0 %v467
  %1536 = vmatmul.mubr.bf16.gmra.mxu0 %v466
  %v1537 = vpop.f32.mrf.mxu0
  %v1538 = vadd.f32 %v269, %v1537
  %v1539 = vpop.f32.mrf.mxu0
  %v1540 = vadd.f32 %v273, %v1539
  %v1541 = vpop.f32.mrf.mxu0
  %v1542 = vadd.f32 %v269, %v1541
  %v1543 = vpop.f32.mrf.mxu0
  %v1544 = vadd.f32 %v273, %v1543
  %1545 = vmatprep.mubr.bf16.mxu0 %v473
  %1546 = vmatmul.mubr.bf16.gmra.mxu0 %v472
  %v1547 = vpop.f32.mrf.mxu0
  %v1548 = vadd.f32 %v269, %v1547
  %v1549 = vpop.f32.mrf.mxu0
  %v1550 = vadd.f32 %v273, %v1549
  %v1551 = vpop.f32.mrf.mxu0
  %v1552 = vadd.f32 %v269, %v1551
  %v1553 = vpop.f32.mrf.mxu0
  %v1554 = vadd.f32 %v273, %v1553
  %1555 = vdwg.mxu0
  %1556 = vmatprep.subr.bf16.mxu0 %v1151
  %1557 = vmatpush1.bf16.msra.mxu0 %v1150
  %1558 = vmatprep.subr.bf16.mxu0 %v1147
  %1559 = vmatpush1.bf16.msra.mxu0 %v1146
  %1560 = vmatprep.subr.bf16.mxu0 %v1143
  %1561 = vmatpush1.bf16.msra.mxu0 %v1142
  %1562 = vmatprep.subr.bf16.mxu0 %v1139
  %1563 = vmatpush1.bf16.msra.mxu0 %v1138
  %1564 = vmatprep.subr.bf16.mxu0 %v1135
  %1565 = vmatpush1.bf16.msra.mxu0 %v1134
  %1566 = vmatprep.subr.bf16.mxu0 %v1131
  %1567 = vmatpush1.bf16.msra.mxu0 %v1130
  %1568 = vmatprep.subr.bf16.mxu0 %v1127
  %1569 = vmatpush1.bf16.msra.mxu0 %v1126
  %1570 = vmatprep.subr.bf16.mxu0 %v1123
  %1571 = vmatpush1.bf16.msra.mxu0 %v1122
  %1572 = vmatprep.subr.bf16.mxu0 %v1183
  %1573 = vmatpush2.bf16.msra.mxu0 %v1182
  %1574 = vmatprep.subr.bf16.mxu0 %v1179
  %1575 = vmatpush2.bf16.msra.mxu0 %v1178
  %1576 = vmatprep.subr.bf16.mxu0 %v1175
  %1577 = vmatpush2.bf16.msra.mxu0 %v1174
  %1578 = vmatprep.subr.bf16.mxu0 %v1171
  %1579 = vmatpush2.bf16.msra.mxu0 %v1170
  %1580 = vmatprep.subr.bf16.mxu0 %v1167
  %1581 = vmatpush2.bf16.msra.mxu0 %v1166
  %1582 = vmatprep.subr.bf16.mxu0 %v1163
  %1583 = vmatpush2.bf16.msra.mxu0 %v1162
  %1584 = vmatprep.subr.bf16.mxu0 %v1159
  %1585 = vmatpush2.bf16.msra.mxu0 %v1158
  %1586 = vmatprep.subr.bf16.mxu0 %v1155
  %1587 = vmatpush2.bf16.msra.mxu0 %v1154
  %1588 = vmatprep.mubr.bf16.mxu0 %v433
  %1589 = vmatmul.mubr.bf16.gmra.mxu0 %v432
  %v1590 = vpop.f32.mrf.mxu0
  %v1591 = vadd.f32 %v1478, %v1590
  %v1592 = vpop.f32.mrf.mxu0
  %v1593 = vadd.f32 %v1480, %v1592
  %v1594 = vpop.f32.mrf.mxu0
  %v1595 = vadd.f32 %v1482, %v1594
  %v1596 = vpop.f32.mrf.mxu0
  %v1597 = vadd.f32 %v1484, %v1596
  %1598 = vmatprep.mubr.bf16.mxu0 %v439
  %1599 = vmatmul.mubr.bf16.gmra.mxu0 %v438
  %v1600 = vpop.f32.mrf.mxu0
  %v1601 = vadd.f32 %v1488, %v1600
  %v1602 = vpop.f32.mrf.mxu0
  %v1603 = vadd.f32 %v1490, %v1602
  %v1604 = vpop.f32.mrf.mxu0
  %v1605 = vadd.f32 %v1492, %v1604
  %v1606 = vpop.f32.mrf.mxu0
  %v1607 = vadd.f32 %v1494, %v1606
  %1608 = vmatprep.mubr.bf16.mxu0 %v445
  %1609 = vmatmul.mubr.bf16.gmra.mxu0 %v444
  %v1610 = vpop.f32.mrf.mxu0
  %v1611 = vadd.f32 %v1498, %v1610
  %v1612 = vpop.f32.mrf.mxu0
  %v1613 = vadd.f32 %v1500, %v1612
  %v1614 = vpop.f32.mrf.mxu0
  %v1615 = vadd.f32 %v1502, %v1614
  %v1616 = vpop.f32.mrf.mxu0
  %v1617 = vadd.f32 %v1504, %v1616
  %1618 = vmatprep.mubr.bf16.mxu0 %v451
  %1619 = vmatmul.mubr.bf16.gmra.mxu0 %v450
  %v1620 = vpop.f32.mrf.mxu0
  %v1621 = vadd.f32 %v1508, %v1620
  %v1622 = vpop.f32.mrf.mxu0
  %v1623 = vadd.f32 %v1510, %v1622
  %v1624 = vpop.f32.mrf.mxu0
  %v1625 = vadd.f32 %v1512, %v1624
  %v1626 = vpop.f32.mrf.mxu0
  %v1627 = vadd.f32 %v1514, %v1626
  %1628 = vmatprep.mubr.bf16.mxu0 %v457
  %1629 = vmatmul.mubr.bf16.gmra.mxu0 %v456
  %v1630 = vpop.f32.mrf.mxu0
  %v1631 = vadd.f32 %v1518, %v1630
  %v1632 = vpop.f32.mrf.mxu0
  %v1633 = vadd.f32 %v1520, %v1632
  %v1634 = vpop.f32.mrf.mxu0
  %v1635 = vadd.f32 %v1522, %v1634
  %v1636 = vpop.f32.mrf.mxu0
  %v1637 = vadd.f32 %v1524, %v1636
  %1638 = vmatprep.mubr.bf16.mxu0 %v463
  %1639 = vmatmul.mubr.bf16.gmra.mxu0 %v462
  %v1640 = vpop.f32.mrf.mxu0
  %v1641 = vadd.f32 %v1528, %v1640
  %v1642 = vpop.f32.mrf.mxu0
  %v1643 = vadd.f32 %v1530, %v1642
  %v1644 = vpop.f32.mrf.mxu0
  %v1645 = vadd.f32 %v1532, %v1644
  %v1646 = vpop.f32.mrf.mxu0
  %v1647 = vadd.f32 %v1534, %v1646
  %1648 = vmatprep.mubr.bf16.mxu0 %v469
  %1649 = vmatmul.mubr.bf16.gmra.mxu0 %v468
  %v1650 = vpop.f32.mrf.mxu0
  %v1651 = vadd.f32 %v1538, %v1650
  %v1652 = vpop.f32.mrf.mxu0
  %v1653 = vadd.f32 %v1540, %v1652
  %v1654 = vpop.f32.mrf.mxu0
  %v1655 = vadd.f32 %v1542, %v1654
  %v1656 = vpop.f32.mrf.mxu0
  %v1657 = vadd.f32 %v1544, %v1656
  %1658 = vmatprep.mubr.bf16.mxu0 %v475
  %1659 = vmatmul.mubr.bf16.gmra.mxu0 %v474
  %v1660 = vpop.f32.mrf.mxu0
  %v1661 = vadd.f32 %v1548, %v1660
  %v1662 = vpop.f32.mrf.mxu0
  %v1663 = vadd.f32 %v1550, %v1662
  %v1664 = vpop.f32.mrf.mxu0
  %v1665 = vadd.f32 %v1552, %v1664
  %v1666 = vpop.f32.mrf.mxu0
  %v1667 = vadd.f32 %v1554, %v1666
  %1668 = vdwg.mxu0
  %1669 = vmatprep.subr.bf16.mxu0 %v1215
  %1670 = vmatpush1.bf16.msra.mxu0 %v1214
  %1671 = vmatprep.subr.bf16.mxu0 %v1211
  %1672 = vmatpush1.bf16.msra.mxu0 %v1210
  %1673 = vmatprep.subr.bf16.mxu0 %v1207
  %1674 = vmatpush1.bf16.msra.mxu0 %v1206
  %1675 = vmatprep.subr.bf16.mxu0 %v1203
  %1676 = vmatpush1.bf16.msra.mxu0 %v1202
  %1677 = vmatprep.subr.bf16.mxu0 %v1199
  %1678 = vmatpush1.bf16.msra.mxu0 %v1198
  %1679 = vmatprep.subr.bf16.mxu0 %v1195
  %1680 = vmatpush1.bf16.msra.mxu0 %v1194
  %1681 = vmatprep.subr.bf16.mxu0 %v1191
  %1682 = vmatpush1.bf16.msra.mxu0 %v1190
  %1683 = vmatprep.subr.bf16.mxu0 %v1187
  %1684 = vmatpush1.bf16.msra.mxu0 %v1186
  %1685 = vmatprep.subr.bf16.mxu0 0
  %1686 = vmatpush2.bf16.msra.mxu0 0
  %1687 = vmatprep.subr.bf16.mxu0 0
  %1688 = vmatpush2.bf16.msra.mxu0 0
  %1689 = vmatprep.subr.bf16.mxu0 0
  %1690 = vmatpush2.bf16.msra.mxu0 0
  %1691 = vmatprep.subr.bf16.mxu0 %v1235
  %1692 = vmatpush2.bf16.msra.mxu0 %v1234
  %1693 = vmatprep.subr.bf16.mxu0 %v1231
  %1694 = vmatpush2.bf16.msra.mxu0 %v1230
  %1695 = vmatprep.subr.bf16.mxu0 %v1227
  %1696 = vmatpush2.bf16.msra.mxu0 %v1226
  %1697 = vmatprep.subr.bf16.mxu0 %v1223
  %1698 = vmatpush2.bf16.msra.mxu0 %v1222
  %1699 = vmatprep.subr.bf16.mxu0 %v1219
  %1700 = vmatpush2.bf16.msra.mxu0 %v1218
  %1701 = vmatprep.mubr.bf16.mxu0 %v1420
  %1702 = vmatmul.mubr.bf16.gmra.mxu0 %v434
  %v1703 = vpop.f32.mrf.mxu0
  %v1704 = vadd.f32 %v1591, %v1703
  %v1705 = vpop.f32.mrf.mxu0
  %v1706 = vadd.f32 %v1593, %v1705
  %v1707 = vpop.f32.mrf.mxu0
  %v1708 = vadd.f32 %v1595, %v1707
  %v1709 = vpop.f32.mrf.mxu0
  %v1710 = vadd.f32 %v1597, %v1709
  %1711 = vmatprep.mubr.bf16.mxu0 %v1423
  %1712 = vmatmul.mubr.bf16.gmra.mxu0 %v440
  %v1713 = vpop.f32.mrf.mxu0
  %v1714 = vadd.f32 %v1601, %v1713
  %v1715 = vpop.f32.mrf.mxu0
  %v1716 = vadd.f32 %v1603, %v1715
  %v1717 = vpop.f32.mrf.mxu0
  %v1718 = vadd.f32 %v1605, %v1717
  %v1719 = vpop.f32.mrf.mxu0
  %v1720 = vadd.f32 %v1607, %v1719
  %1721 = vmatprep.mubr.bf16.mxu0 %v1426
  %1722 = vmatmul.mubr.bf16.gmra.mxu0 %v446
  %v1723 = vpop.f32.mrf.mxu0
  %v1724 = vadd.f32 %v1611, %v1723
  %v1725 = vpop.f32.mrf.mxu0
  %v1726 = vadd.f32 %v1613, %v1725
  %v1727 = vpop.f32.mrf.mxu0
  %v1728 = vadd.f32 %v1615, %v1727
  %v1729 = vpop.f32.mrf.mxu0
  %v1730 = vadd.f32 %v1617, %v1729
  %1731 = vmatprep.mubr.bf16.mxu0 %v1429
  %1732 = vmatmul.mubr.bf16.gmra.mxu0 %v452
  %v1733 = vpop.f32.mrf.mxu0
  %v1734 = vadd.f32 %v1621, %v1733
  %v1735 = vpop.f32.mrf.mxu0
  %v1736 = vadd.f32 %v1623, %v1735
  %v1737 = vpop.f32.mrf.mxu0
  %v1738 = vadd.f32 %v1625, %v1737
  %v1739 = vpop.f32.mrf.mxu0
  %v1740 = vadd.f32 %v1627, %v1739
  %1741 = vmatprep.mubr.bf16.mxu0 %v1432
  %1742 = vmatmul.mubr.bf16.gmra.mxu0 %v458
  %v1743 = vpop.f32.mrf.mxu0
  %v1744 = vadd.f32 %v1631, %v1743
  %v1745 = vpop.f32.mrf.mxu0
  %v1746 = vadd.f32 %v1633, %v1745
  %v1747 = vpop.f32.mrf.mxu0
  %v1748 = vadd.f32 %v1635, %v1747
  %v1749 = vpop.f32.mrf.mxu0
  %v1750 = vadd.f32 %v1637, %v1749
  %1751 = vmatprep.mubr.bf16.mxu0 %v1435
  %1752 = vmatmul.mubr.bf16.gmra.mxu0 %v464
  %v1753 = vpop.f32.mrf.mxu0
  %v1754 = vadd.f32 %v1641, %v1753
  %v1755 = vpop.f32.mrf.mxu0
  %v1756 = vadd.f32 %v1643, %v1755
  %v1757 = vpop.f32.mrf.mxu0
  %v1758 = vadd.f32 %v1645, %v1757
  %v1759 = vpop.f32.mrf.mxu0
  %v1760 = vadd.f32 %v1647, %v1759
  %1761 = vmatprep.mubr.bf16.mxu0 %v1438
  %1762 = vmatmul.mubr.bf16.gmra.mxu0 %v470
  %v1763 = vpop.f32.mrf.mxu0
  %v1764 = vadd.f32 %v1651, %v1763
  %v1765 = vpop.f32.mrf.mxu0
  %v1766 = vadd.f32 %v1653, %v1765
  %v1767 = vpop.f32.mrf.mxu0
  %v1768 = vadd.f32 %v1655, %v1767
  %v1769 = vpop.f32.mrf.mxu0
  %v1770 = vadd.f32 %v1657, %v1769
  %1771 = vmatprep.mubr.bf16.mxu0 %v1441
  %1772 = vmatmul.mubr.bf16.gmra.mxu0 %v476
  %v1773 = vpop.f32.mrf.mxu0
  %v1774 = vadd.f32 %v1661, %v1773
  %v1775 = vpop.f32.mrf.mxu0
  %v1776 = vadd.f32 %v1663, %v1775
  %v1777 = vpop.f32.mrf.mxu0
  %v1778 = vadd.f32 %v1665, %v1777
  %v1779 = vpop.f32.mrf.mxu0
  %v1780 = vadd.f32 %v1667, %v1779
  %1781 = vdwg.mxu0
  %1782 = vmatprep.subr.bf16.mxu0 %v1089
  %1783 = vmatpush1.bf16.msra.mxu0 %v1088
  %1784 = vmatprep.subr.bf16.mxu0 %v1085
  %1785 = vmatpush1.bf16.msra.mxu0 %v1084
  %1786 = vmatprep.subr.bf16.mxu0 %v1081
  %1787 = vmatpush1.bf16.msra.mxu0 %v1080
  %1788 = vmatprep.subr.bf16.mxu0 %v1077
  %1789 = vmatpush1.bf16.msra.mxu0 %v1076
  %1790 = vmatprep.subr.bf16.mxu0 %v1073
  %1791 = vmatpush1.bf16.msra.mxu0 %v1072
  %1792 = vmatprep.subr.bf16.mxu0 %v1069
  %1793 = vmatpush1.bf16.msra.mxu0 %v1068
  %1794 = vmatprep.subr.bf16.mxu0 %v1065
  %1795 = vmatpush1.bf16.msra.mxu0 %v1064
  %1796 = vmatprep.subr.bf16.mxu0 %v1061
  %1797 = vmatpush1.bf16.msra.mxu0 %v1060
  %1798 = vmatprep.subr.bf16.mxu0 %v1121
  %1799 = vmatpush2.bf16.msra.mxu0 %v1120
  %1800 = vmatprep.subr.bf16.mxu0 %v1117
  %1801 = vmatpush2.bf16.msra.mxu0 %v1116
  %1802 = vmatprep.subr.bf16.mxu0 %v1113
  %1803 = vmatpush2.bf16.msra.mxu0 %v1112
  %1804 = vmatprep.subr.bf16.mxu0 %v1109
  %1805 = vmatpush2.bf16.msra.mxu0 %v1108
  %1806 = vmatprep.subr.bf16.mxu0 %v1105
  %1807 = vmatpush2.bf16.msra.mxu0 %v1104
  %1808 = vmatprep.subr.bf16.mxu0 %v1101
  %1809 = vmatpush2.bf16.msra.mxu0 %v1100
  %1810 = vmatprep.subr.bf16.mxu0 %v1097
  %1811 = vmatpush2.bf16.msra.mxu0 %v1096
  %1812 = vmatprep.subr.bf16.mxu0 %v1093
  %1813 = vmatpush2.bf16.msra.mxu0 %v1092
  %1814 = vmatprep.mubr.bf16.mxu0 %v431
  %1815 = vmatmul.mubr.bf16.gmra.mxu0 %v430
  %v1816 = vpop.f32.mrf.mxu0
  %v1817 = vadd.f32 %v277, %v1816
  %v1818 = vpop.f32.mrf.mxu0
  %v1819 = vadd.f32 %v281, %v1818
  %v1820 = vpop.f32.mrf.mxu0
  %v1821 = vadd.f32 %v277, %v1820
  %v1822 = vpop.f32.mrf.mxu0
  %v1823 = vadd.f32 %v281, %v1822
  %1824 = vmatprep.mubr.bf16.mxu0 %v437
  %1825 = vmatmul.mubr.bf16.gmra.mxu0 %v436
  %v1826 = vpop.f32.mrf.mxu0
  %v1827 = vadd.f32 %v277, %v1826
  %v1828 = vpop.f32.mrf.mxu0
  %v1829 = vadd.f32 %v281, %v1828
  %v1830 = vpop.f32.mrf.mxu0
  %v1831 = vadd.f32 %v277, %v1830
  %v1832 = vpop.f32.mrf.mxu0
  %v1833 = vadd.f32 %v281, %v1832
  %1834 = vmatprep.mubr.bf16.mxu0 %v443
  %1835 = vmatmul.mubr.bf16.gmra.mxu0 %v442
  %v1836 = vpop.f32.mrf.mxu0
  %v1837 = vadd.f32 %v277, %v1836
  %v1838 = vpop.f32.mrf.mxu0
  %v1839 = vadd.f32 %v281, %v1838
  %v1840 = vpop.f32.mrf.mxu0
  %v1841 = vadd.f32 %v277, %v1840
  %v1842 = vpop.f32.mrf.mxu0
  %v1843 = vadd.f32 %v281, %v1842
  %1844 = vmatprep.mubr.bf16.mxu0 %v449
  %1845 = vmatmul.mubr.bf16.gmra.mxu0 %v448
  %v1846 = vpop.f32.mrf.mxu0
  %v1847 = vadd.f32 %v277, %v1846
  %v1848 = vpop.f32.mrf.mxu0
  %v1849 = vadd.f32 %v281, %v1848
  %v1850 = vpop.f32.mrf.mxu0
  %v1851 = vadd.f32 %v277, %v1850
  %v1852 = vpop.f32.mrf.mxu0
  %v1853 = vadd.f32 %v281, %v1852
  %1854 = vmatprep.mubr.bf16.mxu0 %v455
  %1855 = vmatmul.mubr.bf16.gmra.mxu0 %v454
  %v1856 = vpop.f32.mrf.mxu0
  %v1857 = vadd.f32 %v277, %v1856
  %v1858 = vpop.f32.mrf.mxu0
  %v1859 = vadd.f32 %v281, %v1858
  %v1860 = vpop.f32.mrf.mxu0
  %v1861 = vadd.f32 %v277, %v1860
  %v1862 = vpop.f32.mrf.mxu0
  %v1863 = vadd.f32 %v281, %v1862
  %1864 = vmatprep.mubr.bf16.mxu0 %v461
  %1865 = vmatmul.mubr.bf16.gmra.mxu0 %v460
  %v1866 = vpop.f32.mrf.mxu0
  %v1867 = vadd.f32 %v277, %v1866
  %v1868 = vpop.f32.mrf.mxu0
  %v1869 = vadd.f32 %v281, %v1868
  %v1870 = vpop.f32.mrf.mxu0
  %v1871 = vadd.f32 %v277, %v1870
  %v1872 = vpop.f32.mrf.mxu0
  %v1873 = vadd.f32 %v281, %v1872
  %1874 = vmatprep.mubr.bf16.mxu0 %v467
  %1875 = vmatmul.mubr.bf16.gmra.mxu0 %v466
  %v1876 = vpop.f32.mrf.mxu0
  %v1877 = vadd.f32 %v277, %v1876
  %v1878 = vpop.f32.mrf.mxu0
  %v1879 = vadd.f32 %v281, %v1878
  %v1880 = vpop.f32.mrf.mxu0
  %v1881 = vadd.f32 %v277, %v1880
  %v1882 = vpop.f32.mrf.mxu0
  %v1883 = vadd.f32 %v281, %v1882
  %1884 = vmatprep.mubr.bf16.mxu0 %v473
  %1885 = vmatmul.mubr.bf16.gmra.mxu0 %v472
  %v1886 = vpop.f32.mrf.mxu0
  %v1887 = vadd.f32 %v277, %v1886
  %v1888 = vpop.f32.mrf.mxu0
  %v1889 = vadd.f32 %v281, %v1888
  %v1890 = vpop.f32.mrf.mxu0
  %v1891 = vadd.f32 %v277, %v1890
  %v1892 = vpop.f32.mrf.mxu0
  %v1893 = vadd.f32 %v281, %v1892
  %1894 = vdwg.mxu0
  %1895 = vmatprep.subr.bf16.mxu0 %v1153
  %1896 = vmatpush1.bf16.msra.mxu0 %v1152
  %1897 = vmatprep.subr.bf16.mxu0 %v1149
  %1898 = vmatpush1.bf16.msra.mxu0 %v1148
  %1899 = vmatprep.subr.bf16.mxu0 %v1145
  %1900 = vmatpush1.bf16.msra.mxu0 %v1144
  %1901 = vmatprep.subr.bf16.mxu0 %v1141
  %1902 = vmatpush1.bf16.msra.mxu0 %v1140
  %1903 = vmatprep.subr.bf16.mxu0 %v1137
  %1904 = vmatpush1.bf16.msra.mxu0 %v1136
  %1905 = vmatprep.subr.bf16.mxu0 %v1133
  %1906 = vmatpush1.bf16.msra.mxu0 %v1132
  %1907 = vmatprep.subr.bf16.mxu0 %v1129
  %1908 = vmatpush1.bf16.msra.mxu0 %v1128
  %1909 = vmatprep.subr.bf16.mxu0 %v1125
  %1910 = vmatpush1.bf16.msra.mxu0 %v1124
  %1911 = vmatprep.subr.bf16.mxu0 %v1185
  %1912 = vmatpush2.bf16.msra.mxu0 %v1184
  %1913 = vmatprep.subr.bf16.mxu0 %v1181
  %1914 = vmatpush2.bf16.msra.mxu0 %v1180
  %1915 = vmatprep.subr.bf16.mxu0 %v1177
  %1916 = vmatpush2.bf16.msra.mxu0 %v1176
  %1917 = vmatprep.subr.bf16.mxu0 %v1173
  %1918 = vmatpush2.bf16.msra.mxu0 %v1172
  %1919 = vmatprep.subr.bf16.mxu0 %v1169
  %1920 = vmatpush2.bf16.msra.mxu0 %v1168
  %1921 = vmatprep.subr.bf16.mxu0 %v1165
  %1922 = vmatpush2.bf16.msra.mxu0 %v1164
  %1923 = vmatprep.subr.bf16.mxu0 %v1161
  %1924 = vmatpush2.bf16.msra.mxu0 %v1160
  %1925 = vmatprep.subr.bf16.mxu0 %v1157
  %1926 = vmatpush2.bf16.msra.mxu0 %v1156
  %1927 = vmatprep.mubr.bf16.mxu0 %v433
  %1928 = vmatmul.mubr.bf16.gmra.mxu0 %v432
  %v1929 = vpop.f32.mrf.mxu0
  %v1930 = vadd.f32 %v1817, %v1929
  %v1931 = vpop.f32.mrf.mxu0
  %v1932 = vadd.f32 %v1819, %v1931
  %v1933 = vpop.f32.mrf.mxu0
  %v1934 = vadd.f32 %v1821, %v1933
  %v1935 = vpop.f32.mrf.mxu0
  %v1936 = vadd.f32 %v1823, %v1935
  %1937 = vmatprep.mubr.bf16.mxu0 %v439
  %1938 = vmatmul.mubr.bf16.gmra.mxu0 %v438
  %v1939 = vpop.f32.mrf.mxu0
  %v1940 = vadd.f32 %v1827, %v1939
  %v1941 = vpop.f32.mrf.mxu0
  %v1942 = vadd.f32 %v1829, %v1941
  %v1943 = vpop.f32.mrf.mxu0
  %v1944 = vadd.f32 %v1831, %v1943
  %v1945 = vpop.f32.mrf.mxu0
  %v1946 = vadd.f32 %v1833, %v1945
  %1947 = vmatprep.mubr.bf16.mxu0 %v445
  %1948 = vmatmul.mubr.bf16.gmra.mxu0 %v444
  %v1949 = vpop.f32.mrf.mxu0
  %v1950 = vadd.f32 %v1837, %v1949
  %v1951 = vpop.f32.mrf.mxu0
  %v1952 = vadd.f32 %v1839, %v1951
  %v1953 = vpop.f32.mrf.mxu0
  %v1954 = vadd.f32 %v1841, %v1953
  %v1955 = vpop.f32.mrf.mxu0
  %v1956 = vadd.f32 %v1843, %v1955
  %1957 = vmatprep.mubr.bf16.mxu0 %v451
  %1958 = vmatmul.mubr.bf16.gmra.mxu0 %v450
  %v1959 = vpop.f32.mrf.mxu0
  %v1960 = vadd.f32 %v1847, %v1959
  %v1961 = vpop.f32.mrf.mxu0
  %v1962 = vadd.f32 %v1849, %v1961
  %v1963 = vpop.f32.mrf.mxu0
  %v1964 = vadd.f32 %v1851, %v1963
  %v1965 = vpop.f32.mrf.mxu0
  %v1966 = vadd.f32 %v1853, %v1965
  %1967 = vmatprep.mubr.bf16.mxu0 %v457
  %1968 = vmatmul.mubr.bf16.gmra.mxu0 %v456
  %v1969 = vpop.f32.mrf.mxu0
  %v1970 = vadd.f32 %v1857, %v1969
  %v1971 = vpop.f32.mrf.mxu0
  %v1972 = vadd.f32 %v1859, %v1971
  %v1973 = vpop.f32.mrf.mxu0
  %v1974 = vadd.f32 %v1861, %v1973
  %v1975 = vpop.f32.mrf.mxu0
  %v1976 = vadd.f32 %v1863, %v1975
  %1977 = vmatprep.mubr.bf16.mxu0 %v463
  %1978 = vmatmul.mubr.bf16.gmra.mxu0 %v462
  %v1979 = vpop.f32.mrf.mxu0
  %v1980 = vadd.f32 %v1867, %v1979
  %v1981 = vpop.f32.mrf.mxu0
  %v1982 = vadd.f32 %v1869, %v1981
  %v1983 = vpop.f32.mrf.mxu0
  %v1984 = vadd.f32 %v1871, %v1983
  %v1985 = vpop.f32.mrf.mxu0
  %v1986 = vadd.f32 %v1873, %v1985
  %1987 = vmatprep.mubr.bf16.mxu0 %v469
  %1988 = vmatmul.mubr.bf16.gmra.mxu0 %v468
  %v1989 = vpop.f32.mrf.mxu0
  %v1990 = vadd.f32 %v1877, %v1989
  %v1991 = vpop.f32.mrf.mxu0
  %v1992 = vadd.f32 %v1879, %v1991
  %v1993 = vpop.f32.mrf.mxu0
  %v1994 = vadd.f32 %v1881, %v1993
  %v1995 = vpop.f32.mrf.mxu0
  %v1996 = vadd.f32 %v1883, %v1995
  %1997 = vmatprep.mubr.bf16.mxu0 %v475
  %1998 = vmatmul.mubr.bf16.gmra.mxu0 %v474
  %v1999 = vpop.f32.mrf.mxu0
  %v2000 = vadd.f32 %v1887, %v1999
  %v2001 = vpop.f32.mrf.mxu0
  %v2002 = vadd.f32 %v1889, %v2001
  %v2003 = vpop.f32.mrf.mxu0
  %v2004 = vadd.f32 %v1891, %v2003
  %v2005 = vpop.f32.mrf.mxu0
  %v2006 = vadd.f32 %v1893, %v2005
  %2007 = vdwg.mxu0
  %2008 = vmatprep.subr.bf16.mxu0 %v1217
  %2009 = vmatpush1.bf16.msra.mxu0 %v1216
  %2010 = vmatprep.subr.bf16.mxu0 %v1213
  %2011 = vmatpush1.bf16.msra.mxu0 %v1212
  %2012 = vmatprep.subr.bf16.mxu0 %v1209
  %2013 = vmatpush1.bf16.msra.mxu0 %v1208
  %2014 = vmatprep.subr.bf16.mxu0 %v1205
  %2015 = vmatpush1.bf16.msra.mxu0 %v1204
  %2016 = vmatprep.subr.bf16.mxu0 %v1201
  %2017 = vmatpush1.bf16.msra.mxu0 %v1200
  %2018 = vmatprep.subr.bf16.mxu0 %v1197
  %2019 = vmatpush1.bf16.msra.mxu0 %v1196
  %2020 = vmatprep.subr.bf16.mxu0 %v1193
  %2021 = vmatpush1.bf16.msra.mxu0 %v1192
  %2022 = vmatprep.subr.bf16.mxu0 %v1189
  %2023 = vmatpush1.bf16.msra.mxu0 %v1188
  %2024 = vmatprep.subr.bf16.mxu0 0
  %2025 = vmatpush2.bf16.msra.mxu0 0
  %2026 = vmatprep.subr.bf16.mxu0 0
  %2027 = vmatpush2.bf16.msra.mxu0 0
  %2028 = vmatprep.subr.bf16.mxu0 0
  %2029 = vmatpush2.bf16.msra.mxu0 0
  %2030 = vmatprep.subr.bf16.mxu0 %v1237
  %2031 = vmatpush2.bf16.msra.mxu0 %v1236
  %2032 = vmatprep.subr.bf16.mxu0 %v1233
  %2033 = vmatpush2.bf16.msra.mxu0 %v1232
  %2034 = vmatprep.subr.bf16.mxu0 %v1229
  %2035 = vmatpush2.bf16.msra.mxu0 %v1228
  %2036 = vmatprep.subr.bf16.mxu0 %v1225
  %2037 = vmatpush2.bf16.msra.mxu0 %v1224
  %2038 = vmatprep.subr.bf16.mxu0 %v1221
  %2039 = vmatpush2.bf16.msra.mxu0 %v1220
  %2040 = vmatprep.mubr.bf16.mxu0 %v1420
  %2041 = vmatmul.mubr.bf16.gmra.mxu0 %v434
  %v2042 = vpop.f32.mrf.mxu0
  %v2043 = vadd.f32 %v1930, %v2042
  %v2044 = vpop.f32.mrf.mxu0
  %v2045 = vadd.f32 %v1932, %v2044
  %v2046 = vpop.f32.mrf.mxu0
  %v2047 = vadd.f32 %v1934, %v2046
  %v2048 = vpop.f32.mrf.mxu0
  %v2049 = vadd.f32 %v1936, %v2048
  %2050 = vmatprep.mubr.bf16.mxu0 %v1423
  %2051 = vmatmul.mubr.bf16.gmra.mxu0 %v440
  %v2052 = vpop.f32.mrf.mxu0
  %v2053 = vadd.f32 %v1940, %v2052
  %v2054 = vpop.f32.mrf.mxu0
  %v2055 = vadd.f32 %v1942, %v2054
  %v2056 = vpop.f32.mrf.mxu0
  %v2057 = vadd.f32 %v1944, %v2056
  %v2058 = vpop.f32.mrf.mxu0
  %v2059 = vadd.f32 %v1946, %v2058
  %2060 = vmatprep.mubr.bf16.mxu0 %v1426
  %2061 = vmatmul.mubr.bf16.gmra.mxu0 %v446
  %v2062 = vpop.f32.mrf.mxu0
  %v2063 = vadd.f32 %v1950, %v2062
  %v2064 = vpop.f32.mrf.mxu0
  %v2065 = vadd.f32 %v1952, %v2064
  %v2066 = vpop.f32.mrf.mxu0
  %v2067 = vadd.f32 %v1954, %v2066
  %v2068 = vpop.f32.mrf.mxu0
  %v2069 = vadd.f32 %v1956, %v2068
  %2070 = vmatprep.mubr.bf16.mxu0 %v1429
  %2071 = vmatmul.mubr.bf16.gmra.mxu0 %v452
  %v2072 = vpop.f32.mrf.mxu0
  %v2073 = vadd.f32 %v1960, %v2072
  %v2074 = vpop.f32.mrf.mxu0
  %v2075 = vadd.f32 %v1962, %v2074
  %v2076 = vpop.f32.mrf.mxu0
  %v2077 = vadd.f32 %v1964, %v2076
  %v2078 = vpop.f32.mrf.mxu0
  %v2079 = vadd.f32 %v1966, %v2078
  %2080 = vmatprep.mubr.bf16.mxu0 %v1432
  %2081 = vmatmul.mubr.bf16.gmra.mxu0 %v458
  %v2082 = vpop.f32.mrf.mxu0
  %v2083 = vadd.f32 %v1970, %v2082
  %v2084 = vpop.f32.mrf.mxu0
  %v2085 = vadd.f32 %v1972, %v2084
  %v2086 = vpop.f32.mrf.mxu0
  %v2087 = vadd.f32 %v1974, %v2086
  %v2088 = vpop.f32.mrf.mxu0
  %v2089 = vadd.f32 %v1976, %v2088
  %2090 = vmatprep.mubr.bf16.mxu0 %v1435
  %2091 = vmatmul.mubr.bf16.gmra.mxu0 %v464
  %v2092 = vpop.f32.mrf.mxu0
  %v2093 = vadd.f32 %v1980, %v2092
  %v2094 = vpop.f32.mrf.mxu0
  %v2095 = vadd.f32 %v1982, %v2094
  %v2096 = vpop.f32.mrf.mxu0
  %v2097 = vadd.f32 %v1984, %v2096
  %v2098 = vpop.f32.mrf.mxu0
  %v2099 = vadd.f32 %v1986, %v2098
  %2100 = vmatprep.mubr.bf16.mxu0 %v1438
  %2101 = vmatmul.mubr.bf16.gmra.mxu0 %v470
  %v2102 = vpop.f32.mrf.mxu0
  %v2103 = vadd.f32 %v1990, %v2102
  %v2104 = vpop.f32.mrf.mxu0
  %v2105 = vadd.f32 %v1992, %v2104
  %v2106 = vpop.f32.mrf.mxu0
  %v2107 = vadd.f32 %v1994, %v2106
  %v2108 = vpop.f32.mrf.mxu0
  %v2109 = vadd.f32 %v1996, %v2108
  %2110 = vmatprep.mubr.bf16.mxu0 %v1441
  %2111 = vmatmul.mubr.bf16.gmra.mxu0 %v476
  %v2112 = vpop.f32.mrf.mxu0
  %v2113 = vadd.f32 %v2000, %v2112
  %v2114 = vpop.f32.mrf.mxu0
  %v2115 = vadd.f32 %v2002, %v2114
  %v2116 = vpop.f32.mrf.mxu0
  %v2117 = vadd.f32 %v2004, %v2116
  %v2118 = vpop.f32.mrf.mxu0
  %v2119 = vadd.f32 %v2006, %v2118
  %2120 = vdwg.mxu0
  %v2121 = vmax.f32 %v1704, 0.0
  %v2122 = vmax.f32 %v1706, 0.0
  %v2123 = vmax.f32 %v2043, 0.0
  %v2124 = vmax.f32 %v2045, 0.0
  %v2125 = vmax.f32 %v1708, 0.0
  %v2126 = vmax.f32 %v1710, 0.0
  %v2127 = vmax.f32 %v2047, 0.0
  %v2128 = vmax.f32 %v2049, 0.0
  %v2129 = vmax.f32 %v1714, 0.0
  %v2130 = vmax.f32 %v1716, 0.0
  %v2131 = vmax.f32 %v2053, 0.0
  %v2132 = vmax.f32 %v2055, 0.0
  %v2133 = vmax.f32 %v1718, 0.0
  %v2134 = vmax.f32 %v1720, 0.0
  %v2135 = vmax.f32 %v2057, 0.0
  %v2136 = vmax.f32 %v2059, 0.0
  %v2137 = vmax.f32 %v1724, 0.0
  %v2138 = vmax.f32 %v1726, 0.0
  %v2139 = vmax.f32 %v2063, 0.0
  %v2140 = vmax.f32 %v2065, 0.0
  %v2141 = vmax.f32 %v1728, 0.0
  %v2142 = vmax.f32 %v1730, 0.0
  %v2143 = vmax.f32 %v2067, 0.0
  %v2144 = vmax.f32 %v2069, 0.0
  %v2145 = vmax.f32 %v1734, 0.0
  %v2146 = vmax.f32 %v1736, 0.0
  %v2147 = vmax.f32 %v2073, 0.0
  %v2148 = vmax.f32 %v2075, 0.0
  %v2149 = vmax.f32 %v1738, 0.0
  %v2150 = vmax.f32 %v1740, 0.0
  %v2151 = vmax.f32 %v2077, 0.0
  %v2152 = vmax.f32 %v2079, 0.0
  %v2153 = vmax.f32 %v1744, 0.0
  %v2154 = vmax.f32 %v1746, 0.0
  %v2155 = vmax.f32 %v2083, 0.0
  %v2156 = vmax.f32 %v2085, 0.0
  %v2157 = vmax.f32 %v1748, 0.0
  %v2158 = vmax.f32 %v1750, 0.0
  %v2159 = vmax.f32 %v2087, 0.0
  %v2160 = vmax.f32 %v2089, 0.0
  %v2161 = vmax.f32 %v1754, 0.0
  %v2162 = vmax.f32 %v1756, 0.0
  %v2163 = vmax.f32 %v2093, 0.0
  %v2164 = vmax.f32 %v2095, 0.0
  %v2165 = vmax.f32 %v1758, 0.0
  %v2166 = vmax.f32 %v1760, 0.0
  %v2167 = vmax.f32 %v2097, 0.0
  %v2168 = vmax.f32 %v2099, 0.0
  %v2169 = vmax.f32 %v1764, 0.0
  %v2170 = vmax.f32 %v1766, 0.0
  %v2171 = vmax.f32 %v2103, 0.0
  %v2172 = vmax.f32 %v2105, 0.0
  %v2173 = vmax.f32 %v1768, 0.0
  %v2174 = vmax.f32 %v1770, 0.0
  %v2175 = vmax.f32 %v2107, 0.0
  %v2176 = vmax.f32 %v2109, 0.0
  %v2177 = vmax.f32 %v1774, 0.0
  %v2178 = vmax.f32 %v1776, 0.0
  %v2179 = vmax.f32 %v2113, 0.0
  %v2180 = vmax.f32 %v2115, 0.0
  %v2181 = vmax.f32 %v1778, 0.0
  %v2182 = vmax.f32 %v1780, 0.0
  %v2183 = vmax.f32 %v2117, 0.0
  %v2184 = vmax.f32 %v2119, 0.0
  %v2185 = vpack.c.bf16 %v2125, %v2121
  %v2186 = vpack.c.bf16 %v2126, %v2122
  %v2187 = vpack.c.bf16 %v2127, %v2123
  %v2188 = vpack.c.bf16 %v2128, %v2124
  %v2189 = vpack.c.bf16 %v2133, %v2129
  %v2190 = vpack.c.bf16 %v2134, %v2130
  %v2191 = vpack.c.bf16 %v2135, %v2131
  %v2192 = vpack.c.bf16 %v2136, %v2132
  %v2193 = vpack.c.bf16 %v2141, %v2137
  %v2194 = vpack.c.bf16 %v2142, %v2138
  %v2195 = vpack.c.bf16 %v2143, %v2139
  %v2196 = vpack.c.bf16 %v2144, %v2140
  %v2197 = vpack.c.bf16 %v2149, %v2145
  %v2198 = vpack.c.bf16 %v2150, %v2146
  %v2199 = vpack.c.bf16 %v2151, %v2147
  %v2200 = vpack.c.bf16 %v2152, %v2148
  %v2201 = vpack.c.bf16 %v2157, %v2153
  %v2202 = vpack.c.bf16 %v2158, %v2154
  %v2203 = vpack.c.bf16 %v2159, %v2155
  %v2204 = vpack.c.bf16 %v2160, %v2156
  %v2205 = vpack.c.bf16 %v2165, %v2161
  %v2206 = vpack.c.bf16 %v2166, %v2162
  %v2207 = vpack.c.bf16 %v2167, %v2163
  %v2208 = vpack.c.bf16 %v2168, %v2164
  %v2209 = vpack.c.bf16 %v2173, %v2169
  %v2210 = vpack.c.bf16 %v2174, %v2170
  %v2211 = vpack.c.bf16 %v2175, %v2171
  %v2212 = vpack.c.bf16 %v2176, %v2172
  %v2213 = vpack.c.bf16 %v2181, %v2177
  %v2214 = vpack.c.bf16 %v2182, %v2178
  %v2215 = vpack.c.bf16 %v2183, %v2179
  %v2216 = vpack.c.bf16 %v2184, %v2180
  %v2217 = vld [vmem:[%s3] sm:$0xf]
  %v2218 = vld [vmem:[%s3 + $0x4] sm:$0xf]
  %v2219 = vld [vmem:[%s3 + $0x8] sm:$0xf]
  %v2220 = vld [vmem:[%s3 + $0xc] sm:$0xf]
  %v2221 = vld [vmem:[%s3 + $0x10] sm:$0xf]
  %v2222 = vld [vmem:[%s3 + $0x14] sm:$0xf]
  %v2223 = vld [vmem:[%s3 + $0x18] sm:$0xf]
  %v2224 = vld [vmem:[%s3 + $0x1c] sm:$0xf]
  %v2225 = vld [vmem:[%s3 + $0x20] sm:$0xf]
  %v2226 = vld [vmem:[%s3 + $0x24] sm:$0xf]
  %v2227 = vld [vmem:[%s3 + $0x28] sm:$0xf]
  %v2228 = vld [vmem:[%s3 + $0x2c] sm:$0xf]
  %v2229 = vld [vmem:[%s3 + $0x30] sm:$0xf]
  %v2230 = vld [vmem:[%s3 + $0x34] sm:$0xf]
  %v2231 = vld [vmem:[%s3 + $0x38] sm:$0xf]
  %v2232 = vld [vmem:[%s3 + $0x3c] sm:$0xf]
  %v2233 = vld [vmem:[%s3 + $0x40] sm:$0xf]
  %v2234 = vld [vmem:[%s3 + $0x44] sm:$0xf]
  %v2235 = vld [vmem:[%s3 + $0x48] sm:$0xf]
  %v2236 = vld [vmem:[%s3 + $0x4c] sm:$0xf]
  %v2237 = vld [vmem:[%s3 + $0x50] sm:$0xf]
  %v2238 = vld [vmem:[%s3 + $0x54] sm:$0xf]
  %v2239 = vld [vmem:[%s3 + $0x58] sm:$0xf]
  %v2240 = vld [vmem:[%s3 + $0x5c] sm:$0xf]
  %v2241 = vld [vmem:[%s3 + $0x60] sm:$0xf]
  %v2242 = vld [vmem:[%s3 + $0x64] sm:$0xf]
  %v2243 = vld [vmem:[%s3 + $0x68] sm:$0xf]
  %v2244 = vld [vmem:[%s3 + $0x6c] sm:$0xf]
  %v2245 = vld [vmem:[%s3 + $0x70] sm:$0xf]
  %v2246 = vld [vmem:[%s3 + $0x74] sm:$0xf]
  %v2247 = vld [vmem:[%s3 + $0x78] sm:$0xf]
  %v2248 = vld [vmem:[%s3 + $0x7c] sm:$0xf]
  %v2249 = vld [vmem:[%s3 + $0x80] sm:$0xf]
  %v2250 = vld [vmem:[%s3 + $0x84] sm:$0xf]
  %v2251 = vld [vmem:[%s3 + $0x88] sm:$0xf]
  %v2252 = vld [vmem:[%s3 + $0x8c] sm:$0xf]
  %v2253 = vld [vmem:[%s3 + $0x90] sm:$0xf]
  %v2254 = vld [vmem:[%s3 + $0x94] sm:$0xf]
  %v2255 = vld [vmem:[%s3 + $0x98] sm:$0xf]
  %v2256 = vld [vmem:[%s3 + $0x9c] sm:$0xf]
  %v2257 = vld [vmem:[%s3 + $0xa0] sm:$0xf]
  %v2258 = vld [vmem:[%s3 + $0xa4] sm:$0xf]
  %v2259 = vld [vmem:[%s3 + $0xa8] sm:$0xf]
  %v2260 = vld [vmem:[%s3 + $0xac] sm:$0xf]
  %v2261 = vld [vmem:[%s3 + $0xb0] sm:$0xf]
  %v2262 = vld [vmem:[%s3 + $0xb4] sm:$0xf]
  %v2263 = vld [vmem:[%s3 + $0xb8] sm:$0xf]
  %v2264 = vld [vmem:[%s3 + $0xbc] sm:$0xf]
  %v2265 = vld [vmem:[%s3 + $0xc0] sm:$0xf]
  %v2266 = vld [vmem:[%s3 + $0xc4] sm:$0xf]
  %v2267 = vld [vmem:[%s3 + $0xc8] sm:$0xf]
  %v2268 = vld [vmem:[%s3 + $0xcc] sm:$0xf]
  %v2269 = vld [vmem:[%s3 + $0xd0] sm:$0xf]
  %v2270 = vld [vmem:[%s3 + $0xd4] sm:$0xf]
  %v2271 = vld [vmem:[%s3 + $0xd8] sm:$0xf]
  %v2272 = vld [vmem:[%s3 + $0xdc] sm:$0xf]
  %v2273 = vld [vmem:[%s3 + $0xe0] sm:$0xf]
  %v2274 = vld [vmem:[%s3 + $0xe4] sm:$0xf]
  %v2275 = vld [vmem:[%s3 + $0xe8] sm:$0xf]
  %v2276 = vld [vmem:[%s3 + $0xec] sm:$0xf]
  %v2337 = vunpack.c.l.b16 %v2217
  %v2338 = vunpack.c.l.b16 %v2218
  %v2339 = vunpack.c.l.b16 %v2219
  %v2340 = vunpack.c.l.b16 %v2220
  %v2341 = vunpack.c.l.b16 %v2221
  %v2342 = vunpack.c.l.b16 %v2222
  %v2343 = vunpack.c.l.b16 %v2223
  %v2344 = vunpack.c.l.b16 %v2224
  %v2345 = vunpack.c.l.b16 %v2225
  %v2346 = vunpack.c.l.b16 %v2226
  %v2347 = vunpack.c.l.b16 %v2227
  %v2348 = vunpack.c.l.b16 %v2228
  %v2349 = vunpack.c.l.b16 %v2229
  %v2350 = vunpack.c.l.b16 %v2230
  %v2351 = vunpack.c.l.b16 %v2231
  %v2352 = vunpack.c.l.b16 %v2232
  %v2353 = vunpack.c.l.b16 %v2233
  %v2354 = vunpack.c.l.b16 %v2234
  %v2355 = vunpack.c.l.b16 %v2235
  %v2356 = vunpack.c.l.b16 %v2236
  %v2357 = vunpack.c.l.b16 %v2237
  %v2358 = vunpack.c.l.b16 %v2238
  %v2359 = vunpack.c.l.b16 %v2239
  %v2360 = vunpack.c.l.b16 %v2240
  %v2361 = vunpack.c.l.b16 %v2241
  %v2362 = vunpack.c.l.b16 %v2242
  %v2363 = vunpack.c.l.b16 %v2243
  %v2364 = vunpack.c.l.b16 %v2244
  %v2365 = vunpack.c.l.b16 %v2245
  %v2366 = vunpack.c.l.b16 %v2246
  %v2367 = vunpack.c.l.b16 %v2247
  %v2368 = vunpack.c.l.b16 %v2248
  %v2369 = vunpack.c.l.b16 %v2249
  %v2370 = vunpack.c.l.b16 %v2250
  %v2371 = vunpack.c.l.b16 %v2251
  %v2372 = vunpack.c.l.b16 %v2252
  %v2373 = vunpack.c.l.b16 %v2253
  %v2374 = vunpack.c.l.b16 %v2254
  %v2375 = vunpack.c.l.b16 %v2255
  %v2376 = vunpack.c.l.b16 %v2256
  %v2377 = vunpack.c.l.b16 %v2257
  %v2378 = vunpack.c.l.b16 %v2258
  %v2379 = vunpack.c.l.b16 %v2259
  %v2380 = vunpack.c.l.b16 %v2260
  %v2381 = vunpack.c.l.b16 %v2261
  %v2382 = vunpack.c.l.b16 %v2262
  %v2383 = vunpack.c.l.b16 %v2263
  %v2384 = vunpack.c.l.b16 %v2264
  %v2385 = vunpack.c.l.b16 %v2265
  %v2386 = vunpack.c.l.b16 %v2266
  %v2387 = vunpack.c.l.b16 %v2267
  %v2388 = vunpack.c.l.b16 %v2268
  %v2389 = vunpack.c.l.b16 %v2269
  %v2390 = vunpack.c.l.b16 %v2270
  %v2391 = vunpack.c.l.b16 %v2271
  %v2392 = vunpack.c.l.b16 %v2272
  %v2393 = vunpack.c.l.b16 %v2273
  %v2394 = vunpack.c.l.b16 %v2274
  %v2395 = vunpack.c.l.b16 %v2275
  %v2396 = vunpack.c.l.b16 %v2276
  %v2397 = vpack.c.b16 %v2338, %v2337
  %v2398 = vpack.c.b16 %v2340, %v2339
  %v2399 = vpack.c.b16 %v2342, %v2341
  %v2400 = vpack.c.b16 %v2344, %v2343
  %v2401 = vpack.c.b16 %v2346, %v2345
  %v2402 = vpack.c.b16 %v2348, %v2347
  %v2403 = vpack.c.b16 %v2350, %v2349
  %v2404 = vpack.c.b16 %v2352, %v2351
  %v2405 = vpack.c.b16 %v2354, %v2353
  %v2406 = vpack.c.b16 %v2356, %v2355
  %v2407 = vpack.c.b16 %v2358, %v2357
  %v2408 = vpack.c.b16 %v2360, %v2359
  %v2409 = vpack.c.b16 %v2362, %v2361
  %v2410 = vpack.c.b16 %v2364, %v2363
  %v2411 = vpack.c.b16 %v2366, %v2365
  %v2412 = vpack.c.b16 %v2368, %v2367
  %v2413 = vpack.c.b16 %v2370, %v2369
  %v2414 = vpack.c.b16 %v2372, %v2371
  %v2415 = vpack.c.b16 %v2374, %v2373
  %v2416 = vpack.c.b16 %v2376, %v2375
  %v2417 = vpack.c.b16 %v2378, %v2377
  %v2418 = vpack.c.b16 %v2380, %v2379
  %v2419 = vpack.c.b16 %v2382, %v2381
  %v2420 = vpack.c.b16 %v2384, %v2383
  %v2421 = vpack.c.b16 %v2386, %v2385
  %v2422 = vpack.c.b16 %v2388, %v2387
  %v2423 = vpack.c.b16 %v2390, %v2389
  %v2424 = vpack.c.b16 %v2392, %v2391
  %v2425 = vpack.c.b16 %v2394, %v2393
  %v2426 = vpack.c.b16 %v2396, %v2395
  %vm2457 = vcmask 785408
  %v2459 = vsel %vm2457, %v2188, 0
  %v2462 = vsel %vm2457, %v2192, 0
  %v2465 = vsel %vm2457, %v2196, 0
  %v2468 = vsel %vm2457, %v2200, 0
  %v2471 = vsel %vm2457, %v2204, 0
  %v2474 = vsel %vm2457, %v2208, 0
  %v2477 = vsel %vm2457, %v2212, 0
  %v2480 = vsel %vm2457, %v2216, 0
  %2482 = vmatprep.subr.bf16.mxu0 0
  %2483 = vmatpush1.bf16.msra.mxu0 %v2404
  %2484 = vmatprep.subr.bf16.mxu0 0
  %2485 = vmatpush1.bf16.msra.mxu0 %v2403
  %2486 = vmatprep.subr.bf16.mxu0 0
  %2487 = vmatpush1.bf16.msra.mxu0 %v2402
  %2488 = vmatprep.subr.bf16.mxu0 0
  %2489 = vmatpush1.bf16.msra.mxu0 %v2401
  %2490 = vmatprep.subr.bf16.mxu0 0
  %2491 = vmatpush1.bf16.msra.mxu0 %v2400
  %2492 = vmatprep.subr.bf16.mxu0 0
  %2493 = vmatpush1.bf16.msra.mxu0 %v2399
  %2494 = vmatprep.subr.bf16.mxu0 0
  %2495 = vmatpush1.bf16.msra.mxu0 %v2398
  %2496 = vmatprep.subr.bf16.mxu0 0
  %2497 = vmatpush1.bf16.msra.mxu0 %v2397
  %2498 = vmatprep.subr.bf16.mxu0 0
  %2499 = vmatpush2.bf16.msra.mxu0 %v2412
  %2500 = vmatprep.subr.bf16.mxu0 0
  %2501 = vmatpush2.bf16.msra.mxu0 %v2411
  %2502 = vmatprep.subr.bf16.mxu0 0
  %2503 = vmatpush2.bf16.msra.mxu0 %v2410
  %2504 = vmatprep.subr.bf16.mxu0 0
  %2505 = vmatpush2.bf16.msra.mxu0 %v2409
  %2506 = vmatprep.subr.bf16.mxu0 0
  %2507 = vmatpush2.bf16.msra.mxu0 %v2408
  %2508 = vmatprep.subr.bf16.mxu0 0
  %2509 = vmatpush2.bf16.msra.mxu0 %v2407
  %2510 = vmatprep.subr.bf16.mxu0 0
  %2511 = vmatpush2.bf16.msra.mxu0 %v2406
  %2512 = vmatprep.subr.bf16.mxu0 0
  %2513 = vmatpush2.bf16.msra.mxu0 %v2405
  %2514 = vmatprep.mubr.bf16.mxu0 %v2186
  %2515 = vmatmul.mubr.bf16.gmra.mxu0 %v2185
  %v2516 = vpop.f32.mrf.mxu0
  %v2517 = vadd.f32 0.0, %v2516
  %v2518 = vpop.f32.mrf.mxu0
  %v2519 = vpop.f32.mrf.mxu0
  %v2520 = vadd.f32 0.0, %v2519
  %v2521 = vpop.f32.mrf.mxu0
  %2522 = vmatprep.mubr.bf16.mxu0 %v2190
  %2523 = vmatmul.mubr.bf16.gmra.mxu0 %v2189
  %v2524 = vpop.f32.mrf.mxu0
  %v2525 = vadd.f32 0.0, %v2524
  %v2526 = vpop.f32.mrf.mxu0
  %v2527 = vpop.f32.mrf.mxu0
  %v2528 = vadd.f32 0.0, %v2527
  %v2529 = vpop.f32.mrf.mxu0
  %2530 = vmatprep.mubr.bf16.mxu0 %v2194
  %2531 = vmatmul.mubr.bf16.gmra.mxu0 %v2193
  %v2532 = vpop.f32.mrf.mxu0
  %v2533 = vadd.f32 0.0, %v2532
  %v2534 = vpop.f32.mrf.mxu0
  %v2535 = vpop.f32.mrf.mxu0
  %v2536 = vadd.f32 0.0, %v2535
  %v2537 = vpop.f32.mrf.mxu0
  %2538 = vmatprep.mubr.bf16.mxu0 %v2198
  %2539 = vmatmul.mubr.bf16.gmra.mxu0 %v2197
  %v2540 = vpop.f32.mrf.mxu0
  %v2541 = vadd.f32 0.0, %v2540
  %v2542 = vpop.f32.mrf.mxu0
  %v2543 = vpop.f32.mrf.mxu0
  %v2544 = vadd.f32 0.0, %v2543
  %v2545 = vpop.f32.mrf.mxu0
  %2546 = vmatprep.mubr.bf16.mxu0 %v2202
  %2547 = vmatmul.mubr.bf16.gmra.mxu0 %v2201
  %v2548 = vpop.f32.mrf.mxu0
  %v2549 = vadd.f32 0.0, %v2548
  %v2550 = vpop.f32.mrf.mxu0
  %v2551 = vpop.f32.mrf.mxu0
  %v2552 = vadd.f32 0.0, %v2551
  %v2553 = vpop.f32.mrf.mxu0
  %2554 = vmatprep.mubr.bf16.mxu0 %v2206
  %2555 = vmatmul.mubr.bf16.gmra.mxu0 %v2205
  %v2556 = vpop.f32.mrf.mxu0
  %v2557 = vadd.f32 0.0, %v2556
  %v2558 = vpop.f32.mrf.mxu0
  %v2559 = vpop.f32.mrf.mxu0
  %v2560 = vadd.f32 0.0, %v2559
  %v2561 = vpop.f32.mrf.mxu0
  %2562 = vmatprep.mubr.bf16.mxu0 %v2210
  %2563 = vmatmul.mubr.bf16.gmra.mxu0 %v2209
  %v2564 = vpop.f32.mrf.mxu0
  %v2565 = vadd.f32 0.0, %v2564
  %v2566 = vpop.f32.mrf.mxu0
  %v2567 = vpop.f32.mrf.mxu0
  %v2568 = vadd.f32 0.0, %v2567
  %v2569 = vpop.f32.mrf.mxu0
  %2570 = vmatprep.mubr.bf16.mxu0 %v2214
  %2571 = vmatmul.mubr.bf16.gmra.mxu0 %v2213
  %v2572 = vpop.f32.mrf.mxu0
  %v2573 = vadd.f32 0.0, %v2572
  %v2574 = vpop.f32.mrf.mxu0
  %v2575 = vpop.f32.mrf.mxu0
  %v2576 = vadd.f32 0.0, %v2575
  %v2577 = vpop.f32.mrf.mxu0
  %2578 = vdwg.mxu0
  %2579 = vmatprep.subr.bf16.mxu0 0
  %2580 = vmatpush1.bf16.msra.mxu0 %v2420
  %2581 = vmatprep.subr.bf16.mxu0 0
  %2582 = vmatpush1.bf16.msra.mxu0 %v2419
  %2583 = vmatprep.subr.bf16.mxu0 0
  %2584 = vmatpush1.bf16.msra.mxu0 %v2418
  %2585 = vmatprep.subr.bf16.mxu0 0
  %2586 = vmatpush1.bf16.msra.mxu0 %v2417
  %2587 = vmatprep.subr.bf16.mxu0 0
  %2588 = vmatpush1.bf16.msra.mxu0 %v2416
  %2589 = vmatprep.subr.bf16.mxu0 0
  %2590 = vmatpush1.bf16.msra.mxu0 %v2415
  %2591 = vmatprep.subr.bf16.mxu0 0
  %2592 = vmatpush1.bf16.msra.mxu0 %v2414
  %2593 = vmatprep.subr.bf16.mxu0 0
  %2594 = vmatpush1.bf16.msra.mxu0 %v2413
  %2595 = vmatprep.subr.bf16.mxu0 0
  %2596 = vmatpush2.bf16.msra.mxu0 0
  %2597 = vmatprep.subr.bf16.mxu0 0
  %2598 = vmatpush2.bf16.msra.mxu0 0
  %2599 = vmatprep.subr.bf16.mxu0 0
  %2600 = vmatpush2.bf16.msra.mxu0 %v2426
  %2601 = vmatprep.subr.bf16.mxu0 0
  %2602 = vmatpush2.bf16.msra.mxu0 %v2425
  %2603 = vmatprep.subr.bf16.mxu0 0
  %2604 = vmatpush2.bf16.msra.mxu0 %v2424
  %2605 = vmatprep.subr.bf16.mxu0 0
  %2606 = vmatpush2.bf16.msra.mxu0 %v2423
  %2607 = vmatprep.subr.bf16.mxu0 0
  %2608 = vmatpush2.bf16.msra.mxu0 %v2422
  %2609 = vmatprep.subr.bf16.mxu0 0
  %2610 = vmatpush2.bf16.msra.mxu0 %v2421
  %2611 = vmatprep.mubr.bf16.mxu0 %v2459
  %2612 = vmatmul.mubr.bf16.gmra.mxu0 %v2187
  %v2613 = vpop.f32.mrf.mxu0
  %v2614 = vadd.f32 %v2517, %v2613
  %v2615 = vpop.f32.mrf.mxu0
  %v2616 = vpop.f32.mrf.mxu0
  %v2617 = vadd.f32 %v2520, %v2616
  %v2618 = vpop.f32.mrf.mxu0
  %2619 = vmatprep.mubr.bf16.mxu0 %v2462
  %2620 = vmatmul.mubr.bf16.gmra.mxu0 %v2191
  %v2621 = vpop.f32.mrf.mxu0
  %v2622 = vadd.f32 %v2525, %v2621
  %v2623 = vpop.f32.mrf.mxu0
  %v2624 = vpop.f32.mrf.mxu0
  %v2625 = vadd.f32 %v2528, %v2624
  %v2626 = vpop.f32.mrf.mxu0
  %2627 = vmatprep.mubr.bf16.mxu0 %v2465
  %2628 = vmatmul.mubr.bf16.gmra.mxu0 %v2195
  %v2629 = vpop.f32.mrf.mxu0
  %v2630 = vadd.f32 %v2533, %v2629
  %v2631 = vpop.f32.mrf.mxu0
  %v2632 = vpop.f32.mrf.mxu0
  %v2633 = vadd.f32 %v2536, %v2632
  %v2634 = vpop.f32.mrf.mxu0
  %2635 = vmatprep.mubr.bf16.mxu0 %v2468
  %2636 = vmatmul.mubr.bf16.gmra.mxu0 %v2199
  %v2637 = vpop.f32.mrf.mxu0
  %v2638 = vadd.f32 %v2541, %v2637
  %v2639 = vpop.f32.mrf.mxu0
  %v2640 = vpop.f32.mrf.mxu0
  %v2641 = vadd.f32 %v2544, %v2640
  %v2642 = vpop.f32.mrf.mxu0
  %2643 = vmatprep.mubr.bf16.mxu0 %v2471
  %2644 = vmatmul.mubr.bf16.gmra.mxu0 %v2203
  %v2645 = vpop.f32.mrf.mxu0
  %v2646 = vadd.f32 %v2549, %v2645
  %v2647 = vpop.f32.mrf.mxu0
  %v2648 = vpop.f32.mrf.mxu0
  %v2649 = vadd.f32 %v2552, %v2648
  %v2650 = vpop.f32.mrf.mxu0
  %2651 = vmatprep.mubr.bf16.mxu0 %v2474
  %2652 = vmatmul.mubr.bf16.gmra.mxu0 %v2207
  %v2653 = vpop.f32.mrf.mxu0
  %v2654 = vadd.f32 %v2557, %v2653
  %v2655 = vpop.f32.mrf.mxu0
  %v2656 = vpop.f32.mrf.mxu0
  %v2657 = vadd.f32 %v2560, %v2656
  %v2658 = vpop.f32.mrf.mxu0
  %2659 = vmatprep.mubr.bf16.mxu0 %v2477
  %2660 = vmatmul.mubr.bf16.gmra.mxu0 %v2211
  %v2661 = vpop.f32.mrf.mxu0
  %v2662 = vadd.f32 %v2565, %v2661
  %v2663 = vpop.f32.mrf.mxu0
  %v2664 = vpop.f32.mrf.mxu0
  %v2665 = vadd.f32 %v2568, %v2664
  %v2666 = vpop.f32.mrf.mxu0
  %2667 = vmatprep.mubr.bf16.mxu0 %v2480
  %2668 = vmatmul.mubr.bf16.gmra.mxu0 %v2215
  %v2669 = vpop.f32.mrf.mxu0
  %v2670 = vadd.f32 %v2573, %v2669
  %v2671 = vpop.f32.mrf.mxu0
  %v2672 = vpop.f32.mrf.mxu0
  %v2673 = vadd.f32 %v2576, %v2672
  %v2674 = vpop.f32.mrf.mxu0
  %2675 = vdwg.mxu0
  %vm2676 = vcmask 1044480
  %v2677 = vsel %vm2676, %v2614, 0.0
  %v2678 = vrot.slane %v2677, 4
  %v2679 = vadd.f32 %v2677, %v2678
  %v2680 = vrot.slane %v2679, 2
  %v2681 = vadd.f32 %v2679, %v2680
  %v2682 = vrot.slane %v2681, 1
  %v2683 = vadd.f32 %v2681, %v2682
  %v2684 = vsel %vm2676, %v2622, 0.0
  %v2685 = vrot.slane %v2684, 4
  %v2686 = vadd.f32 %v2684, %v2685
  %v2687 = vrot.slane %v2686, 2
  %v2688 = vadd.f32 %v2686, %v2687
  %v2689 = vrot.slane %v2688, 1
  %v2690 = vadd.f32 %v2688, %v2689
  %v2691 = vsel %vm2676, %v2630, 0.0
  %v2692 = vrot.slane %v2691, 4
  %v2693 = vadd.f32 %v2691, %v2692
  %v2694 = vrot.slane %v2693, 2
  %v2695 = vadd.f32 %v2693, %v2694
  %v2696 = vrot.slane %v2695, 1
  %v2697 = vadd.f32 %v2695, %v2696
  %v2698 = vsel %vm2676, %v2638, 0.0
  %v2699 = vrot.slane %v2698, 4
  %v2700 = vadd.f32 %v2698, %v2699
  %v2701 = vrot.slane %v2700, 2
  %v2702 = vadd.f32 %v2700, %v2701
  %v2703 = vrot.slane %v2702, 1
  %v2704 = vadd.f32 %v2702, %v2703
  %v2705 = vsel %vm2676, %v2646, 0.0
  %v2706 = vrot.slane %v2705, 4
  %v2707 = vadd.f32 %v2705, %v2706
  %v2708 = vrot.slane %v2707, 2
  %v2709 = vadd.f32 %v2707, %v2708
  %v2710 = vrot.slane %v2709, 1
  %v2711 = vadd.f32 %v2709, %v2710
  %v2712 = vsel %vm2676, %v2654, 0.0
  %v2713 = vrot.slane %v2712, 4
  %v2714 = vadd.f32 %v2712, %v2713
  %v2715 = vrot.slane %v2714, 2
  %v2716 = vadd.f32 %v2714, %v2715
  %v2717 = vrot.slane %v2716, 1
  %v2718 = vadd.f32 %v2716, %v2717
  %v2719 = vsel %vm2676, %v2662, 0.0
  %v2720 = vrot.slane %v2719, 4
  %v2721 = vadd.f32 %v2719, %v2720
  %v2722 = vrot.slane %v2721, 2
  %v2723 = vadd.f32 %v2721, %v2722
  %v2724 = vrot.slane %v2723, 1
  %v2725 = vadd.f32 %v2723, %v2724
  %v2726 = vsel %vm2676, %v2670, 0.0
  %v2727 = vrot.slane %v2726, 4
  %v2728 = vadd.f32 %v2726, %v2727
  %v2729 = vrot.slane %v2728, 2
  %v2730 = vadd.f32 %v2728, %v2729
  %v2731 = vrot.slane %v2730, 1
  %v2732 = vadd.f32 %v2730, %v2731
  %v2733 = vpack.c.bf16 %v2683, %v2683
  %v2734 = vpack.c.bf16 %v2690, %v2690
  %v2735 = vpack.c.bf16 %v2697, %v2697
  %v2736 = vpack.c.bf16 %v2704, %v2704
  %v2737 = vpack.c.bf16 %v2711, %v2711
  %v2738 = vpack.c.bf16 %v2718, %v2718
  %v2739 = vpack.c.bf16 %v2725, %v2725
  %v2740 = vpack.c.bf16 %v2732, %v2732
  %v2741 = vld [vmem:[%s4] sm:$0xf]
  %v2742 = vld [vmem:[%s4 + $0x4] sm:$0xf]
  %v2743 = vld [vmem:[%s4 + $0x8] sm:$0xf]
  %v2744 = vld [vmem:[%s4 + $0xc] sm:$0xf]
  %v2745 = vld [vmem:[%s4 + $0x10] sm:$0xf]
  %v2746 = vld [vmem:[%s4 + $0x14] sm:$0xf]
  %v2747 = vld [vmem:[%s4 + $0x18] sm:$0xf]
  %v2748 = vld [vmem:[%s4 + $0x1c] sm:$0xf]
  %v2749 = vld [vmem:[%s4 + $0x20] sm:$0xf]
  %v2750 = vld [vmem:[%s4 + $0x24] sm:$0xf]
  %v2751 = vld [vmem:[%s4 + $0x28] sm:$0xf]
  %v2752 = vld [vmem:[%s4 + $0x2c] sm:$0xf]
  %v2753 = vld [vmem:[%s4 + $0x30] sm:$0xf]
  %v2754 = vld [vmem:[%s4 + $0x34] sm:$0xf]
  %v2755 = vld [vmem:[%s4 + $0x38] sm:$0xf]
  %v2756 = vld [vmem:[%s4 + $0x3c] sm:$0xf]
  %vm2773 = vcmask 1042432
  %v2774 = vrot.slane %v2614, 5
  %v2775 = vrot.slane %v2617, 5
  %v2776 = vsel %vm2773, %v2774, %v2775
  %v2777 = vrot.slane %v2622, 5
  %v2778 = vrot.slane %v2625, 5
  %v2779 = vsel %vm2773, %v2777, %v2778
  %v2780 = vrot.slane %v2630, 5
  %v2781 = vrot.slane %v2633, 5
  %v2782 = vsel %vm2773, %v2780, %v2781
  %v2783 = vrot.slane %v2638, 5
  %v2784 = vrot.slane %v2641, 5
  %v2785 = vsel %vm2773, %v2783, %v2784
  %v2786 = vrot.slane %v2646, 5
  %v2787 = vrot.slane %v2649, 5
  %v2788 = vsel %vm2773, %v2786, %v2787
  %v2789 = vrot.slane %v2654, 5
  %v2790 = vrot.slane %v2657, 5
  %v2791 = vsel %vm2773, %v2789, %v2790
  %v2792 = vrot.slane %v2662, 5
  %v2793 = vrot.slane %v2665, 5
  %v2794 = vsel %vm2773, %v2792, %v2793
  %v2795 = vrot.slane %v2670, 5
  %v2796 = vrot.slane %v2673, 5
  %v2797 = vsel %vm2773, %v2795, %v2796
  %v2806 = vsel %vm2676, %v2776, 0.0
  %v2807 = vrot.slane %v2806, 4
  %v2808 = vadd.f32 %v2806, %v2807
  %v2809 = vrot.slane %v2808, 2
  %v2810 = vadd.f32 %v2808, %v2809
  %v2811 = vrot.slane %v2810, 1
  %v2812 = vadd.f32 %v2810, %v2811
  %v2813 = vsel %vm2676, %v2779, 0.0
  %v2814 = vrot.slane %v2813, 4
  %v2815 = vadd.f32 %v2813, %v2814
  %v2816 = vrot.slane %v2815, 2
  %v2817 = vadd.f32 %v2815, %v2816
  %v2818 = vrot.slane %v2817, 1
  %v2819 = vadd.f32 %v2817, %v2818
  %v2820 = vsel %vm2676, %v2782, 0.0
  %v2821 = vrot.slane %v2820, 4
  %v2822 = vadd.f32 %v2820, %v2821
  %v2823 = vrot.slane %v2822, 2
  %v2824 = vadd.f32 %v2822, %v2823
  %v2825 = vrot.slane %v2824, 1
  %v2826 = vadd.f32 %v2824, %v2825
  %v2827 = vsel %vm2676, %v2785, 0.0
  %v2828 = vrot.slane %v2827, 4
  %v2829 = vadd.f32 %v2827, %v2828
  %v2830 = vrot.slane %v2829, 2
  %v2831 = vadd.f32 %v2829, %v2830
  %v2832 = vrot.slane %v2831, 1
  %v2833 = vadd.f32 %v2831, %v2832
  %v2834 = vsel %vm2676, %v2788, 0.0
  %v2835 = vrot.slane %v2834, 4
  %v2836 = vadd.f32 %v2834, %v2835
  %v2837 = vrot.slane %v2836, 2
  %v2838 = vadd.f32 %v2836, %v2837
  %v2839 = vrot.slane %v2838, 1
  %v2840 = vadd.f32 %v2838, %v2839
  %v2841 = vsel %vm2676, %v2791, 0.0
  %v2842 = vrot.slane %v2841, 4
  %v2843 = vadd.f32 %v2841, %v2842
  %v2844 = vrot.slane %v2843, 2
  %v2845 = vadd.f32 %v2843, %v2844
  %v2846 = vrot.slane %v2845, 1
  %v2847 = vadd.f32 %v2845, %v2846
  %v2848 = vsel %vm2676, %v2794, 0.0
  %v2849 = vrot.slane %v2848, 4
  %v2850 = vadd.f32 %v2848, %v2849
  %v2851 = vrot.slane %v2850, 2
  %v2852 = vadd.f32 %v2850, %v2851
  %v2853 = vrot.slane %v2852, 1
  %v2854 = vadd.f32 %v2852, %v2853
  %v2855 = vsel %vm2676, %v2797, 0.0
  %v2856 = vrot.slane %v2855, 4
  %v2857 = vadd.f32 %v2855, %v2856
  %v2858 = vrot.slane %v2857, 2
  %v2859 = vadd.f32 %v2857, %v2858
  %v2860 = vrot.slane %v2859, 1
  %v2861 = vadd.f32 %v2859, %v2860
  %v2862 = vpack.c.bf16 %v2812, %v2812
  %v2863 = vpack.c.bf16 %v2819, %v2819
  %v2864 = vpack.c.bf16 %v2826, %v2826
  %v2865 = vpack.c.bf16 %v2833, %v2833
  %v2866 = vpack.c.bf16 %v2840, %v2840
  %v2867 = vpack.c.bf16 %v2847, %v2847
  %v2868 = vpack.c.bf16 %v2854, %v2854
  %v2869 = vpack.c.bf16 %v2861, %v2861
  %s2870 = scalar_lea.vmem %s4, 64
  %v2871 = vld [vmem:[%s2870] sm:$0xf]
  %v2872 = vld [vmem:[%s2870 + $0x4] sm:$0xf]
  %v2873 = vld [vmem:[%s2870 + $0x8] sm:$0xf]
  %v2874 = vld [vmem:[%s2870 + $0xc] sm:$0xf]
  %v2875 = vld [vmem:[%s2870 + $0x10] sm:$0xf]
  %v2876 = vld [vmem:[%s2870 + $0x14] sm:$0xf]
  %v2877 = vld [vmem:[%s2870 + $0x18] sm:$0xf]
  %v2878 = vld [vmem:[%s2870 + $0x1c] sm:$0xf]
  %v2879 = vld [vmem:[%s2870 + $0x20] sm:$0xf]
  %v2880 = vld [vmem:[%s2870 + $0x24] sm:$0xf]
  %v2881 = vld [vmem:[%s2870 + $0x28] sm:$0xf]
  %v2882 = vld [vmem:[%s2870 + $0x2c] sm:$0xf]
  %v2883 = vld [vmem:[%s2870 + $0x30] sm:$0xf]
  %v2884 = vld [vmem:[%s2870 + $0x34] sm:$0xf]
  %v2885 = vld [vmem:[%s2870 + $0x38] sm:$0xf]
  %v2886 = vld [vmem:[%s2870 + $0x3c] sm:$0xf]
  %v2895 = vunpack.c.l.b16 %v2862
  %v2896 = vunpack.c.l.b16 %v2863
  %v2897 = vunpack.c.l.b16 %v2864
  %v2898 = vunpack.c.l.b16 %v2865
  %v2899 = vunpack.c.l.b16 %v2866
  %v2900 = vunpack.c.l.b16 %v2867
  %v2901 = vunpack.c.l.b16 %v2868
  %v2902 = vunpack.c.l.b16 %v2869
  %vm2903 = vcmask 1041409
  %v2904 = vsel %vm2903, %v2896, %v2895
  %vm2905 = vcmask 1042434
  %v2906 = vsel %vm2905, %v2897, %v2904
  %vm2907 = vcmask 1043459
  %v2908 = vsel %vm2907, %v2898, %v2906
  %vm2909 = vcmask 1044484
  %v2910 = vsel %vm2909, %v2899, %v2908
  %vm2911 = vcmask 1045509
  %v2912 = vsel %vm2911, %v2900, %v2910
  %vm2913 = vcmask 1046534
  %v2914 = vsel %vm2913, %v2901, %v2912
  %vm2915 = vcmask 1047559
  %v2916 = vsel %vm2915, %v2902, %v2914
  %v2917 = vpack.c.b16 %v2916, %v2916
  %v2935 = vunpack.c.l.b16 %v2871
  %v2936 = vunpack.c.l.b16 %v2872
  %v2937 = vunpack.c.l.b16 %v2873
  %v2938 = vunpack.c.l.b16 %v2874
  %v2939 = vunpack.c.l.b16 %v2875
  %v2940 = vunpack.c.l.b16 %v2876
  %v2941 = vunpack.c.l.b16 %v2877
  %v2942 = vunpack.c.l.b16 %v2878
  %v2943 = vunpack.c.l.b16 %v2879
  %v2944 = vunpack.c.l.b16 %v2880
  %v2945 = vunpack.c.l.b16 %v2881
  %v2946 = vunpack.c.l.b16 %v2882
  %v2947 = vunpack.c.l.b16 %v2883
  %v2948 = vunpack.c.l.b16 %v2884
  %v2949 = vunpack.c.l.b16 %v2885
  %v2950 = vunpack.c.l.b16 %v2886
  %v2951 = vpack.c.b16 %v2936, %v2935
  %v2952 = vpack.c.b16 %v2938, %v2937
  %v2953 = vpack.c.b16 %v2940, %v2939
  %v2954 = vpack.c.b16 %v2942, %v2941
  %v2955 = vpack.c.b16 %v2944, %v2943
  %v2956 = vpack.c.b16 %v2946, %v2945
  %v2957 = vpack.c.b16 %v2948, %v2947
  %v2958 = vpack.c.b16 %v2950, %v2949
  %2967 = vmatprep.subr.bf16.mxu0 0
  %2968 = vmatpush1.bf16.msra.mxu0 %v2958
  %2969 = vmatprep.subr.bf16.mxu0 0
  %2970 = vmatpush1.bf16.msra.mxu0 %v2957
  %2971 = vmatprep.subr.bf16.mxu0 0
  %2972 = vmatpush1.bf16.msra.mxu0 %v2956
  %2973 = vmatprep.subr.bf16.mxu0 0
  %2974 = vmatpush1.bf16.msra.mxu0 %v2955
  %2975 = vmatprep.subr.bf16.mxu0 0
  %2976 = vmatpush1.bf16.msra.mxu0 %v2954
  %2977 = vmatprep.subr.bf16.mxu0 0
  %2978 = vmatpush1.bf16.msra.mxu0 %v2953
  %2979 = vmatprep.subr.bf16.mxu0 0
  %2980 = vmatpush1.bf16.msra.mxu0 %v2952
  %2981 = vmatprep.subr.bf16.mxu0 0
  %2982 = vmatpush1.bf16.msra.mxu0 %v2951
  %2983 = vmatprep.subr.bf16.mxu0 0
  %2984 = vmatpush2.bf16.msra.mxu0 0
  %2985 = vmatprep.subr.bf16.mxu0 0
  %2986 = vmatpush2.bf16.msra.mxu0 0
  %2987 = vmatprep.subr.bf16.mxu0 0
  %2988 = vmatpush2.bf16.msra.mxu0 0
  %2989 = vmatprep.subr.bf16.mxu0 0
  %2990 = vmatpush2.bf16.msra.mxu0 0
  %2991 = vmatprep.subr.bf16.mxu0 0
  %2992 = vmatpush2.bf16.msra.mxu0 0
  %2993 = vmatprep.subr.bf16.mxu0 0
  %2994 = vmatpush2.bf16.msra.mxu0 0
  %2995 = vmatprep.subr.bf16.mxu0 0
  %2996 = vmatpush2.bf16.msra.mxu0 0
  %2997 = vmatprep.subr.bf16.mxu0 0
  %2998 = vmatpush2.bf16.msra.mxu0 0
  %2999 = vmatprep.mubr.bf16.mxu0 0
  %3000 = vmatmul.mubr.bf16.gmra.mxu0 %v2917
  %v3001 = vpop.f32.mrf.mxu0
  %v3002 = vadd.f32 0.0, %v3001
  %v3003 = vpop.f32.mrf.mxu0
  %v3004 = vpop.f32.mrf.mxu0
  %v3005 = vpop.f32.mrf.mxu0
  %3006 = vdwg.mxu0
  %v3015 = vunpack.c.l.b16 %v2733
  %v3016 = vunpack.c.l.b16 %v2734
  %v3017 = vunpack.c.l.b16 %v2735
  %v3018 = vunpack.c.l.b16 %v2736
  %v3019 = vunpack.c.l.b16 %v2737
  %v3020 = vunpack.c.l.b16 %v2738
  %v3021 = vunpack.c.l.b16 %v2739
  %v3022 = vunpack.c.l.b16 %v2740
  %v3023 = vsel %vm2903, %v3016, %v3015
  %v3024 = vsel %vm2905, %v3017, %v3023
  %v3025 = vsel %vm2907, %v3018, %v3024
  %v3026 = vsel %vm2909, %v3019, %v3025
  %v3027 = vsel %vm2911, %v3020, %v3026
  %v3028 = vsel %vm2913, %v3021, %v3027
  %v3029 = vsel %vm2915, %v3022, %v3028
  %v3030 = vpack.c.b16 %v3029, %v3029
  %v3048 = vunpack.c.l.b16 %v2741
  %v3049 = vunpack.c.l.b16 %v2742
  %v3050 = vunpack.c.l.b16 %v2743
  %v3051 = vunpack.c.l.b16 %v2744
  %v3052 = vunpack.c.l.b16 %v2745
  %v3053 = vunpack.c.l.b16 %v2746
  %v3054 = vunpack.c.l.b16 %v2747
  %v3055 = vunpack.c.l.b16 %v2748
  %v3056 = vunpack.c.l.b16 %v2749
  %v3057 = vunpack.c.l.b16 %v2750
  %v3058 = vunpack.c.l.b16 %v2751
  %v3059 = vunpack.c.l.b16 %v2752
  %v3060 = vunpack.c.l.b16 %v2753
  %v3061 = vunpack.c.l.b16 %v2754
  %v3062 = vunpack.c.l.b16 %v2755
  %v3063 = vunpack.c.l.b16 %v2756
  %v3064 = vpack.c.b16 %v3049, %v3048
  %v3065 = vpack.c.b16 %v3051, %v3050
  %v3066 = vpack.c.b16 %v3053, %v3052
  %v3067 = vpack.c.b16 %v3055, %v3054
  %v3068 = vpack.c.b16 %v3057, %v3056
  %v3069 = vpack.c.b16 %v3059, %v3058
  %v3070 = vpack.c.b16 %v3061, %v3060
  %v3071 = vpack.c.b16 %v3063, %v3062
  %3080 = vmatprep.subr.bf16.mxu0 0
  %3081 = vmatpush1.bf16.msra.mxu0 %v3071
  %3082 = vmatprep.subr.bf16.mxu0 0
  %3083 = vmatpush1.bf16.msra.mxu0 %v3070
  %3084 = vmatprep.subr.bf16.mxu0 0
  %3085 = vmatpush1.bf16.msra.mxu0 %v3069
  %3086 = vmatprep.subr.bf16.mxu0 0
  %3087 = vmatpush1.bf16.msra.mxu0 %v3068
  %3088 = vmatprep.subr.bf16.mxu0 0
  %3089 = vmatpush1.bf16.msra.mxu0 %v3067
  %3090 = vmatprep.subr.bf16.mxu0 0
  %3091 = vmatpush1.bf16.msra.mxu0 %v3066
  %3092 = vmatprep.subr.bf16.mxu0 0
  %3093 = vmatpush1.bf16.msra.mxu0 %v3065
  %3094 = vmatprep.subr.bf16.mxu0 0
  %3095 = vmatpush1.bf16.msra.mxu0 %v3064
  %3096 = vmatprep.subr.bf16.mxu0 0
  %3097 = vmatpush2.bf16.msra.mxu0 0
  %3098 = vmatprep.subr.bf16.mxu0 0
  %3099 = vmatpush2.bf16.msra.mxu0 0
  %3100 = vmatprep.subr.bf16.mxu0 0
  %3101 = vmatpush2.bf16.msra.mxu0 0
  %3102 = vmatprep.subr.bf16.mxu0 0
  %3103 = vmatpush2.bf16.msra.mxu0 0
  %3104 = vmatprep.subr.bf16.mxu0 0
  %3105 = vmatpush2.bf16.msra.mxu0 0
  %3106 = vmatprep.subr.bf16.mxu0 0
  %3107 = vmatpush2.bf16.msra.mxu0 0
  %3108 = vmatprep.subr.bf16.mxu0 0
  %3109 = vmatpush2.bf16.msra.mxu0 0
  %3110 = vmatprep.subr.bf16.mxu0 0
  %3111 = vmatpush2.bf16.msra.mxu0 0
  %3112 = vmatprep.mubr.bf16.mxu0 0
  %3113 = vmatmul.mubr.bf16.gmra.mxu0 %v3030
  %v3114 = vpop.f32.mrf.mxu0
  %v3115 = vadd.f32 %v3002, %v3114
  %v3116 = vpop.f32.mrf.mxu0
  %v3117 = vpop.f32.mrf.mxu0
  %v3118 = vpop.f32.mrf.mxu0
  %3119 = vdwg.mxu0
  %v3120 = vrot.slane %v2617, 2
  %v3121 = vrot.slane %v2625, 2
  %v3122 = vrot.slane %v2633, 2
  %v3123 = vrot.slane %v2641, 2
  %v3124 = vrot.slane %v2649, 2
  %v3125 = vrot.slane %v2657, 2
  %v3126 = vrot.slane %v2665, 2
  %v3127 = vrot.slane %v2673, 2
  %v3136 = vsel %vm2676, %v3120, 0.0
  %v3137 = vrot.slane %v3136, 4
  %v3138 = vadd.f32 %v3136, %v3137
  %v3139 = vrot.slane %v3138, 2
  %v3140 = vadd.f32 %v3138, %v3139
  %v3141 = vrot.slane %v3140, 1
  %v3142 = vadd.f32 %v3140, %v3141
  %v3143 = vsel %vm2676, %v3121, 0.0
  %v3144 = vrot.slane %v3143, 4
  %v3145 = vadd.f32 %v3143, %v3144
  %v3146 = vrot.slane %v3145, 2
  %v3147 = vadd.f32 %v3145, %v3146
  %v3148 = vrot.slane %v3147, 1
  %v3149 = vadd.f32 %v3147, %v3148
  %v3150 = vsel %vm2676, %v3122, 0.0
  %v3151 = vrot.slane %v3150, 4
  %v3152 = vadd.f32 %v3150, %v3151
  %v3153 = vrot.slane %v3152, 2
  %v3154 = vadd.f32 %v3152, %v3153
  %v3155 = vrot.slane %v3154, 1
  %v3156 = vadd.f32 %v3154, %v3155
  %v3157 = vsel %vm2676, %v3123, 0.0
  %v3158 = vrot.slane %v3157, 4
  %v3159 = vadd.f32 %v3157, %v3158
  %v3160 = vrot.slane %v3159, 2
  %v3161 = vadd.f32 %v3159, %v3160
  %v3162 = vrot.slane %v3161, 1
  %v3163 = vadd.f32 %v3161, %v3162
  %v3164 = vsel %vm2676, %v3124, 0.0
  %v3165 = vrot.slane %v3164, 4
  %v3166 = vadd.f32 %v3164, %v3165
  %v3167 = vrot.slane %v3166, 2
  %v3168 = vadd.f32 %v3166, %v3167
  %v3169 = vrot.slane %v3168, 1
  %v3170 = vadd.f32 %v3168, %v3169
  %v3171 = vsel %vm2676, %v3125, 0.0
  %v3172 = vrot.slane %v3171, 4
  %v3173 = vadd.f32 %v3171, %v3172
  %v3174 = vrot.slane %v3173, 2
  %v3175 = vadd.f32 %v3173, %v3174
  %v3176 = vrot.slane %v3175, 1
  %v3177 = vadd.f32 %v3175, %v3176
  %v3178 = vsel %vm2676, %v3126, 0.0
  %v3179 = vrot.slane %v3178, 4
  %v3180 = vadd.f32 %v3178, %v3179
  %v3181 = vrot.slane %v3180, 2
  %v3182 = vadd.f32 %v3180, %v3181
  %v3183 = vrot.slane %v3182, 1
  %v3184 = vadd.f32 %v3182, %v3183
  %v3185 = vsel %vm2676, %v3127, 0.0
  %v3186 = vrot.slane %v3185, 4
  %v3187 = vadd.f32 %v3185, %v3186
  %v3188 = vrot.slane %v3187, 2
  %v3189 = vadd.f32 %v3187, %v3188
  %v3190 = vrot.slane %v3189, 1
  %v3191 = vadd.f32 %v3189, %v3190
  %v3192 = vpack.c.bf16 %v3142, %v3142
  %v3193 = vpack.c.bf16 %v3149, %v3149
  %v3194 = vpack.c.bf16 %v3156, %v3156
  %v3195 = vpack.c.bf16 %v3163, %v3163
  %v3196 = vpack.c.bf16 %v3170, %v3170
  %v3197 = vpack.c.bf16 %v3177, %v3177
  %v3198 = vpack.c.bf16 %v3184, %v3184
  %v3199 = vpack.c.bf16 %v3191, %v3191
  %s3200 = scalar_lea.vmem %s4, 128
  %v3201 = vld [vmem:[%s3200] sm:$0xf]
  %v3202 = vld [vmem:[%s3200 + $0x4] sm:$0xf]
  %v3203 = vld [vmem:[%s3200 + $0x8] sm:$0xf]
  %v3204 = vld [vmem:[%s3200 + $0xc] sm:$0xf]
  %v3205 = vld [vmem:[%s3200 + $0x10] sm:$0xf]
  %v3206 = vld [vmem:[%s3200 + $0x14] sm:$0xf]
  %v3207 = vld [vmem:[%s3200 + $0x18] sm:$0xf]
  %v3208 = vld [vmem:[%s3200 + $0x1c] sm:$0xf]
  %v3209 = vld [vmem:[%s3200 + $0x20] sm:$0xf]
  %v3210 = vld [vmem:[%s3200 + $0x24] sm:$0xf]
  %v3211 = vld [vmem:[%s3200 + $0x28] sm:$0xf]
  %v3212 = vld [vmem:[%s3200 + $0x2c] sm:$0xf]
  %v3213 = vld [vmem:[%s3200 + $0x30] sm:$0xf]
  %v3214 = vld [vmem:[%s3200 + $0x34] sm:$0xf]
  %v3215 = vld [vmem:[%s3200 + $0x38] sm:$0xf]
  %v3216 = vld [vmem:[%s3200 + $0x3c] sm:$0xf]
  %v3225 = vunpack.c.l.b16 %v3192
  %v3226 = vunpack.c.l.b16 %v3193
  %v3227 = vunpack.c.l.b16 %v3194
  %v3228 = vunpack.c.l.b16 %v3195
  %v3229 = vunpack.c.l.b16 %v3196
  %v3230 = vunpack.c.l.b16 %v3197
  %v3231 = vunpack.c.l.b16 %v3198
  %v3232 = vunpack.c.l.b16 %v3199
  %v3233 = vsel %vm2903, %v3226, %v3225
  %v3234 = vsel %vm2905, %v3227, %v3233
  %v3235 = vsel %vm2907, %v3228, %v3234
  %v3236 = vsel %vm2909, %v3229, %v3235
  %v3237 = vsel %vm2911, %v3230, %v3236
  %v3238 = vsel %vm2913, %v3231, %v3237
  %v3239 = vsel %vm2915, %v3232, %v3238
  %v3240 = vpack.c.b16 %v3239, %v3239
  %v3258 = vunpack.c.l.b16 %v3201
  %v3259 = vunpack.c.l.b16 %v3202
  %v3260 = vunpack.c.l.b16 %v3203
  %v3261 = vunpack.c.l.b16 %v3204
  %v3262 = vunpack.c.l.b16 %v3205
  %v3263 = vunpack.c.l.b16 %v3206
  %v3264 = vunpack.c.l.b16 %v3207
  %v3265 = vunpack.c.l.b16 %v3208
  %v3266 = vunpack.c.l.b16 %v3209
  %v3267 = vunpack.c.l.b16 %v3210
  %v3268 = vunpack.c.l.b16 %v3211
  %v3269 = vunpack.c.l.b16 %v3212
  %v3270 = vunpack.c.l.b16 %v3213
  %v3271 = vunpack.c.l.b16 %v3214
  %v3272 = vunpack.c.l.b16 %v3215
  %v3273 = vunpack.c.l.b16 %v3216
  %v3274 = vpack.c.b16 %v3259, %v3258
  %v3275 = vpack.c.b16 %v3261, %v3260
  %v3276 = vpack.c.b16 %v3263, %v3262
  %v3277 = vpack.c.b16 %v3265, %v3264
  %v3278 = vpack.c.b16 %v3267, %v3266
  %v3279 = vpack.c.b16 %v3269, %v3268
  %v3280 = vpack.c.b16 %v3271, %v3270
  %v3281 = vpack.c.b16 %v3273, %v3272
  %3290 = vmatprep.subr.bf16.mxu0 0
  %3291 = vmatpush1.bf16.msra.mxu0 %v3281
  %3292 = vmatprep.subr.bf16.mxu0 0
  %3293 = vmatpush1.bf16.msra.mxu0 %v3280
  %3294 = vmatprep.subr.bf16.mxu0 0
  %3295 = vmatpush1.bf16.msra.mxu0 %v3279
  %3296 = vmatprep.subr.bf16.mxu0 0
  %3297 = vmatpush1.bf16.msra.mxu0 %v3278
  %3298 = vmatprep.subr.bf16.mxu0 0
  %3299 = vmatpush1.bf16.msra.mxu0 %v3277
  %3300 = vmatprep.subr.bf16.mxu0 0
  %3301 = vmatpush1.bf16.msra.mxu0 %v3276
  %3302 = vmatprep.subr.bf16.mxu0 0
  %3303 = vmatpush1.bf16.msra.mxu0 %v3275
  %3304 = vmatprep.subr.bf16.mxu0 0
  %3305 = vmatpush1.bf16.msra.mxu0 %v3274
  %3306 = vmatprep.subr.bf16.mxu0 0
  %3307 = vmatpush2.bf16.msra.mxu0 0
  %3308 = vmatprep.subr.bf16.mxu0 0
  %3309 = vmatpush2.bf16.msra.mxu0 0
  %3310 = vmatprep.subr.bf16.mxu0 0
  %3311 = vmatpush2.bf16.msra.mxu0 0
  %3312 = vmatprep.subr.bf16.mxu0 0
  %3313 = vmatpush2.bf16.msra.mxu0 0
  %3314 = vmatprep.subr.bf16.mxu0 0
  %3315 = vmatpush2.bf16.msra.mxu0 0
  %3316 = vmatprep.subr.bf16.mxu0 0
  %3317 = vmatpush2.bf16.msra.mxu0 0
  %3318 = vmatprep.subr.bf16.mxu0 0
  %3319 = vmatpush2.bf16.msra.mxu0 0
  %3320 = vmatprep.subr.bf16.mxu0 0
  %3321 = vmatpush2.bf16.msra.mxu0 0
  %3322 = vmatprep.mubr.bf16.mxu0 0
  %3323 = vmatmul.mubr.bf16.gmra.mxu0 %v3240
  %v3324 = vpop.f32.mrf.mxu0
  %v3325 = vadd.f32 0.0, %v3324
  %v3326 = vpop.f32.mrf.mxu0
  %v3327 = vpop.f32.mrf.mxu0
  %v3328 = vpop.f32.mrf.mxu0
  %3329 = vdwg.mxu0
  %v3330 = vadd.f32 %v3115, %v3325
  %v3331 = vld [vmem:[%s5] sm:$0x1]
  %v3333 = vlaneseq
  %v3334 = vshrl.u32 %v3333, 7
  %v3335 = vsub.s32 0, %v3334
  %v3336 = vrot.slane %v3331, %v3335
  %v3338 = vadd.f32 %v3330, %v3336
  %v3339 = vmax.f32 %v3338, 0.0
  %v3340 = vpack.c.bf16 %v3339, %v3339
  %v3341 = vld [vmem:[%s6] sm:$0xf]
  %v3342 = vld [vmem:[%s6 + $0x4] sm:$0xf]
  %v3343 = vld [vmem:[%s6 + $0x8] sm:$0xf]
  %v3344 = vld [vmem:[%s6 + $0xc] sm:$0xf]
  %v3345 = vld [vmem:[%s6 + $0x10] sm:$0xf]
  %v3346 = vld [vmem:[%s6 + $0x14] sm:$0xf]
  %v3347 = vld [vmem:[%s6 + $0x18] sm:$0xf]
  %v3348 = vld [vmem:[%s6 + $0x1c] sm:$0xf]
  %v3349 = vld [vmem:[%s6 + $0x20] sm:$0xf]
  %v3350 = vld [vmem:[%s6 + $0x24] sm:$0xf]
  %v3351 = vld [vmem:[%s6 + $0x28] sm:$0xf]
  %v3352 = vld [vmem:[%s6 + $0x2c] sm:$0xf]
  %v3353 = vld [vmem:[%s6 + $0x30] sm:$0xf]
  %v3354 = vld [vmem:[%s6 + $0x34] sm:$0xf]
  %v3355 = vld [vmem:[%s6 + $0x38] sm:$0xf]
  %v3356 = vld [vmem:[%s6 + $0x3c] sm:$0xf]
  %v3357 = vld [vmem:[%s7] sm:$0x1]
  %v3359 = vlaneseq
  %v3360 = vshrl.u32 %v3359, 7
  %v3361 = vsub.s32 0, %v3360
  %v3362 = vrot.slane %v3357, %v3361
  %v3380 = vunpack.c.l.b16 %v3341
  %v3381 = vunpack.c.l.b16 %v3342
  %v3382 = vunpack.c.l.b16 %v3343
  %v3383 = vunpack.c.l.b16 %v3344
  %v3384 = vunpack.c.l.b16 %v3345
  %v3385 = vunpack.c.l.b16 %v3346
  %v3386 = vunpack.c.l.b16 %v3347
  %v3387 = vunpack.c.l.b16 %v3348
  %v3388 = vunpack.c.l.b16 %v3349
  %v3389 = vunpack.c.l.b16 %v3350
  %v3390 = vunpack.c.l.b16 %v3351
  %v3391 = vunpack.c.l.b16 %v3352
  %v3392 = vunpack.c.l.b16 %v3353
  %v3393 = vunpack.c.l.b16 %v3354
  %v3394 = vunpack.c.l.b16 %v3355
  %v3395 = vunpack.c.l.b16 %v3356
  %v3396 = vpack.c.b16 %v3381, %v3380
  %v3397 = vpack.c.b16 %v3383, %v3382
  %v3398 = vpack.c.b16 %v3385, %v3384
  %v3399 = vpack.c.b16 %v3387, %v3386
  %v3400 = vpack.c.b16 %v3389, %v3388
  %v3401 = vpack.c.b16 %v3391, %v3390
  %v3402 = vpack.c.b16 %v3393, %v3392
  %v3403 = vpack.c.b16 %v3395, %v3394
  %3412 = vmatprep.subr.bf16.mxu0 0
  %3413 = vmatpush1.bf16.msra.mxu0 %v3403
  %3414 = vmatprep.subr.bf16.mxu0 0
  %3415 = vmatpush1.bf16.msra.mxu0 %v3402
  %3416 = vmatprep.subr.bf16.mxu0 0
  %3417 = vmatpush1.bf16.msra.mxu0 %v3401
  %3418 = vmatprep.subr.bf16.mxu0 0
  %3419 = vmatpush1.bf16.msra.mxu0 %v3400
  %3420 = vmatprep.subr.bf16.mxu0 0
  %3421 = vmatpush1.bf16.msra.mxu0 %v3399
  %3422 = vmatprep.subr.bf16.mxu0 0
  %3423 = vmatpush1.bf16.msra.mxu0 %v3398
  %3424 = vmatprep.subr.bf16.mxu0 0
  %3425 = vmatpush1.bf16.msra.mxu0 %v3397
  %3426 = vmatprep.subr.bf16.mxu0 0
  %3427 = vmatpush1.bf16.msra.mxu0 %v3396
  %3428 = vmatprep.subr.bf16.mxu0 0
  %3429 = vmatpush2.bf16.msra.mxu0 0
  %3430 = vmatprep.subr.bf16.mxu0 0
  %3431 = vmatpush2.bf16.msra.mxu0 0
  %3432 = vmatprep.subr.bf16.mxu0 0
  %3433 = vmatpush2.bf16.msra.mxu0 0
  %3434 = vmatprep.subr.bf16.mxu0 0
  %3435 = vmatpush2.bf16.msra.mxu0 0
  %3436 = vmatprep.subr.bf16.mxu0 0
  %3437 = vmatpush2.bf16.msra.mxu0 0
  %3438 = vmatprep.subr.bf16.mxu0 0
  %3439 = vmatpush2.bf16.msra.mxu0 0
  %3440 = vmatprep.subr.bf16.mxu0 0
  %3441 = vmatpush2.bf16.msra.mxu0 0
  %3442 = vmatprep.subr.bf16.mxu0 0
  %3443 = vmatpush2.bf16.msra.mxu0 0
  %3444 = vmatprep.mubr.bf16.mxu0 0
  %3445 = vmatmul.mubr.bf16.gmra.mxu0 %v3340
  %v3446 = vpop.f32.mrf.mxu0
  %v3447 = vadd.f32 %v3362, %v3446
  %v3448 = vpop.f32.mrf.mxu0
  %v3449 = vpop.f32.mrf.mxu0
  %v3450 = vpop.f32.mrf.mxu0
  %3451 = vdwg.mxu0
  %v3452 = vmax.f32 %v3447, 0.0
  %v3453 = vpack.c.bf16 %v3452, %v3452
  %v3454 = vld [vmem:[%s8] sm:$0xf]
  %v3455 = vld [vmem:[%s8 + $0x4] sm:$0xf]
  %v3456 = vld [vmem:[%s8 + $0x8] sm:$0xf]
  %v3457 = vld [vmem:[%s8 + $0xc] sm:$0xf]
  %v3458 = vld [vmem:[%s8 + $0x10] sm:$0xf]
  %v3459 = vld [vmem:[%s8 + $0x14] sm:$0xf]
  %v3460 = vld [vmem:[%s8 + $0x18] sm:$0xf]
  %v3461 = vld [vmem:[%s8 + $0x1c] sm:$0xf]
  %v3462 = vld [vmem:[%s8 + $0x20] sm:$0xf]
  %v3463 = vld [vmem:[%s8 + $0x24] sm:$0xf]
  %v3464 = vld [vmem:[%s8 + $0x28] sm:$0xf]
  %v3465 = vld [vmem:[%s8 + $0x2c] sm:$0xf]
  %v3466 = vld [vmem:[%s8 + $0x30] sm:$0xf]
  %v3467 = vld [vmem:[%s8 + $0x34] sm:$0xf]
  %v3468 = vld [vmem:[%s8 + $0x38] sm:$0xf]
  %v3469 = vld [vmem:[%s8 + $0x3c] sm:$0xf]
  %v3470 = vld [vmem:[%s9] sm:$0x1]
  %v3472 = vlaneseq
  %v3473 = vshrl.u32 %v3472, 7
  %v3474 = vsub.s32 0, %v3473
  %v3475 = vrot.slane %v3470, %v3474
  %v3493 = vunpack.c.l.b16 %v3454
  %v3494 = vunpack.c.l.b16 %v3455
  %v3495 = vunpack.c.l.b16 %v3456
  %v3496 = vunpack.c.l.b16 %v3457
  %v3497 = vunpack.c.l.b16 %v3458
  %v3498 = vunpack.c.l.b16 %v3459
  %v3499 = vunpack.c.l.b16 %v3460
  %v3500 = vunpack.c.l.b16 %v3461
  %v3501 = vunpack.c.l.b16 %v3462
  %v3502 = vunpack.c.l.b16 %v3463
  %v3503 = vunpack.c.l.b16 %v3464
  %v3504 = vunpack.c.l.b16 %v3465
  %v3505 = vunpack.c.l.b16 %v3466
  %v3506 = vunpack.c.l.b16 %v3467
  %v3507 = vunpack.c.l.b16 %v3468
  %v3508 = vunpack.c.l.b16 %v3469
  %v3509 = vpack.c.b16 %v3494, %v3493
  %v3510 = vpack.c.b16 %v3496, %v3495
  %v3511 = vpack.c.b16 %v3498, %v3497
  %v3512 = vpack.c.b16 %v3500, %v3499
  %v3513 = vpack.c.b16 %v3502, %v3501
  %v3514 = vpack.c.b16 %v3504, %v3503
  %v3515 = vpack.c.b16 %v3506, %v3505
  %v3516 = vpack.c.b16 %v3508, %v3507
  %3525 = vmatprep.subr.bf16.mxu0 0
  %3526 = vmatpush1.bf16.msra.mxu0 %v3516
  %3527 = vmatprep.subr.bf16.mxu0 0
  %3528 = vmatpush1.bf16.msra.mxu0 %v3515
  %3529 = vmatprep.subr.bf16.mxu0 0
  %3530 = vmatpush1.bf16.msra.mxu0 %v3514
  %3531 = vmatprep.subr.bf16.mxu0 0
  %3532 = vmatpush1.bf16.msra.mxu0 %v3513
  %3533 = vmatprep.subr.bf16.mxu0 0
  %3534 = vmatpush1.bf16.msra.mxu0 %v3512
  %3535 = vmatprep.subr.bf16.mxu0 0
  %3536 = vmatpush1.bf16.msra.mxu0 %v3511
  %3537 = vmatprep.subr.bf16.mxu0 0
  %3538 = vmatpush1.bf16.msra.mxu0 %v3510
  %3539 = vmatprep.subr.bf16.mxu0 0
  %3540 = vmatpush1.bf16.msra.mxu0 %v3509
  %3541 = vmatprep.subr.bf16.mxu0 0
  %3542 = vmatpush2.bf16.msra.mxu0 0
  %3543 = vmatprep.subr.bf16.mxu0 0
  %3544 = vmatpush2.bf16.msra.mxu0 0
  %3545 = vmatprep.subr.bf16.mxu0 0
  %3546 = vmatpush2.bf16.msra.mxu0 0
  %3547 = vmatprep.subr.bf16.mxu0 0
  %3548 = vmatpush2.bf16.msra.mxu0 0
  %3549 = vmatprep.subr.bf16.mxu0 0
  %3550 = vmatpush2.bf16.msra.mxu0 0
  %3551 = vmatprep.subr.bf16.mxu0 0
  %3552 = vmatpush2.bf16.msra.mxu0 0
  %3553 = vmatprep.subr.bf16.mxu0 0
  %3554 = vmatpush2.bf16.msra.mxu0 0
  %3555 = vmatprep.subr.bf16.mxu0 0
  %3556 = vmatpush2.bf16.msra.mxu0 0
  %3557 = vmatprep.mubr.bf16.mxu0 0
  %3558 = vmatmul.mubr.bf16.gmra.mxu0 %v3453
  %v3559 = vpop.f32.mrf.mxu0
  %v3560 = vadd.f32 %v3475, %v3559
  %v3561 = vpop.f32.mrf.mxu0
  %v3562 = vpop.f32.mrf.mxu0
  %v3563 = vpop.f32.mrf.mxu0
  %3564 = vdwg.mxu0
  %3565 = vst [vmem:[%s10] sm:$0xff] %v3560
  // Predicated region
  $region42: #{_lambda_.1} parent=0 // pred_check
    _
  $region43: #{_lambda_.1} parent=0 // pred_check_branch
    %3567 = sbr.rel (0) target = $region45
  $region44: #{_lambda_.1} parent=0 // pred_region
    _
  $region45: #{_lambda_.1} parent=0 // pred_fallthru
    _
  // Predicated region
  $region46: #{_lambda_.1} parent=0 // pred_check
    _
  $region47: #{_lambda_.1} parent=0 // pred_check_branch
    %3569 = sbr.rel (0) target = $region49
  $region48: #{_lambda_.1} parent=0 // pred_region
    _
  $region49: #{_lambda_.1} parent=0 // pred_fallthru
    _

</llo_original>
